<compile_context>
chip_gen: v7x
topology: tpu7x:2x2x1
jax: 0.10.0
libtpu: 0.0.40
codegen_flags: <defaults>
</compile_context>

<pallas_src>
import jax
import jax.numpy as jnp
from jax import lax
from jax.experimental import pallas as pl
from jax.experimental.pallas import tpu as pltpu

EPS = 1e-5   # PyTorch BatchNorm1d default eps
L_IN = 60    # sequence length expected by the module
C_IN = 23    # input channels


def _round_up(n, m):
    return ((n + m - 1) // m) * m


# ------------------------------ Pallas kernel ------------------------------ #

def _conv_bn_relu_pool(h, w_ref, s_ref, b_ref):
    """(L, T, Cin) -> (L//2, T, Cout): Conv1d(k=3,pad=1) + BN + ReLU + MaxPool(2).

    w_ref: (3, Cin, Cout) with w_ref[k][ci, co] = torch_w[co, ci, k].
    s_ref / b_ref: (1, Cout) fused BN scale / shift (shift includes conv bias).
    """
    L, T, C = h.shape
    Cout = w_ref.shape[2]
    zero = jnp.zeros((1, T, C), h.dtype)
    hprev = jnp.concatenate([zero, h[:-1]], axis=0)   # h[l-1], zero at l = 0
    hnext = jnp.concatenate([h[1:], zero], axis=0)    # h[l+1], zero at l = L-1
    # conv as three shifted matmuls summed (tap order matches torch k=0,1,2)
    y = jnp.dot(hprev.reshape(L * T, C), w_ref[0], preferred_element_type=jnp.float32)
    y = y + jnp.dot(h.reshape(L * T, C), w_ref[1], preferred_element_type=jnp.float32)
    y = y + jnp.dot(hnext.reshape(L * T, C), w_ref[2], preferred_element_type=jnp.float32)
    y = jnp.maximum(y * s_ref[...] + b_ref[...], 0.0)          # fused BN + ReLU
    y = y.reshape(L // 2, 2, T, Cout)                          # pair length positions
    return jnp.maximum(y[:, 0], y[:, 1])                       # MaxPool1d(kernel_size=2)


def fused_forward_kernel(x_ref,
                         w1_ref, s1_ref, b1_ref,
                         w2_ref, s2_ref, b2_ref,
                         fw1_ref, fs1_ref, fb1_ref,
                         fw2_ref, fs2_ref, fb2_ref,
                         fw3_ref, fb3_ref,
                         o_ref):
    x = x_ref[...]                                             # (60, TB, 23)
    p1 = _conv_bn_relu_pool(x, w1_ref, s1_ref, b1_ref)         # (30, TB, 32)
    p2 = _conv_bn_relu_pool(p1, w2_ref, s2_ref, b2_ref)        # (15, TB, 64)

    # Flatten + fc1.  torch flattens (N, 64, 15) channel-major; fw1_ref's rows
    # were permuted offline to (j, c, out) so pooled position j's (64, 256)
    # slice multiplies p2[j] directly -- no in-kernel transpose needed.
    h = jnp.dot(p2[0], fw1_ref[0], preferred_element_type=jnp.float32)
    for j in range(1, p2.shape[0]):
        h = h + jnp.dot(p2[j], fw1_ref[j], preferred_element_type=jnp.float32)
    h = jnp.maximum(h * fs1_ref[...] + fb1_ref[...], 0.0)      # bn_fc1 + relu (dropout = id)
    h = jnp.dot(h, fw2_ref[...], preferred_element_type=jnp.float32)
    h = jnp.maximum(h * fs2_ref[...] + fb2_ref[...], 0.0)      # bn_fc2 + relu (dropout = id)
    z = jnp.dot(h, fw3_ref[...], preferred_element_type=jnp.float32) + fb3_ref[...]
    o_ref[...] = jax.nn.sigmoid(z)                             # (TB, 1)


# ------------------------ one-time parameter prep -------------------------- #

def fuse_bn(bias, gamma, beta, mean, var):
    scale = gamma / jnp.sqrt(var + EPS)
    shift = beta + scale * (bias - mean)
    return scale, shift


def prep_params(p):
    """Hoisted weight prep: BN fusion, transposes, fc1 input-row permutation."""
    s1, b1 = fuse_bn(p['b1'], p['g1'], p['be1'], p['m1'], p['v1'])
    s2, b2 = fuse_bn(p['b2'], p['g2'], p['be2'], p['m2'], p['v2'])
    fs1, fb1 = fuse_bn(p['fb1'], p['fg1'], p['fbe1'], p['fm1'], p['fv1'])
    fs2, fb2 = fuse_bn(p['fb2'], p['fg2'], p['fbe2'], p['fm2'], p['fv2'])
    return dict(
        w1=jnp.transpose(p['w1'], (2, 1, 0)),                        # (3, 23, 32)
        s1=s1.reshape(1, -1), b1=b1.reshape(1, -1),
        w2=jnp.transpose(p['w2'], (2, 1, 0)),                        # (3, 32, 64)
        s2=s2.reshape(1, -1), b2=b2.reshape(1, -1),
        # fc1 weight (256, 960) indexed by c*15+j  ->  (15, 64, 256) = [j, c, out]
        fw1=jnp.transpose(p['fw1'].reshape(-1, 64, 15), (2, 1, 0)),
        fs1=fs1.reshape(1, -1), fb1=fb1.reshape(1, -1),
        fw2=p['fw2'].T,                                              # (256, 128)
        fs2=fs2.reshape(1, -1), fb2=fb2.reshape(1, -1),
        fw3=p['fw3'].T,                                              # (128, 1)
        fb3=p['fb3'].reshape(1, 1),
    )


# ------------------------------- forward ----------------------------------- #

def forward(x, kp, *, batch_tile=128):
    """x: (N, 23, 60) float32 -> (N,) sigmoid scores (matches torch for N > 1)."""
    N = x.shape[0]
    TB = min(batch_tile, _round_up(N, 8))          # batch tile, multiple of 8
    Np = _round_up(N, TB)
    xl = jnp.transpose(x, (2, 0, 1))               # (60, N, 23): L leading, C on lanes
    if Np != N:
        xl = jnp.pad(xl, ((0, 0), (0, Np - N), (0, 0)))

    param_bytes = 4 * sum(int(v.size) for v in kp.values())
    cost = pl.CostEstimate(
        flops=2 * Np * (60 * 3 * 23 * 32 + 30 * 3 * 32 * 64
                        + 960 * 256 + 256 * 128 + 128),
        transcendentals=Np,
        bytes_accessed=4 * 60 * Np * 23 + param_bytes + 4 * Np,
    )

    def wspec(shape):
        return pl.BlockSpec(shape, lambda i, _s=shape: (0,) * len(_s))

    out = pl.pallas_call(
        fused_forward_kernel,
        out_shape=jax.ShapeDtypeStruct((Np, 1), jnp.float32),
        grid=(Np // TB,),
        in_specs=[
            pl.BlockSpec((L_IN, TB, C_IN), lambda i: (0, i, 0)),
            wspec(kp['w1'].shape), wspec(kp['s1'].shape), wspec(kp['b1'].shape),
            wspec(kp['w2'].shape), wspec(kp['s2'].shape), wspec(kp['b2'].shape),
            wspec(kp['fw1'].shape), wspec(kp['fs1'].shape), wspec(kp['fb1'].shape),
            wspec(kp['fw2'].shape), wspec(kp['fs2'].shape), wspec(kp['fb2'].shape),
            wspec(kp['fw3'].shape), wspec(kp['fb3'].shape),
        ],
        out_specs=pl.BlockSpec((TB, 1), lambda i: (i, 0)),
        compiler_params=pltpu.CompilerParams(
            dimension_semantics=("parallel",),
            vmem_limit_bytes=48 * 1024 * 1024),
        cost_estimate=cost,
    )(xl, kp['w1'], kp['s1'], kp['b1'], kp['w2'], kp['s2'], kp['b2'],
      kp['fw1'], kp['fs1'], kp['fb1'], kp['fw2'], kp['fs2'], kp['fb2'],
      kp['fw3'], kp['fb3'])
    # torch .squeeze() returns a scalar for N == 1; we always return shape (N,).
    return out[:N, 0]


# ------------------------- pure-JAX reference check ------------------------ #

def reference(x, p):
    hp = lax.Precision.HIGHEST   # match the f32 accuracy of the Pallas matmuls

    def bn_c(y, g, be, m, v):
        return (g[None, :, None] * (y - m[None, :, None])
                / jnp.sqrt(v[None, :, None] + EPS) + be[None, :, None])

    def bn_f(y, g, be, m, v):
        return g * (y - m) / jnp.sqrt(v + EPS) + be

    dn = ('NCH', 'OIH', 'NCH')
    y = lax.conv_general_dilated(x, p['w1'], (1,), ((1, 1),),
                                 dimension_numbers=dn,
                                 precision=hp) + p['b1'][None, :, None]
    y = jnp.maximum(bn_c(y, p['g1'], p['be1'], p['m1'], p['v1']), 0.0)
    N, C, L = y.shape
    y = y.reshape(N, C, L // 2, 2).max(-1)
    y = lax.conv_general_dilated(y, p['w2'], (1,), ((1, 1),),
                                 dimension_numbers=dn,
                                 precision=hp) + p['b2'][None, :, None]
    y = jnp.maximum(bn_c(y, p['g2'], p['be2'], p['m2'], p['v2']), 0.0)
    N, C, L = y.shape
    y = y.reshape(N, C, L // 2, 2).max(-1)
    f = y.reshape(N, -1)
    h = jnp.maximum(bn_f(jnp.dot(f, p['fw1'].T, precision=hp) + p['fb1'],
                         p['fg1'], p['fbe1'], p['fm1'], p['fv1']), 0.0)
    h = jnp.maximum(bn_f(jnp.dot(h, p['fw2'].T, precision=hp) + p['fb2'],
                         p['fg2'], p['fbe2'], p['fm2'], p['fv2']), 0.0)
    z = jnp.dot(h, p['fw3'].T, precision=hp) + p['fb3']
    return jax.nn.sigmoid(z).squeeze(-1)


# ---------------------------------- main ----------------------------------- #

def init_params(key):
    ks = jax.random.split(key, 32)
    n = lambda i, shape, s=0.1: s * jax.random.normal(ks[i], shape, jnp.float32)
    p = {}
    # conv1: 23 -> 32, k=3
    p['w1'] = n(0, (32, 23, 3)); p['b1'] = n(1, (32,))
    p['g1'] = 1.0 + n(2, (32,)); p['be1'] = n(3, (32,))
    p['m1'] = n(4, (32,), 0.05); p['v1'] = 0.9 + jnp.abs(n(5, (32,)))
    # conv2: 32 -> 64, k=3
    p['w2'] = n(6, (64, 32, 3)); p['b2'] = n(7, (64,))
    p['g2'] = 1.0 + n(8, (64,)); p['be2'] = n(9, (64,))
    p['m2'] = n(10, (64,), 0.05); p['v2'] = 0.9 + jnp.abs(n(11, (64,)))
    # fc1: 960 -> 256 (fc_input_size = 64 * 15)
    p['fw1'] = n(12, (256, 960), 0.03); p['fb1'] = n(13, (256,))
    p['fg1'] = 1.0 + n(14, (256,)); p['fbe1'] = n(15, (256,))
    p['fm1'] = n(16, (256,), 0.05); p['fv1'] = 0.9 + jnp.abs(n(17, (256,)))
    # fc2: 256 -> 128
    p['fw2'] = n(18, (128, 256), 0.05); p['fb2'] = n(19, (128,))
    p['fg2'] = 1.0 + n(20, (128,)); p['fbe2'] = n(21, (128,))
    p['fm2'] = n(22, (128,), 0.05); p['fv2'] = 0.9 + jnp.abs(n(23, (128,)))
    # fc3: 128 -> 1
    p['fw3'] = n(24, (1, 128)); p['fb3'] = n(25, (1,))
    return p


if __name__ == "__main__":
    key = jax.random.PRNGKey(0)
    pkey, xkey = jax.random.split(key)
    params = init_params(pkey)
    kparams = prep_params(params)          # one-time weight prep (hoisted)

    # input consistent with the module: (batch, in_channels=23, length=60)
    x = jax.random.normal(xkey, (4, 23, 60), jnp.float32)

    fwd = jax.jit(forward)
    out = jax.block_until_ready(fwd(x, kparams))
    ref = jax.block_until_ready(reference(x, params))

    assert out.shape == (4,), out.shape
    assert bool(jnp.all(jnp.isfinite(out)))
    assert bool(jnp.allclose(out, ref, atol=2e-3, rtol=2e-3)), (out, ref)
    print("KERNEL_OK")
</pallas_src>

<mosaic_0001>
module attributes {stable_mosaic.version = 11 : i64} {
  func.func @fused_forward_kernel(%arg0: i32, %arg1: memref<60x8x23xf32, #tpu.memory_space<vmem>>, %arg2: memref<3x23x32xf32, #tpu.memory_space<vmem>>, %arg3: memref<1x32xf32, #tpu.memory_space<vmem>>, %arg4: memref<1x32xf32, #tpu.memory_space<vmem>>, %arg5: memref<3x32x64xf32, #tpu.memory_space<vmem>>, %arg6: memref<1x64xf32, #tpu.memory_space<vmem>>, %arg7: memref<1x64xf32, #tpu.memory_space<vmem>>, %arg8: memref<15x64x256xf32, #tpu.memory_space<vmem>>, %arg9: memref<1x256xf32, #tpu.memory_space<vmem>>, %arg10: memref<1x256xf32, #tpu.memory_space<vmem>>, %arg11: memref<256x128xf32, #tpu.memory_space<vmem>>, %arg12: memref<1x128xf32, #tpu.memory_space<vmem>>, %arg13: memref<1x128xf32, #tpu.memory_space<vmem>>, %arg14: memref<128x1xf32, #tpu.memory_space<vmem>>, %arg15: memref<1x1xf32, #tpu.memory_space<vmem>>, %arg16: memref<8x1xf32, #tpu.memory_space<vmem>>) attributes {dimension_semantics = [#tpu.dimension_semantics<parallel>], iteration_bounds = array<i64: 1>, scalar_prefetch = 0 : i64, scratch_operands = 0 : i64, tpu.core_type = #tpu.core_type<tc>, window_params = [{transform_indices = @transform_0, window_bounds = array<i64: 60, 8, 23>}, {pipeline_mode = #tpu.pipeline_mode<synchronous>, transform_indices = @transform_1, window_bounds = array<i64: 3, 23, 32>}, {pipeline_mode = #tpu.pipeline_mode<synchronous>, transform_indices = @transform_2, window_bounds = array<i64: 1, 32>}, {pipeline_mode = #tpu.pipeline_mode<synchronous>, transform_indices = @transform_3, window_bounds = array<i64: 1, 32>}, {pipeline_mode = #tpu.pipeline_mode<synchronous>, transform_indices = @transform_4, window_bounds = array<i64: 3, 32, 64>}, {pipeline_mode = #tpu.pipeline_mode<synchronous>, transform_indices = @transform_5, window_bounds = array<i64: 1, 64>}, {pipeline_mode = #tpu.pipeline_mode<synchronous>, transform_indices = @transform_6, window_bounds = array<i64: 1, 64>}, {pipeline_mode = #tpu.pipeline_mode<synchronous>, transform_indices = @transform_7, window_bounds = array<i64: 15, 64, 256>}, {pipeline_mode = #tpu.pipeline_mode<synchronous>, transform_indices = @transform_8, window_bounds = array<i64: 1, 256>}, {pipeline_mode = #tpu.pipeline_mode<synchronous>, transform_indices = @transform_9, window_bounds = array<i64: 1, 256>}, {pipeline_mode = #tpu.pipeline_mode<synchronous>, transform_indices = @transform_10, window_bounds = array<i64: 256, 128>}, {pipeline_mode = #tpu.pipeline_mode<synchronous>, transform_indices = @transform_11, window_bounds = array<i64: 1, 128>}, {pipeline_mode = #tpu.pipeline_mode<synchronous>, transform_indices = @transform_12, window_bounds = array<i64: 1, 128>}, {pipeline_mode = #tpu.pipeline_mode<synchronous>, transform_indices = @transform_13, window_bounds = array<i64: 128, 1>}, {pipeline_mode = #tpu.pipeline_mode<synchronous>, transform_indices = @transform_14, window_bounds = array<i64: 1, 1>}, {transform_indices = @transform_15, window_bounds = array<i64: 8, 1>}]} {
    %c0 = arith.constant 0 : index
    %c0_0 = arith.constant 0 : index
    %c0_1 = arith.constant 0 : index
    %0 = vector.load %arg1[%c0, %c0_0, %c0_1] : memref<60x8x23xf32, #tpu.memory_space<vmem>>, vector<60x8x23xf32>
    %cst = arith.constant 0.000000e+00 : f32
    %1 = vector.broadcast %cst : f32 to vector<1x8x23xf32>
    %2 = vector.extract_strided_slice %0 {offsets = [0, 0, 0], sizes = [59, 8, 23], strides = [1, 1, 1]} : vector<60x8x23xf32> to vector<59x8x23xf32>
    %3 = tpu.concatenate %1, %2 in 0 : vector<1x8x23xf32>, vector<59x8x23xf32> -> vector<60x8x23xf32>
    %4 = vector.extract_strided_slice %0 {offsets = [1, 0, 0], sizes = [59, 8, 23], strides = [1, 1, 1]} : vector<60x8x23xf32> to vector<59x8x23xf32>
    %5 = tpu.concatenate %4, %1 in 0 : vector<59x8x23xf32>, vector<1x8x23xf32> -> vector<60x8x23xf32>
    %6 = vector.shape_cast %3 : vector<60x8x23xf32> to vector<480x23xf32>
    %c0_2 = arith.constant 0 : index
    %c0_3 = arith.constant 0 : index
    %c0_4 = arith.constant 0 : index
    %7 = vector.load %arg2[%c0_2, %c0_3, %c0_4] : memref<3x23x32xf32, #tpu.memory_space<vmem>>, vector<1x23x32xf32>
    %8 = vector.shape_cast %7 : vector<1x23x32xf32> to vector<23x32xf32>
    %cst_5 = arith.constant dense<0.000000e+00> : vector<480x32xf32>
    %9 = tpu.matmul %6, %8, %cst_5 {dimension_numbers = #tpu.dot_dimension_numbers<[1], [0], [0], [1], [0, 0, 1, 1], [], []>} : vector<480x23xf32>, vector<23x32xf32>, vector<480x32xf32> -> vector<480x32xf32>
    %10 = vector.shape_cast %0 : vector<60x8x23xf32> to vector<480x23xf32>
    %c1 = arith.constant 1 : index
    %c0_6 = arith.constant 0 : index
    %c0_7 = arith.constant 0 : index
    %11 = vector.load %arg2[%c1, %c0_6, %c0_7] : memref<3x23x32xf32, #tpu.memory_space<vmem>>, vector<1x23x32xf32>
    %12 = vector.shape_cast %11 : vector<1x23x32xf32> to vector<23x32xf32>
    %cst_8 = arith.constant dense<0.000000e+00> : vector<480x32xf32>
    %13 = tpu.matmul %10, %12, %cst_8 {dimension_numbers = #tpu.dot_dimension_numbers<[1], [0], [0], [1], [0, 0, 1, 1], [], []>} : vector<480x23xf32>, vector<23x32xf32>, vector<480x32xf32> -> vector<480x32xf32>
    %14 = arith.addf %9, %13 : vector<480x32xf32>
    %15 = vector.shape_cast %5 : vector<60x8x23xf32> to vector<480x23xf32>
    %c2 = arith.constant 2 : index
    %c0_9 = arith.constant 0 : index
    %c0_10 = arith.constant 0 : index
    %16 = vector.load %arg2[%c2, %c0_9, %c0_10] : memref<3x23x32xf32, #tpu.memory_space<vmem>>, vector<1x23x32xf32>
    %17 = vector.shape_cast %16 : vector<1x23x32xf32> to vector<23x32xf32>
    %cst_11 = arith.constant dense<0.000000e+00> : vector<480x32xf32>
    %18 = tpu.matmul %15, %17, %cst_11 {dimension_numbers = #tpu.dot_dimension_numbers<[1], [0], [0], [1], [0, 0, 1, 1], [], []>} : vector<480x23xf32>, vector<23x32xf32>, vector<480x32xf32> -> vector<480x32xf32>
    %19 = arith.addf %14, %18 : vector<480x32xf32>
    %c0_12 = arith.constant 0 : index
    %c0_13 = arith.constant 0 : index
    %20 = vector.load %arg3[%c0_12, %c0_13] : memref<1x32xf32, #tpu.memory_space<vmem>>, vector<1x32xf32>
    %21 = vector.broadcast %20 : vector<1x32xf32> to vector<480x32xf32>
    %22 = arith.mulf %19, %21 : vector<480x32xf32>
    %c0_14 = arith.constant 0 : index
    %c0_15 = arith.constant 0 : index
    %23 = vector.load %arg4[%c0_14, %c0_15] : memref<1x32xf32, #tpu.memory_space<vmem>>, vector<1x32xf32>
    %24 = vector.broadcast %23 : vector<1x32xf32> to vector<480x32xf32>
    %25 = arith.addf %22, %24 : vector<480x32xf32>
    %cst_16 = arith.constant 0.000000e+00 : f32
    %26 = vector.broadcast %cst_16 : f32 to vector<480x32xf32>
    %27 = arith.maximumf %25, %26 : vector<480x32xf32>
    %28 = vector.shape_cast %27 : vector<480x32xf32> to vector<30x2x8x32xf32>
    %29 = vector.extract_strided_slice %28 {offsets = [0, 0, 0, 0], sizes = [30, 1, 8, 32], strides = [1, 1, 1, 1]} : vector<30x2x8x32xf32> to vector<30x1x8x32xf32>
    %30 = vector.shape_cast %29 : vector<30x1x8x32xf32> to vector<30x8x32xf32>
    %31 = vector.extract_strided_slice %28 {offsets = [0, 1, 0, 0], sizes = [30, 1, 8, 32], strides = [1, 1, 1, 1]} : vector<30x2x8x32xf32> to vector<30x1x8x32xf32>
    %32 = vector.shape_cast %31 : vector<30x1x8x32xf32> to vector<30x8x32xf32>
    %33 = arith.maximumf %30, %32 : vector<30x8x32xf32>
    %cst_17 = arith.constant 0.000000e+00 : f32
    %34 = vector.broadcast %cst_17 : f32 to vector<1x8x32xf32>
    %35 = vector.extract_strided_slice %33 {offsets = [0, 0, 0], sizes = [29, 8, 32], strides = [1, 1, 1]} : vector<30x8x32xf32> to vector<29x8x32xf32>
    %36 = tpu.concatenate %34, %35 in 0 : vector<1x8x32xf32>, vector<29x8x32xf32> -> vector<30x8x32xf32>
    %37 = vector.extract_strided_slice %33 {offsets = [1, 0, 0], sizes = [29, 8, 32], strides = [1, 1, 1]} : vector<30x8x32xf32> to vector<29x8x32xf32>
    %38 = tpu.concatenate %37, %34 in 0 : vector<29x8x32xf32>, vector<1x8x32xf32> -> vector<30x8x32xf32>
    %39 = vector.shape_cast %36 : vector<30x8x32xf32> to vector<240x32xf32>
    %c0_18 = arith.constant 0 : index
    %c0_19 = arith.constant 0 : index
    %c0_20 = arith.constant 0 : index
    %40 = vector.load %arg5[%c0_18, %c0_19, %c0_20] : memref<3x32x64xf32, #tpu.memory_space<vmem>>, vector<1x32x64xf32>
    %41 = vector.shape_cast %40 : vector<1x32x64xf32> to vector<32x64xf32>
    %cst_21 = arith.constant dense<0.000000e+00> : vector<240x64xf32>
    %42 = tpu.matmul %39, %41, %cst_21 {dimension_numbers = #tpu.dot_dimension_numbers<[1], [0], [0], [1], [0, 0, 1, 1], [], []>} : vector<240x32xf32>, vector<32x64xf32>, vector<240x64xf32> -> vector<240x64xf32>
    %43 = vector.shape_cast %33 : vector<30x8x32xf32> to vector<240x32xf32>
    %c1_22 = arith.constant 1 : index
    %c0_23 = arith.constant 0 : index
    %c0_24 = arith.constant 0 : index
    %44 = vector.load %arg5[%c1_22, %c0_23, %c0_24] : memref<3x32x64xf32, #tpu.memory_space<vmem>>, vector<1x32x64xf32>
    %45 = vector.shape_cast %44 : vector<1x32x64xf32> to vector<32x64xf32>
    %cst_25 = arith.constant dense<0.000000e+00> : vector<240x64xf32>
    %46 = tpu.matmul %43, %45, %cst_25 {dimension_numbers = #tpu.dot_dimension_numbers<[1], [0], [0], [1], [0, 0, 1, 1], [], []>} : vector<240x32xf32>, vector<32x64xf32>, vector<240x64xf32> -> vector<240x64xf32>
    %47 = arith.addf %42, %46 : vector<240x64xf32>
    %48 = vector.shape_cast %38 : vector<30x8x32xf32> to vector<240x32xf32>
    %c2_26 = arith.constant 2 : index
    %c0_27 = arith.constant 0 : index
    %c0_28 = arith.constant 0 : index
    %49 = vector.load %arg5[%c2_26, %c0_27, %c0_28] : memref<3x32x64xf32, #tpu.memory_space<vmem>>, vector<1x32x64xf32>
    %50 = vector.shape_cast %49 : vector<1x32x64xf32> to vector<32x64xf32>
    %cst_29 = arith.constant dense<0.000000e+00> : vector<240x64xf32>
    %51 = tpu.matmul %48, %50, %cst_29 {dimension_numbers = #tpu.dot_dimension_numbers<[1], [0], [0], [1], [0, 0, 1, 1], [], []>} : vector<240x32xf32>, vector<32x64xf32>, vector<240x64xf32> -> vector<240x64xf32>
    %52 = arith.addf %47, %51 : vector<240x64xf32>
    %c0_30 = arith.constant 0 : index
    %c0_31 = arith.constant 0 : index
    %53 = vector.load %arg6[%c0_30, %c0_31] : memref<1x64xf32, #tpu.memory_space<vmem>>, vector<1x64xf32>
    %54 = vector.broadcast %53 : vector<1x64xf32> to vector<240x64xf32>
    %55 = arith.mulf %52, %54 : vector<240x64xf32>
    %c0_32 = arith.constant 0 : index
    %c0_33 = arith.constant 0 : index
    %56 = vector.load %arg7[%c0_32, %c0_33] : memref<1x64xf32, #tpu.memory_space<vmem>>, vector<1x64xf32>
    %57 = vector.broadcast %56 : vector<1x64xf32> to vector<240x64xf32>
    %58 = arith.addf %55, %57 : vector<240x64xf32>
    %cst_34 = arith.constant 0.000000e+00 : f32
    %59 = vector.broadcast %cst_34 : f32 to vector<240x64xf32>
    %60 = arith.maximumf %58, %59 : vector<240x64xf32>
    %61 = vector.shape_cast %60 : vector<240x64xf32> to vector<15x2x8x64xf32>
    %62 = vector.extract_strided_slice %61 {offsets = [0, 0, 0, 0], sizes = [15, 1, 8, 64], strides = [1, 1, 1, 1]} : vector<15x2x8x64xf32> to vector<15x1x8x64xf32>
    %63 = vector.shape_cast %62 : vector<15x1x8x64xf32> to vector<15x8x64xf32>
    %64 = vector.extract_strided_slice %61 {offsets = [0, 1, 0, 0], sizes = [15, 1, 8, 64], strides = [1, 1, 1, 1]} : vector<15x2x8x64xf32> to vector<15x1x8x64xf32>
    %65 = vector.shape_cast %64 : vector<15x1x8x64xf32> to vector<15x8x64xf32>
    %66 = arith.maximumf %63, %65 : vector<15x8x64xf32>
    %67 = vector.extract_strided_slice %66 {offsets = [0, 0, 0], sizes = [1, 8, 64], strides = [1, 1, 1]} : vector<15x8x64xf32> to vector<1x8x64xf32>
    %68 = vector.shape_cast %67 : vector<1x8x64xf32> to vector<8x64xf32>
    %c0_35 = arith.constant 0 : index
    %c0_36 = arith.constant 0 : index
    %c0_37 = arith.constant 0 : index
    %69 = vector.load %arg8[%c0_35, %c0_36, %c0_37] : memref<15x64x256xf32, #tpu.memory_space<vmem>>, vector<1x64x256xf32>
    %70 = vector.shape_cast %69 : vector<1x64x256xf32> to vector<64x256xf32>
    %cst_38 = arith.constant dense<0.000000e+00> : vector<8x256xf32>
    %71 = tpu.matmul %68, %70, %cst_38 {dimension_numbers = #tpu.dot_dimension_numbers<[1], [0], [0], [1], [0, 0, 1, 1], [], []>} : vector<8x64xf32>, vector<64x256xf32>, vector<8x256xf32> -> vector<8x256xf32>
    %72 = vector.extract_strided_slice %66 {offsets = [1, 0, 0], sizes = [1, 8, 64], strides = [1, 1, 1]} : vector<15x8x64xf32> to vector<1x8x64xf32>
    %73 = vector.shape_cast %72 : vector<1x8x64xf32> to vector<8x64xf32>
    %c1_39 = arith.constant 1 : index
    %c0_40 = arith.constant 0 : index
    %c0_41 = arith.constant 0 : index
    %74 = vector.load %arg8[%c1_39, %c0_40, %c0_41] : memref<15x64x256xf32, #tpu.memory_space<vmem>>, vector<1x64x256xf32>
    %75 = vector.shape_cast %74 : vector<1x64x256xf32> to vector<64x256xf32>
    %cst_42 = arith.constant dense<0.000000e+00> : vector<8x256xf32>
    %76 = tpu.matmul %73, %75, %cst_42 {dimension_numbers = #tpu.dot_dimension_numbers<[1], [0], [0], [1], [0, 0, 1, 1], [], []>} : vector<8x64xf32>, vector<64x256xf32>, vector<8x256xf32> -> vector<8x256xf32>
    %77 = arith.addf %71, %76 : vector<8x256xf32>
    %78 = vector.extract_strided_slice %66 {offsets = [2, 0, 0], sizes = [1, 8, 64], strides = [1, 1, 1]} : vector<15x8x64xf32> to vector<1x8x64xf32>
    %79 = vector.shape_cast %78 : vector<1x8x64xf32> to vector<8x64xf32>
    %c2_43 = arith.constant 2 : index
    %c0_44 = arith.constant 0 : index
    %c0_45 = arith.constant 0 : index
    %80 = vector.load %arg8[%c2_43, %c0_44, %c0_45] : memref<15x64x256xf32, #tpu.memory_space<vmem>>, vector<1x64x256xf32>
    %81 = vector.shape_cast %80 : vector<1x64x256xf32> to vector<64x256xf32>
    %cst_46 = arith.constant dense<0.000000e+00> : vector<8x256xf32>
    %82 = tpu.matmul %79, %81, %cst_46 {dimension_numbers = #tpu.dot_dimension_numbers<[1], [0], [0], [1], [0, 0, 1, 1], [], []>} : vector<8x64xf32>, vector<64x256xf32>, vector<8x256xf32> -> vector<8x256xf32>
    %83 = arith.addf %77, %82 : vector<8x256xf32>
    %84 = vector.extract_strided_slice %66 {offsets = [3, 0, 0], sizes = [1, 8, 64], strides = [1, 1, 1]} : vector<15x8x64xf32> to vector<1x8x64xf32>
    %85 = vector.shape_cast %84 : vector<1x8x64xf32> to vector<8x64xf32>
    %c3 = arith.constant 3 : index
    %c0_47 = arith.constant 0 : index
    %c0_48 = arith.constant 0 : index
    %86 = vector.load %arg8[%c3, %c0_47, %c0_48] : memref<15x64x256xf32, #tpu.memory_space<vmem>>, vector<1x64x256xf32>
    %87 = vector.shape_cast %86 : vector<1x64x256xf32> to vector<64x256xf32>
    %cst_49 = arith.constant dense<0.000000e+00> : vector<8x256xf32>
    %88 = tpu.matmul %85, %87, %cst_49 {dimension_numbers = #tpu.dot_dimension_numbers<[1], [0], [0], [1], [0, 0, 1, 1], [], []>} : vector<8x64xf32>, vector<64x256xf32>, vector<8x256xf32> -> vector<8x256xf32>
    %89 = arith.addf %83, %88 : vector<8x256xf32>
    %90 = vector.extract_strided_slice %66 {offsets = [4, 0, 0], sizes = [1, 8, 64], strides = [1, 1, 1]} : vector<15x8x64xf32> to vector<1x8x64xf32>
    %91 = vector.shape_cast %90 : vector<1x8x64xf32> to vector<8x64xf32>
    %c4 = arith.constant 4 : index
    %c0_50 = arith.constant 0 : index
    %c0_51 = arith.constant 0 : index
    %92 = vector.load %arg8[%c4, %c0_50, %c0_51] : memref<15x64x256xf32, #tpu.memory_space<vmem>>, vector<1x64x256xf32>
    %93 = vector.shape_cast %92 : vector<1x64x256xf32> to vector<64x256xf32>
    %cst_52 = arith.constant dense<0.000000e+00> : vector<8x256xf32>
    %94 = tpu.matmul %91, %93, %cst_52 {dimension_numbers = #tpu.dot_dimension_numbers<[1], [0], [0], [1], [0, 0, 1, 1], [], []>} : vector<8x64xf32>, vector<64x256xf32>, vector<8x256xf32> -> vector<8x256xf32>
    %95 = arith.addf %89, %94 : vector<8x256xf32>
    %96 = vector.extract_strided_slice %66 {offsets = [5, 0, 0], sizes = [1, 8, 64], strides = [1, 1, 1]} : vector<15x8x64xf32> to vector<1x8x64xf32>
    %97 = vector.shape_cast %96 : vector<1x8x64xf32> to vector<8x64xf32>
    %c5 = arith.constant 5 : index
    %c0_53 = arith.constant 0 : index
    %c0_54 = arith.constant 0 : index
    %98 = vector.load %arg8[%c5, %c0_53, %c0_54] : memref<15x64x256xf32, #tpu.memory_space<vmem>>, vector<1x64x256xf32>
    %99 = vector.shape_cast %98 : vector<1x64x256xf32> to vector<64x256xf32>
    %cst_55 = arith.constant dense<0.000000e+00> : vector<8x256xf32>
    %100 = tpu.matmul %97, %99, %cst_55 {dimension_numbers = #tpu.dot_dimension_numbers<[1], [0], [0], [1], [0, 0, 1, 1], [], []>} : vector<8x64xf32>, vector<64x256xf32>, vector<8x256xf32> -> vector<8x256xf32>
    %101 = arith.addf %95, %100 : vector<8x256xf32>
    %102 = vector.extract_strided_slice %66 {offsets = [6, 0, 0], sizes = [1, 8, 64], strides = [1, 1, 1]} : vector<15x8x64xf32> to vector<1x8x64xf32>
    %103 = vector.shape_cast %102 : vector<1x8x64xf32> to vector<8x64xf32>
    %c6 = arith.constant 6 : index
    %c0_56 = arith.constant 0 : index
    %c0_57 = arith.constant 0 : index
    %104 = vector.load %arg8[%c6, %c0_56, %c0_57] : memref<15x64x256xf32, #tpu.memory_space<vmem>>, vector<1x64x256xf32>
    %105 = vector.shape_cast %104 : vector<1x64x256xf32> to vector<64x256xf32>
    %cst_58 = arith.constant dense<0.000000e+00> : vector<8x256xf32>
    %106 = tpu.matmul %103, %105, %cst_58 {dimension_numbers = #tpu.dot_dimension_numbers<[1], [0], [0], [1], [0, 0, 1, 1], [], []>} : vector<8x64xf32>, vector<64x256xf32>, vector<8x256xf32> -> vector<8x256xf32>
    %107 = arith.addf %101, %106 : vector<8x256xf32>
    %108 = vector.extract_strided_slice %66 {offsets = [7, 0, 0], sizes = [1, 8, 64], strides = [1, 1, 1]} : vector<15x8x64xf32> to vector<1x8x64xf32>
    %109 = vector.shape_cast %108 : vector<1x8x64xf32> to vector<8x64xf32>
    %c7 = arith.constant 7 : index
    %c0_59 = arith.constant 0 : index
    %c0_60 = arith.constant 0 : index
    %110 = vector.load %arg8[%c7, %c0_59, %c0_60] : memref<15x64x256xf32, #tpu.memory_space<vmem>>, vector<1x64x256xf32>
    %111 = vector.shape_cast %110 : vector<1x64x256xf32> to vector<64x256xf32>
    %cst_61 = arith.constant dense<0.000000e+00> : vector<8x256xf32>
    %112 = tpu.matmul %109, %111, %cst_61 {dimension_numbers = #tpu.dot_dimension_numbers<[1], [0], [0], [1], [0, 0, 1, 1], [], []>} : vector<8x64xf32>, vector<64x256xf32>, vector<8x256xf32> -> vector<8x256xf32>
    %113 = arith.addf %107, %112 : vector<8x256xf32>
    %114 = vector.extract_strided_slice %66 {offsets = [8, 0, 0], sizes = [1, 8, 64], strides = [1, 1, 1]} : vector<15x8x64xf32> to vector<1x8x64xf32>
    %115 = vector.shape_cast %114 : vector<1x8x64xf32> to vector<8x64xf32>
    %c8 = arith.constant 8 : index
    %c0_62 = arith.constant 0 : index
    %c0_63 = arith.constant 0 : index
    %116 = vector.load %arg8[%c8, %c0_62, %c0_63] : memref<15x64x256xf32, #tpu.memory_space<vmem>>, vector<1x64x256xf32>
    %117 = vector.shape_cast %116 : vector<1x64x256xf32> to vector<64x256xf32>
    %cst_64 = arith.constant dense<0.000000e+00> : vector<8x256xf32>
    %118 = tpu.matmul %115, %117, %cst_64 {dimension_numbers = #tpu.dot_dimension_numbers<[1], [0], [0], [1], [0, 0, 1, 1], [], []>} : vector<8x64xf32>, vector<64x256xf32>, vector<8x256xf32> -> vector<8x256xf32>
    %119 = arith.addf %113, %118 : vector<8x256xf32>
    %120 = vector.extract_strided_slice %66 {offsets = [9, 0, 0], sizes = [1, 8, 64], strides = [1, 1, 1]} : vector<15x8x64xf32> to vector<1x8x64xf32>
    %121 = vector.shape_cast %120 : vector<1x8x64xf32> to vector<8x64xf32>
    %c9 = arith.constant 9 : index
    %c0_65 = arith.constant 0 : index
    %c0_66 = arith.constant 0 : index
    %122 = vector.load %arg8[%c9, %c0_65, %c0_66] : memref<15x64x256xf32, #tpu.memory_space<vmem>>, vector<1x64x256xf32>
    %123 = vector.shape_cast %122 : vector<1x64x256xf32> to vector<64x256xf32>
    %cst_67 = arith.constant dense<0.000000e+00> : vector<8x256xf32>
    %124 = tpu.matmul %121, %123, %cst_67 {dimension_numbers = #tpu.dot_dimension_numbers<[1], [0], [0], [1], [0, 0, 1, 1], [], []>} : vector<8x64xf32>, vector<64x256xf32>, vector<8x256xf32> -> vector<8x256xf32>
    %125 = arith.addf %119, %124 : vector<8x256xf32>
    %126 = vector.extract_strided_slice %66 {offsets = [10, 0, 0], sizes = [1, 8, 64], strides = [1, 1, 1]} : vector<15x8x64xf32> to vector<1x8x64xf32>
    %127 = vector.shape_cast %126 : vector<1x8x64xf32> to vector<8x64xf32>
    %c10 = arith.constant 10 : index
    %c0_68 = arith.constant 0 : index
    %c0_69 = arith.constant 0 : index
    %128 = vector.load %arg8[%c10, %c0_68, %c0_69] : memref<15x64x256xf32, #tpu.memory_space<vmem>>, vector<1x64x256xf32>
    %129 = vector.shape_cast %128 : vector<1x64x256xf32> to vector<64x256xf32>
    %cst_70 = arith.constant dense<0.000000e+00> : vector<8x256xf32>
    %130 = tpu.matmul %127, %129, %cst_70 {dimension_numbers = #tpu.dot_dimension_numbers<[1], [0], [0], [1], [0, 0, 1, 1], [], []>} : vector<8x64xf32>, vector<64x256xf32>, vector<8x256xf32> -> vector<8x256xf32>
    %131 = arith.addf %125, %130 : vector<8x256xf32>
    %132 = vector.extract_strided_slice %66 {offsets = [11, 0, 0], sizes = [1, 8, 64], strides = [1, 1, 1]} : vector<15x8x64xf32> to vector<1x8x64xf32>
    %133 = vector.shape_cast %132 : vector<1x8x64xf32> to vector<8x64xf32>
    %c11 = arith.constant 11 : index
    %c0_71 = arith.constant 0 : index
    %c0_72 = arith.constant 0 : index
    %134 = vector.load %arg8[%c11, %c0_71, %c0_72] : memref<15x64x256xf32, #tpu.memory_space<vmem>>, vector<1x64x256xf32>
    %135 = vector.shape_cast %134 : vector<1x64x256xf32> to vector<64x256xf32>
    %cst_73 = arith.constant dense<0.000000e+00> : vector<8x256xf32>
    %136 = tpu.matmul %133, %135, %cst_73 {dimension_numbers = #tpu.dot_dimension_numbers<[1], [0], [0], [1], [0, 0, 1, 1], [], []>} : vector<8x64xf32>, vector<64x256xf32>, vector<8x256xf32> -> vector<8x256xf32>
    %137 = arith.addf %131, %136 : vector<8x256xf32>
    %138 = vector.extract_strided_slice %66 {offsets = [12, 0, 0], sizes = [1, 8, 64], strides = [1, 1, 1]} : vector<15x8x64xf32> to vector<1x8x64xf32>
    %139 = vector.shape_cast %138 : vector<1x8x64xf32> to vector<8x64xf32>
    %c12 = arith.constant 12 : index
    %c0_74 = arith.constant 0 : index
    %c0_75 = arith.constant 0 : index
    %140 = vector.load %arg8[%c12, %c0_74, %c0_75] : memref<15x64x256xf32, #tpu.memory_space<vmem>>, vector<1x64x256xf32>
    %141 = vector.shape_cast %140 : vector<1x64x256xf32> to vector<64x256xf32>
    %cst_76 = arith.constant dense<0.000000e+00> : vector<8x256xf32>
    %142 = tpu.matmul %139, %141, %cst_76 {dimension_numbers = #tpu.dot_dimension_numbers<[1], [0], [0], [1], [0, 0, 1, 1], [], []>} : vector<8x64xf32>, vector<64x256xf32>, vector<8x256xf32> -> vector<8x256xf32>
    %143 = arith.addf %137, %142 : vector<8x256xf32>
    %144 = vector.extract_strided_slice %66 {offsets = [13, 0, 0], sizes = [1, 8, 64], strides = [1, 1, 1]} : vector<15x8x64xf32> to vector<1x8x64xf32>
    %145 = vector.shape_cast %144 : vector<1x8x64xf32> to vector<8x64xf32>
    %c13 = arith.constant 13 : index
    %c0_77 = arith.constant 0 : index
    %c0_78 = arith.constant 0 : index
    %146 = vector.load %arg8[%c13, %c0_77, %c0_78] : memref<15x64x256xf32, #tpu.memory_space<vmem>>, vector<1x64x256xf32>
    %147 = vector.shape_cast %146 : vector<1x64x256xf32> to vector<64x256xf32>
    %cst_79 = arith.constant dense<0.000000e+00> : vector<8x256xf32>
    %148 = tpu.matmul %145, %147, %cst_79 {dimension_numbers = #tpu.dot_dimension_numbers<[1], [0], [0], [1], [0, 0, 1, 1], [], []>} : vector<8x64xf32>, vector<64x256xf32>, vector<8x256xf32> -> vector<8x256xf32>
    %149 = arith.addf %143, %148 : vector<8x256xf32>
    %150 = vector.extract_strided_slice %66 {offsets = [14, 0, 0], sizes = [1, 8, 64], strides = [1, 1, 1]} : vector<15x8x64xf32> to vector<1x8x64xf32>
    %151 = vector.shape_cast %150 : vector<1x8x64xf32> to vector<8x64xf32>
    %c14 = arith.constant 14 : index
    %c0_80 = arith.constant 0 : index
    %c0_81 = arith.constant 0 : index
    %152 = vector.load %arg8[%c14, %c0_80, %c0_81] : memref<15x64x256xf32, #tpu.memory_space<vmem>>, vector<1x64x256xf32>
    %153 = vector.shape_cast %152 : vector<1x64x256xf32> to vector<64x256xf32>
    %cst_82 = arith.constant dense<0.000000e+00> : vector<8x256xf32>
    %154 = tpu.matmul %151, %153, %cst_82 {dimension_numbers = #tpu.dot_dimension_numbers<[1], [0], [0], [1], [0, 0, 1, 1], [], []>} : vector<8x64xf32>, vector<64x256xf32>, vector<8x256xf32> -> vector<8x256xf32>
    %155 = arith.addf %149, %154 : vector<8x256xf32>
    %c0_83 = arith.constant 0 : index
    %c0_84 = arith.constant 0 : index
    %156 = vector.load %arg9[%c0_83, %c0_84] : memref<1x256xf32, #tpu.memory_space<vmem>>, vector<1x256xf32>
    %157 = vector.broadcast %156 : vector<1x256xf32> to vector<8x256xf32>
    %158 = arith.mulf %155, %157 : vector<8x256xf32>
    %c0_85 = arith.constant 0 : index
    %c0_86 = arith.constant 0 : index
    %159 = vector.load %arg10[%c0_85, %c0_86] : memref<1x256xf32, #tpu.memory_space<vmem>>, vector<1x256xf32>
    %160 = vector.broadcast %159 : vector<1x256xf32> to vector<8x256xf32>
    %161 = arith.addf %158, %160 : vector<8x256xf32>
    %cst_87 = arith.constant 0.000000e+00 : f32
    %162 = vector.broadcast %cst_87 : f32 to vector<8x256xf32>
    %163 = arith.maximumf %161, %162 : vector<8x256xf32>
    %c0_88 = arith.constant 0 : index
    %c0_89 = arith.constant 0 : index
    %164 = vector.load %arg11[%c0_88, %c0_89] : memref<256x128xf32, #tpu.memory_space<vmem>>, vector<256x128xf32>
    %cst_90 = arith.constant dense<0.000000e+00> : vector<8x128xf32>
    %165 = tpu.matmul %163, %164, %cst_90 {dimension_numbers = #tpu.dot_dimension_numbers<[1], [0], [0], [1], [0, 0, 1, 1], [], []>} : vector<8x256xf32>, vector<256x128xf32>, vector<8x128xf32> -> vector<8x128xf32>
    %c0_91 = arith.constant 0 : index
    %c0_92 = arith.constant 0 : index
    %166 = vector.load %arg12[%c0_91, %c0_92] : memref<1x128xf32, #tpu.memory_space<vmem>>, vector<1x128xf32>
    %167 = vector.broadcast %166 : vector<1x128xf32> to vector<8x128xf32>
    %168 = arith.mulf %165, %167 : vector<8x128xf32>
    %c0_93 = arith.constant 0 : index
    %c0_94 = arith.constant 0 : index
    %169 = vector.load %arg13[%c0_93, %c0_94] : memref<1x128xf32, #tpu.memory_space<vmem>>, vector<1x128xf32>
    %170 = vector.broadcast %169 : vector<1x128xf32> to vector<8x128xf32>
    %171 = arith.addf %168, %170 : vector<8x128xf32>
    %cst_95 = arith.constant 0.000000e+00 : f32
    %172 = vector.broadcast %cst_95 : f32 to vector<8x128xf32>
    %173 = arith.maximumf %171, %172 : vector<8x128xf32>
    %c0_96 = arith.constant 0 : index
    %c0_97 = arith.constant 0 : index
    %174 = vector.load %arg14[%c0_96, %c0_97] : memref<128x1xf32, #tpu.memory_space<vmem>>, vector<128x1xf32>
    %cst_98 = arith.constant dense<0.000000e+00> : vector<8x1xf32>
    %175 = tpu.matmul %173, %174, %cst_98 {dimension_numbers = #tpu.dot_dimension_numbers<[1], [0], [0], [1], [0, 0, 1, 1], [], []>} : vector<8x128xf32>, vector<128x1xf32>, vector<8x1xf32> -> vector<8x1xf32>
    %c0_99 = arith.constant 0 : index
    %c0_100 = arith.constant 0 : index
    %176 = vector.load %arg15[%c0_99, %c0_100] : memref<1x1xf32, #tpu.memory_space<vmem>>, vector<1x1xf32>
    %177 = vector.broadcast %176 : vector<1x1xf32> to vector<8x1xf32>
    %178 = arith.addf %175, %177 : vector<8x1xf32>
    %179 = arith.negf %178 : vector<8x1xf32>
    %180 = math.exp %179 : vector<8x1xf32>
    %cst_101 = arith.constant 1.000000e+00 : f32
    %181 = vector.broadcast %cst_101 : f32 to vector<8x1xf32>
    %182 = arith.addf %181, %180 : vector<8x1xf32>
    %183 = arith.divf %181, %182 : vector<8x1xf32>
    %c0_102 = arith.constant 0 : index
    %c0_103 = arith.constant 0 : index
    %184 = vector.load %arg16[%c0_102, %c0_103] : memref<8x1xf32, #tpu.memory_space<vmem>>, vector<8x1xf32>
    tpu.vector_store %arg16[%c0_102, %c0_103], %183 {strides = array<i32>} : memref<8x1xf32, #tpu.memory_space<vmem>>, vector<8x1xf32>,
    return
  }
  func.func @transform_0(%arg0: i32) -> (i32, i32, i32) {
    %c0_i32 = arith.constant 0 : i32
    %c0_i32_0 = arith.constant 0 : i32
    %c0_i32_1 = arith.constant 0 : i32
    return %c0_i32, %arg0, %c0_i32_0 : i32, i32, i32
  }
  func.func @transform_1(%arg0: i32) -> (i32, i32, i32) {
    %c0_i32 = arith.constant 0 : i32
    %c0_i32_0 = arith.constant 0 : i32
    %c0_i32_1 = arith.constant 0 : i32
    %c0_i32_2 = arith.constant 0 : i32
    return %c0_i32, %c0_i32_0, %c0_i32_1 : i32, i32, i32
  }
  func.func @transform_2(%arg0: i32) -> (i32, i32) {
    %c0_i32 = arith.constant 0 : i32
    %c0_i32_0 = arith.constant 0 : i32
    %c0_i32_1 = arith.constant 0 : i32
    return %c0_i32, %c0_i32_0 : i32, i32
  }
  func.func @transform_3(%arg0: i32) -> (i32, i32) {
    %c0_i32 = arith.constant 0 : i32
    %c0_i32_0 = arith.constant 0 : i32
    %c0_i32_1 = arith.constant 0 : i32
    return %c0_i32, %c0_i32_0 : i32, i32
  }
  func.func @transform_4(%arg0: i32) -> (i32, i32, i32) {
    %c0_i32 = arith.constant 0 : i32
    %c0_i32_0 = arith.constant 0 : i32
    %c0_i32_1 = arith.constant 0 : i32
    %c0_i32_2 = arith.constant 0 : i32
    return %c0_i32, %c0_i32_0, %c0_i32_1 : i32, i32, i32
  }
  func.func @transform_5(%arg0: i32) -> (i32, i32) {
    %c0_i32 = arith.constant 0 : i32
    %c0_i32_0 = arith.constant 0 : i32
    %c0_i32_1 = arith.constant 0 : i32
    return %c0_i32, %c0_i32_0 : i32, i32
  }
  func.func @transform_6(%arg0: i32) -> (i32, i32) {
    %c0_i32 = arith.constant 0 : i32
    %c0_i32_0 = arith.constant 0 : i32
    %c0_i32_1 = arith.constant 0 : i32
    return %c0_i32, %c0_i32_0 : i32, i32
  }
  func.func @transform_7(%arg0: i32) -> (i32, i32, i32) {
    %c0_i32 = arith.constant 0 : i32
    %c0_i32_0 = arith.constant 0 : i32
    %c0_i32_1 = arith.constant 0 : i32
    %c0_i32_2 = arith.constant 0 : i32
    return %c0_i32, %c0_i32_0, %c0_i32_1 : i32, i32, i32
  }
  func.func @transform_8(%arg0: i32) -> (i32, i32) {
    %c0_i32 = arith.constant 0 : i32
    %c0_i32_0 = arith.constant 0 : i32
    %c0_i32_1 = arith.constant 0 : i32
    return %c0_i32, %c0_i32_0 : i32, i32
  }
  func.func @transform_9(%arg0: i32) -> (i32, i32) {
    %c0_i32 = arith.constant 0 : i32
    %c0_i32_0 = arith.constant 0 : i32
    %c0_i32_1 = arith.constant 0 : i32
    return %c0_i32, %c0_i32_0 : i32, i32
  }
  func.func @transform_10(%arg0: i32) -> (i32, i32) {
    %c0_i32 = arith.constant 0 : i32
    %c0_i32_0 = arith.constant 0 : i32
    %c0_i32_1 = arith.constant 0 : i32
    return %c0_i32, %c0_i32_0 : i32, i32
  }
  func.func @transform_11(%arg0: i32) -> (i32, i32) {
    %c0_i32 = arith.constant 0 : i32
    %c0_i32_0 = arith.constant 0 : i32
    %c0_i32_1 = arith.constant 0 : i32
    return %c0_i32, %c0_i32_0 : i32, i32
  }
  func.func @transform_12(%arg0: i32) -> (i32, i32) {
    %c0_i32 = arith.constant 0 : i32
    %c0_i32_0 = arith.constant 0 : i32
    %c0_i32_1 = arith.constant 0 : i32
    return %c0_i32, %c0_i32_0 : i32, i32
  }
  func.func @transform_13(%arg0: i32) -> (i32, i32) {
    %c0_i32 = arith.constant 0 : i32
    %c0_i32_0 = arith.constant 0 : i32
    %c0_i32_1 = arith.constant 0 : i32
    return %c0_i32, %c0_i32_0 : i32, i32
  }
  func.func @transform_14(%arg0: i32) -> (i32, i32) {
    %c0_i32 = arith.constant 0 : i32
    %c0_i32_0 = arith.constant 0 : i32
    %c0_i32_1 = arith.constant 0 : i32
    return %c0_i32, %c0_i32_0 : i32, i32
  }
  func.func @transform_15(%arg0: i32) -> (i32, i32) {
    %c0_i32 = arith.constant 0 : i32
    %c0_i32_0 = arith.constant 0 : i32
    return %arg0, %c0_i32 : i32, i32
  }
}

</mosaic_0001>

<llo_original>
// kernel: forward.1
$region0: #{forward.1}
  #allocation0 [shape = 'u32[]', space=smem, size = 0x4, offset = 0x4, fixed_abs, tag = 'smem constant byte address 0x4 - core index']
  #allocation1 [shape = 'u32[144,128]{1,0:T(1,128)}', space=vmem, size = 0x12000, scoped, tag = 'internal scratch']
  #allocation2 [shape = 'f32[1,1]{1,0:T(1,128)S(1)}', space=vmem, size = 0x200, scoped, tag = 'scoped memory for forward.1']
  %s0 = inlined_call_operand.vmem [shape: f32[60,8,23], index: 0, kind: input, shape index: {}]
  %s1 = inlined_call_operand.vmem [shape: f32[3,23,32], index: 1, kind: input, shape index: {}]
  %s2 = inlined_call_operand.vmem [shape: f32[1,32], index: 2, kind: input, shape index: {}]
  %s3 = inlined_call_operand.vmem [shape: f32[1,32], index: 3, kind: input, shape index: {}]
  %s4 = inlined_call_operand.vmem [shape: f32[3,32,64], index: 4, kind: input, shape index: {}]
  %s5 = inlined_call_operand.vmem [shape: f32[1,64], index: 5, kind: input, shape index: {}]
  %s6 = inlined_call_operand.vmem [shape: f32[1,64], index: 6, kind: input, shape index: {}]
  %s7 = inlined_call_operand.hbm [shape: f32[15,64,256], index: 7, kind: input, shape index: {}]
  %s8 = inlined_call_operand.vmem [shape: f32[1,256], index: 8, kind: input, shape index: {}]
  %s9 = inlined_call_operand.vmem [shape: f32[1,256], index: 9, kind: input, shape index: {}]
  %s10 = inlined_call_operand.vmem [shape: f32[256,128], index: 10, kind: input, shape index: {}]
  %s11 = inlined_call_operand.vmem [shape: f32[1,128], index: 11, kind: input, shape index: {}]
  %s12 = inlined_call_operand.vmem [shape: f32[1,128], index: 12, kind: input, shape index: {}]
  %s13 = inlined_call_operand.vmem [shape: f32[128,1], index: 13, kind: input, shape index: {}]
  %s14 = inlined_call_operand.<no memory space> [shape: f32[1,1], index: 14, kind: input, shape index: {}]
  %s15 = inlined_call_operand.vmem [shape: f32[8,1], index: 15, kind: output, shape index: {}]
  %s16 = sld [smem:[#allocation0]]
  $region74: #{forward.1} parent=0
    _
  %s18 = ssub.s32 1, %s16
  %s19 = scalar_select 0, %s18, %s16
  %v20 = vstv %s14
  %21 = vst [vmem:[#allocation2] sm:$0x1] %v20
  $region1: #{forward.1} parent=0
    #allocation3 [shape = 'u8[983040]{0}', space=vmem, size = 0xf0000, scoped, tag = 'input window, operand 7, single buffered']
    #allocation4 [shape = 's32[1]{0}', space=sflag, size = 0x4, scoped, tag = 'scoped memory for forward.1']
    %22 = vsyncpa [#allocation4], 0
    // Predicated region
    $region2: #{forward.1} parent=1 // pred_check
      _
    $region3: #{forward.1} parent=1 // pred_check_branch
      %24 = sbr.rel (0) target = $region5
    $region4: #{forward.1} parent=1 // pred_region
      _
    $region5: #{forward.1} parent=1 // pred_fallthru
      _
    // Predicated region
    $region6: #{forward.1} parent=1 // pred_check
      _
    $region7: #{forward.1} parent=1 // pred_check_branch
      %26 = sbr.rel (0) target = $region9
    $region8: #{forward.1} parent=1 // pred_region
      _
    $region9: #{forward.1} parent=1 // pred_fallthru
      _
    // Predicated region
    $region10: #{forward.1} parent=1 // pred_check
      _
    $region11: #{forward.1} parent=1 // pred_check_branch
      %28 = sbr.rel (0) target = $region13
    $region12: #{forward.1} parent=1 // pred_region
      _
    $region13: #{forward.1} parent=1 // pred_fallthru
      _
    // Predicated region
    $region14: #{forward.1} parent=1 // pred_check
      _
    $region15: #{forward.1} parent=1 // pred_check_branch
      %30 = sbr.rel (0) target = $region17
    $region16: #{forward.1} parent=1 // pred_region
      _
    $region17: #{forward.1} parent=1 // pred_fallthru
      _
    // Predicated region
    $region18: #{forward.1} parent=1 // pred_check
      _
    $region19: #{forward.1} parent=1 // pred_check_branch
      %32 = sbr.rel (0) target = $region21
    $region20: #{forward.1} parent=1 // pred_region
      _
    $region21: #{forward.1} parent=1 // pred_fallthru
      _
    // Predicated region
    $region22: #{forward.1} parent=1 // pred_check
      _
    $region23: #{forward.1} parent=1 // pred_check_branch
      %34 = sbr.rel (0) target = $region25
    $region24: #{forward.1} parent=1 // pred_region
      _
    $region25: #{forward.1} parent=1 // pred_fallthru
      _
    // Predicated region
    $region26: #{forward.1} parent=1 // pred_check
      _
    $region27: #{forward.1} parent=1 // pred_check_branch
      %36 = sbr.rel (0) target = $region29
    $region28: #{forward.1} parent=1 // pred_region
      _
    $region29: #{forward.1} parent=1 // pred_fallthru
      _
    // Predicated region
    $region30: #{forward.1} parent=1 // pred_check
      _
    $region31: #{forward.1} parent=1 // pred_check_branch
      %38 = sbr.rel (0) target = $region33
    $region32: #{forward.1} parent=1 // pred_region
      %s40 = ssub.s32 30720, 30720
      %41 = vsyncadd [#allocation4], %s40
      %s42 = sshll.u32 [#allocation3], 4
      %s43 = int_to_ptr.vmem [resolvable:$true] %s42
      %48 = dma.hbm_to_vmem [thread:$0]  %s7, 30720, %s43, [#allocation4], 256, 256, 16
    $region33: #{forward.1} parent=1 // pred_fallthru
      _
    // Predicated region
    $region34: #{forward.1} parent=1 // pred_check
      _
    $region35: #{forward.1} parent=1 // pred_check_branch
      %50 = sbr.rel (0) target = $region37
    $region36: #{forward.1} parent=1 // pred_region
      _
    $region37: #{forward.1} parent=1 // pred_fallthru
      _
    // Predicated region
    $region38: #{forward.1} parent=1 // pred_check
      _
    $region39: #{forward.1} parent=1 // pred_check_branch
      %52 = sbr.rel (0) target = $region41
    $region40: #{forward.1} parent=1 // pred_region
      _
    $region41: #{forward.1} parent=1 // pred_fallthru
      _
    // Predicated region
    $region42: #{forward.1} parent=1 // pred_check
      _
    $region43: #{forward.1} parent=1 // pred_check_branch
      %54 = sbr.rel (0) target = $region45
    $region44: #{forward.1} parent=1 // pred_region
      _
    $region45: #{forward.1} parent=1 // pred_fallthru
      _
    // Predicated region
    $region46: #{forward.1} parent=1 // pred_check
      _
    $region47: #{forward.1} parent=1 // pred_check_branch
      %56 = sbr.rel (0) target = $region49
    $region48: #{forward.1} parent=1 // pred_region
      _
    $region49: #{forward.1} parent=1 // pred_fallthru
      _
    // Predicated region
    $region50: #{forward.1} parent=1 // pred_check
      _
    $region51: #{forward.1} parent=1 // pred_check_branch
      %58 = sbr.rel (0) target = $region53
    $region52: #{forward.1} parent=1 // pred_region
      _
    $region53: #{forward.1} parent=1 // pred_fallthru
      _
    // Predicated region
    $region54: #{forward.1} parent=1 // pred_check
      _
    $region55: #{forward.1} parent=1 // pred_check_branch
      %60 = sbr.rel (0) target = $region57
    $region56: #{forward.1} parent=1 // pred_region
      _
    $region57: #{forward.1} parent=1 // pred_fallthru
      _
    // Predicated region
    $region58: #{forward.1} parent=1 // pred_check
      _
    $region59: #{forward.1} parent=1 // pred_check_branch
      %62 = sbr.rel (0) target = $region61
    $region60: #{forward.1} parent=1 // pred_region
      _
    $region61: #{forward.1} parent=1 // pred_fallthru
      _
    // Predicated region
    $region62: #{forward.1} parent=1 // pred_check
      _
    $region63: #{forward.1} parent=1 // pred_check_branch
      %64 = sbr.rel (0) target = $region65
    $region64: #{forward.1} parent=1 // pred_region
      %65 = dma.done [#allocation4], 30720
    $region65: #{forward.1} parent=1 // pred_fallthru
      _
    %v66 = vld [vmem:[%s0] sm:$0xff]
    %v67 = vld [vmem:[%s0 + $0x8] sm:$0xff]
    %v68 = vld [vmem:[%s0 + $0x10] sm:$0xff]
    %v69 = vld [vmem:[%s0 + $0x18] sm:$0xff]
    %v70 = vld [vmem:[%s0 + $0x20] sm:$0xff]
    %v71 = vld [vmem:[%s0 + $0x28] sm:$0xff]
    %v72 = vld [vmem:[%s0 + $0x30] sm:$0xff]
    %v73 = vld [vmem:[%s0 + $0x38] sm:$0xff]
    %v74 = vld [vmem:[%s0 + $0x40] sm:$0xff]
    %v75 = vld [vmem:[%s0 + $0x48] sm:$0xff]
    %v76 = vld [vmem:[%s0 + $0x50] sm:$0xff]
    %v77 = vld [vmem:[%s0 + $0x58] sm:$0xff]
    %v78 = vld [vmem:[%s0 + $0x60] sm:$0xff]
    %v79 = vld [vmem:[%s0 + $0x68] sm:$0xff]
    %v80 = vld [vmem:[%s0 + $0x70] sm:$0xff]
    %v81 = vld [vmem:[%s0 + $0x78] sm:$0xff]
    %v82 = vld [vmem:[%s0 + $0x80] sm:$0xff]
    %v83 = vld [vmem:[%s0 + $0x88] sm:$0xff]
    %v84 = vld [vmem:[%s0 + $0x90] sm:$0xff]
    %v85 = vld [vmem:[%s0 + $0x98] sm:$0xff]
    %v86 = vld [vmem:[%s0 + $0xa0] sm:$0xff]
    %v87 = vld [vmem:[%s0 + $0xa8] sm:$0xff]
    %v88 = vld [vmem:[%s0 + $0xb0] sm:$0xff]
    %v89 = vld [vmem:[%s0 + $0xb8] sm:$0xff]
    %v90 = vld [vmem:[%s0 + $0xc0] sm:$0xff]
    %v91 = vld [vmem:[%s0 + $0xc8] sm:$0xff]
    %v92 = vld [vmem:[%s0 + $0xd0] sm:$0xff]
    %v93 = vld [vmem:[%s0 + $0xd8] sm:$0xff]
    %v94 = vld [vmem:[%s0 + $0xe0] sm:$0xff]
    %v95 = vld [vmem:[%s0 + $0xe8] sm:$0xff]
    %v96 = vld [vmem:[%s0 + $0xf0] sm:$0xff]
    %v97 = vld [vmem:[%s0 + $0xf8] sm:$0xff]
    %v98 = vld [vmem:[%s0 + $0x100] sm:$0xff]
    %v99 = vld [vmem:[%s0 + $0x108] sm:$0xff]
    %v100 = vld [vmem:[%s0 + $0x110] sm:$0xff]
    %v101 = vld [vmem:[%s0 + $0x118] sm:$0xff]
    %v102 = vld [vmem:[%s0 + $0x120] sm:$0xff]
    %v103 = vld [vmem:[%s0 + $0x128] sm:$0xff]
    %v104 = vld [vmem:[%s0 + $0x130] sm:$0xff]
    %v105 = vld [vmem:[%s0 + $0x138] sm:$0xff]
    %v106 = vld [vmem:[%s0 + $0x140] sm:$0xff]
    %v107 = vld [vmem:[%s0 + $0x148] sm:$0xff]
    %v108 = vld [vmem:[%s0 + $0x150] sm:$0xff]
    %v109 = vld [vmem:[%s0 + $0x158] sm:$0xff]
    %v110 = vld [vmem:[%s0 + $0x160] sm:$0xff]
    %v111 = vld [vmem:[%s0 + $0x168] sm:$0xff]
    %v112 = vld [vmem:[%s0 + $0x170] sm:$0xff]
    %v113 = vld [vmem:[%s0 + $0x178] sm:$0xff]
    %v114 = vld [vmem:[%s0 + $0x180] sm:$0xff]
    %v115 = vld [vmem:[%s0 + $0x188] sm:$0xff]
    %v116 = vld [vmem:[%s0 + $0x190] sm:$0xff]
    %v117 = vld [vmem:[%s0 + $0x198] sm:$0xff]
    %v118 = vld [vmem:[%s0 + $0x1a0] sm:$0xff]
    %v119 = vld [vmem:[%s0 + $0x1a8] sm:$0xff]
    %v120 = vld [vmem:[%s0 + $0x1b0] sm:$0xff]
    %v121 = vld [vmem:[%s0 + $0x1b8] sm:$0xff]
    %v122 = vld [vmem:[%s0 + $0x1c0] sm:$0xff]
    %v123 = vld [vmem:[%s0 + $0x1c8] sm:$0xff]
    %v124 = vld [vmem:[%s0 + $0x1d0] sm:$0xff]
    %v125 = vld [vmem:[%s0 + $0x1d8] sm:$0xff]
    %v126 = vld [vmem:[%s1] sm:$0xff]
    %v127 = vld [vmem:[%s1 + $0x8] sm:$0xff]
    %v128 = vld [vmem:[%s1 + $0x10] sm:$0x7f]
    %s129 = scalar_lea.vmem %s1, 24
    %v130 = vld [vmem:[%s129] sm:$0xff]
    %v131 = vld [vmem:[%s129 + $0x8] sm:$0xff]
    %v132 = vld [vmem:[%s129 + $0x10] sm:$0x7f]
    %vm133 = vcmask 187392
    %v135 = vsel %vm133, %v66, 0
    %v138 = vsel %vm133, %v67, 0
    %v141 = vsel %vm133, %v68, 0
    %v144 = vsel %vm133, %v69, 0
    %v147 = vsel %vm133, %v70, 0
    %v150 = vsel %vm133, %v71, 0
    %v153 = vsel %vm133, %v72, 0
    %v156 = vsel %vm133, %v73, 0
    %v159 = vsel %vm133, %v74, 0
    %v162 = vsel %vm133, %v75, 0
    %v165 = vsel %vm133, %v76, 0
    %v168 = vsel %vm133, %v77, 0
    %v171 = vsel %vm133, %v78, 0
    %v174 = vsel %vm133, %v79, 0
    %v177 = vsel %vm133, %v80, 0
    %v180 = vsel %vm133, %v81, 0
    %v183 = vsel %vm133, %v82, 0
    %v186 = vsel %vm133, %v83, 0
    %v189 = vsel %vm133, %v84, 0
    %v192 = vsel %vm133, %v85, 0
    %v195 = vsel %vm133, %v86, 0
    %v198 = vsel %vm133, %v87, 0
    %v201 = vsel %vm133, %v88, 0
    %v204 = vsel %vm133, %v89, 0
    %v207 = vsel %vm133, %v90, 0
    %v210 = vsel %vm133, %v91, 0
    %v213 = vsel %vm133, %v92, 0
    %v216 = vsel %vm133, %v93, 0
    %v219 = vsel %vm133, %v94, 0
    %v222 = vsel %vm133, %v95, 0
    %v225 = vsel %vm133, %v96, 0
    %v228 = vsel %vm133, %v97, 0
    %v231 = vsel %vm133, %v98, 0
    %v234 = vsel %vm133, %v99, 0
    %v237 = vsel %vm133, %v100, 0
    %v240 = vsel %vm133, %v101, 0
    %v243 = vsel %vm133, %v102, 0
    %v246 = vsel %vm133, %v103, 0
    %v249 = vsel %vm133, %v104, 0
    %v252 = vsel %vm133, %v105, 0
    %v255 = vsel %vm133, %v106, 0
    %v258 = vsel %vm133, %v107, 0
    %v261 = vsel %vm133, %v108, 0
    %v264 = vsel %vm133, %v109, 0
    %v267 = vsel %vm133, %v110, 0
    %v270 = vsel %vm133, %v111, 0
    %v273 = vsel %vm133, %v112, 0
    %v276 = vsel %vm133, %v113, 0
    %v279 = vsel %vm133, %v114, 0
    %v282 = vsel %vm133, %v115, 0
    %v285 = vsel %vm133, %v116, 0
    %v288 = vsel %vm133, %v117, 0
    %v291 = vsel %vm133, %v118, 0
    %v294 = vsel %vm133, %v119, 0
    %v297 = vsel %vm133, %v120, 0
    %v300 = vsel %vm133, %v121, 0
    %v303 = vsel %vm133, %v122, 0
    %v306 = vsel %vm133, %v123, 0
    %v309 = vsel %vm133, %v124, 0
    %v312 = vsel %vm133, %v125, 0
    %vm314 = vcmask 1046528
    %v316 = vsel %vm314, %v132, 0
    %318 = vmatprep.subr.mxu0 0.0
    %319 = vmatpush1.msra.mxu0 %v130
    %320 = vmatprep.subr.mxu0 0.0
    %321 = vmatpush1.msra.mxu0 %v131
    %322 = vmatprep.subr.mxu0 0.0
    %323 = vmatpush1.msra.mxu0 %v316
    %324 = vmatprep.subr.mxu0 0.0
    %325 = vmatpush1.msra.mxu0 0.0
    %326 = vmatprep.subr.mxu0 0.0
    %327 = vmatpush1.msra.mxu0 0.0
    %328 = vmatprep.subr.mxu0 0.0
    %329 = vmatpush1.msra.mxu0 0.0
    %330 = vmatprep.subr.mxu0 0.0
    %331 = vmatpush1.msra.mxu0 0.0
    %332 = vmatprep.subr.mxu0 0.0
    %333 = vmatpush1.msra.mxu0 0.0
    %334 = vmatprep.subr.mxu0 0.0
    %335 = vmatpush1.msra.mxu0 0.0
    %336 = vmatprep.subr.mxu0 0.0
    %337 = vmatpush1.msra.mxu0 0.0
    %338 = vmatprep.subr.mxu0 0.0
    %339 = vmatpush1.msra.mxu0 0.0
    %340 = vmatprep.subr.mxu0 0.0
    %341 = vmatpush1.msra.mxu0 0.0
    %342 = vmatprep.subr.mxu0 0.0
    %343 = vmatpush1.msra.mxu0 0.0
    %344 = vmatprep.subr.mxu0 0.0
    %345 = vmatpush1.msra.mxu0 0.0
    %346 = vmatprep.subr.mxu0 0.0
    %347 = vmatpush1.msra.mxu0 0.0
    %348 = vmatprep.subr.mxu0 0.0
    %349 = vmatpush1.msra.mxu0 0.0
    %350 = vmatprep.subr.mxu0 0.0
    %351 = vmatpush1.msra.mxu0 0.0
    %352 = vmatprep.subr.mxu0 0.0
    %353 = vmatpush1.msra.mxu0 0.0
    %354 = vmatprep.subr.mxu0 0.0
    %355 = vmatpush1.msra.mxu0 0.0
    %356 = vmatprep.subr.mxu0 0.0
    %357 = vmatpush1.msra.mxu0 0.0
    %358 = vmatprep.subr.mxu0 0.0
    %359 = vmatpush1.msra.mxu0 0.0
    %360 = vmatprep.subr.mxu0 0.0
    %361 = vmatpush1.msra.mxu0 0.0
    %362 = vmatprep.subr.mxu0 0.0
    %363 = vmatpush1.msra.mxu0 0.0
    %364 = vmatprep.subr.mxu0 0.0
    %365 = vmatpush1.msra.mxu0 0.0
    %366 = vmatprep.subr.mxu0 0.0
    %367 = vmatpush1.msra.mxu0 0.0
    %368 = vmatprep.subr.mxu0 0.0
    %369 = vmatpush1.msra.mxu0 0.0
    %370 = vmatprep.subr.mxu0 0.0
    %371 = vmatpush1.msra.mxu0 0.0
    %372 = vmatprep.subr.mxu0 0.0
    %373 = vmatpush1.msra.mxu0 0.0
    %374 = vmatprep.subr.mxu0 0.0
    %375 = vmatpush1.msra.mxu0 0.0
    %376 = vmatprep.subr.mxu0 0.0
    %377 = vmatpush1.msra.mxu0 0.0
    %378 = vmatprep.subr.mxu0 0.0
    %379 = vmatpush1.msra.mxu0 0.0
    %380 = vmatprep.subr.mxu0 0.0
    %381 = vmatpush1.msra.mxu0 0.0
    %382 = vmatprep.mubr.f32.mxu0 0.0
    %383 = vmatmul.mubr.f32.gmra.mrb[0].mxu0 %v135
    %v384 = vpop.f32.mrb[0].mxu0
    %v385 = vadd.f32 0.0, %v384
    %v386 = vpop.f32.mrb[0].mxu0
    %387 = vmatprep.mubr.f32.mxu0 0.0
    %388 = vmatmul.mubr.f32.gmra.mrb[0].mxu0 %v138
    %v389 = vpop.f32.mrb[0].mxu0
    %v390 = vadd.f32 0.0, %v389
    %v391 = vpop.f32.mrb[0].mxu0
    %392 = vmatprep.mubr.f32.mxu0 0.0
    %393 = vmatmul.mubr.f32.gmra.mrb[0].mxu0 %v141
    %v394 = vpop.f32.mrb[0].mxu0
    %v395 = vadd.f32 0.0, %v394
    %v396 = vpop.f32.mrb[0].mxu0
    %397 = vmatprep.mubr.f32.mxu0 0.0
    %398 = vmatmul.mubr.f32.gmra.mrb[0].mxu0 %v144
    %v399 = vpop.f32.mrb[0].mxu0
    %v400 = vadd.f32 0.0, %v399
    %v401 = vpop.f32.mrb[0].mxu0
    %402 = vmatprep.mubr.f32.mxu0 0.0
    %403 = vmatmul.mubr.f32.gmra.mrb[0].mxu0 %v147
    %v404 = vpop.f32.mrb[0].mxu0
    %v405 = vadd.f32 0.0, %v404
    %v406 = vpop.f32.mrb[0].mxu0
    %407 = vmatprep.mubr.f32.mxu0 0.0
    %408 = vmatmul.mubr.f32.gmra.mrb[0].mxu0 %v150
    %v409 = vpop.f32.mrb[0].mxu0
    %v410 = vadd.f32 0.0, %v409
    %v411 = vpop.f32.mrb[0].mxu0
    %412 = vmatprep.mubr.f32.mxu0 0.0
    %413 = vmatmul.mubr.f32.gmra.mrb[0].mxu0 %v153
    %v414 = vpop.f32.mrb[0].mxu0
    %v415 = vadd.f32 0.0, %v414
    %v416 = vpop.f32.mrb[0].mxu0
    %417 = vmatprep.mubr.f32.mxu0 0.0
    %418 = vmatmul.mubr.f32.gmra.mrb[0].mxu0 %v156
    %v419 = vpop.f32.mrb[0].mxu0
    %v420 = vadd.f32 0.0, %v419
    %v421 = vpop.f32.mrb[0].mxu0
    %422 = vmatprep.mubr.f32.mxu0 0.0
    %423 = vmatmul.mubr.f32.gmra.mrb[0].mxu0 %v159
    %v424 = vpop.f32.mrb[0].mxu0
    %v425 = vadd.f32 0.0, %v424
    %v426 = vpop.f32.mrb[0].mxu0
    %427 = vmatprep.mubr.f32.mxu0 0.0
    %428 = vmatmul.mubr.f32.gmra.mrb[0].mxu0 %v162
    %v429 = vpop.f32.mrb[0].mxu0
    %v430 = vadd.f32 0.0, %v429
    %v431 = vpop.f32.mrb[0].mxu0
    %432 = vmatprep.mubr.f32.mxu0 0.0
    %433 = vmatmul.mubr.f32.gmra.mrb[0].mxu0 %v165
    %v434 = vpop.f32.mrb[0].mxu0
    %v435 = vadd.f32 0.0, %v434
    %v436 = vpop.f32.mrb[0].mxu0
    %437 = vmatprep.mubr.f32.mxu0 0.0
    %438 = vmatmul.mubr.f32.gmra.mrb[0].mxu0 %v168
    %v439 = vpop.f32.mrb[0].mxu0
    %v440 = vadd.f32 0.0, %v439
    %v441 = vpop.f32.mrb[0].mxu0
    %442 = vmatprep.mubr.f32.mxu0 0.0
    %443 = vmatmul.mubr.f32.gmra.mrb[0].mxu0 %v171
    %v444 = vpop.f32.mrb[0].mxu0
    %v445 = vadd.f32 0.0, %v444
    %v446 = vpop.f32.mrb[0].mxu0
    %447 = vmatprep.mubr.f32.mxu0 0.0
    %448 = vmatmul.mubr.f32.gmra.mrb[0].mxu0 %v174
    %v449 = vpop.f32.mrb[0].mxu0
    %v450 = vadd.f32 0.0, %v449
    %v451 = vpop.f32.mrb[0].mxu0
    %452 = vmatprep.mubr.f32.mxu0 0.0
    %453 = vmatmul.mubr.f32.gmra.mrb[0].mxu0 %v177
    %v454 = vpop.f32.mrb[0].mxu0
    %v455 = vadd.f32 0.0, %v454
    %v456 = vpop.f32.mrb[0].mxu0
    %457 = vmatprep.mubr.f32.mxu0 0.0
    %458 = vmatmul.mubr.f32.gmra.mrb[0].mxu0 %v180
    %v459 = vpop.f32.mrb[0].mxu0
    %v460 = vadd.f32 0.0, %v459
    %v461 = vpop.f32.mrb[0].mxu0
    %462 = vmatprep.mubr.f32.mxu0 0.0
    %463 = vmatmul.mubr.f32.gmra.mrb[0].mxu0 %v183
    %v464 = vpop.f32.mrb[0].mxu0
    %v465 = vadd.f32 0.0, %v464
    %v466 = vpop.f32.mrb[0].mxu0
    %467 = vmatprep.mubr.f32.mxu0 0.0
    %468 = vmatmul.mubr.f32.gmra.mrb[0].mxu0 %v186
    %v469 = vpop.f32.mrb[0].mxu0
    %v470 = vadd.f32 0.0, %v469
    %v471 = vpop.f32.mrb[0].mxu0
    %472 = vmatprep.mubr.f32.mxu0 0.0
    %473 = vmatmul.mubr.f32.gmra.mrb[0].mxu0 %v189
    %v474 = vpop.f32.mrb[0].mxu0
    %v475 = vadd.f32 0.0, %v474
    %v476 = vpop.f32.mrb[0].mxu0
    %477 = vmatprep.mubr.f32.mxu0 0.0
    %478 = vmatmul.mubr.f32.gmra.mrb[0].mxu0 %v192
    %v479 = vpop.f32.mrb[0].mxu0
    %v480 = vadd.f32 0.0, %v479
    %v481 = vpop.f32.mrb[0].mxu0
    %482 = vmatprep.mubr.f32.mxu0 0.0
    %483 = vmatmul.mubr.f32.gmra.mrb[0].mxu0 %v195
    %v484 = vpop.f32.mrb[0].mxu0
    %v485 = vadd.f32 0.0, %v484
    %v486 = vpop.f32.mrb[0].mxu0
    %487 = vmatprep.mubr.f32.mxu0 0.0
    %488 = vmatmul.mubr.f32.gmra.mrb[0].mxu0 %v198
    %v489 = vpop.f32.mrb[0].mxu0
    %v490 = vadd.f32 0.0, %v489
    %v491 = vpop.f32.mrb[0].mxu0
    %492 = vmatprep.mubr.f32.mxu0 0.0
    %493 = vmatmul.mubr.f32.gmra.mrb[0].mxu0 %v201
    %v494 = vpop.f32.mrb[0].mxu0
    %v495 = vadd.f32 0.0, %v494
    %v496 = vpop.f32.mrb[0].mxu0
    %497 = vmatprep.mubr.f32.mxu0 0.0
    %498 = vmatmul.mubr.f32.gmra.mrb[0].mxu0 %v204
    %v499 = vpop.f32.mrb[0].mxu0
    %v500 = vadd.f32 0.0, %v499
    %v501 = vpop.f32.mrb[0].mxu0
    %502 = vmatprep.mubr.f32.mxu0 0.0
    %503 = vmatmul.mubr.f32.gmra.mrb[0].mxu0 %v207
    %v504 = vpop.f32.mrb[0].mxu0
    %v505 = vadd.f32 0.0, %v504
    %v506 = vpop.f32.mrb[0].mxu0
    %507 = vmatprep.mubr.f32.mxu0 0.0
    %508 = vmatmul.mubr.f32.gmra.mrb[0].mxu0 %v210
    %v509 = vpop.f32.mrb[0].mxu0
    %v510 = vadd.f32 0.0, %v509
    %v511 = vpop.f32.mrb[0].mxu0
    %512 = vmatprep.mubr.f32.mxu0 0.0
    %513 = vmatmul.mubr.f32.gmra.mrb[0].mxu0 %v213
    %v514 = vpop.f32.mrb[0].mxu0
    %v515 = vadd.f32 0.0, %v514
    %v516 = vpop.f32.mrb[0].mxu0
    %517 = vmatprep.mubr.f32.mxu0 0.0
    %518 = vmatmul.mubr.f32.gmra.mrb[0].mxu0 %v216
    %v519 = vpop.f32.mrb[0].mxu0
    %v520 = vadd.f32 0.0, %v519
    %v521 = vpop.f32.mrb[0].mxu0
    %522 = vmatprep.mubr.f32.mxu0 0.0
    %523 = vmatmul.mubr.f32.gmra.mrb[0].mxu0 %v219
    %v524 = vpop.f32.mrb[0].mxu0
    %v525 = vadd.f32 0.0, %v524
    %v526 = vpop.f32.mrb[0].mxu0
    %527 = vmatprep.mubr.f32.mxu0 0.0
    %528 = vmatmul.mubr.f32.gmra.mrb[0].mxu0 %v222
    %v529 = vpop.f32.mrb[0].mxu0
    %v530 = vadd.f32 0.0, %v529
    %v531 = vpop.f32.mrb[0].mxu0
    %532 = vmatprep.mubr.f32.mxu0 0.0
    %533 = vmatmul.mubr.f32.gmra.mrb[0].mxu0 %v225
    %v534 = vpop.f32.mrb[0].mxu0
    %v535 = vadd.f32 0.0, %v534
    %v536 = vpop.f32.mrb[0].mxu0
    %537 = vmatprep.mubr.f32.mxu0 0.0
    %538 = vmatmul.mubr.f32.gmra.mrb[0].mxu0 %v228
    %v539 = vpop.f32.mrb[0].mxu0
    %v540 = vadd.f32 0.0, %v539
    %v541 = vpop.f32.mrb[0].mxu0
    %542 = vmatprep.mubr.f32.mxu0 0.0
    %543 = vmatmul.mubr.f32.gmra.mrb[0].mxu0 %v231
    %v544 = vpop.f32.mrb[0].mxu0
    %v545 = vadd.f32 0.0, %v544
    %v546 = vpop.f32.mrb[0].mxu0
    %547 = vmatprep.mubr.f32.mxu0 0.0
    %548 = vmatmul.mubr.f32.gmra.mrb[0].mxu0 %v234
    %v549 = vpop.f32.mrb[0].mxu0
    %v550 = vadd.f32 0.0, %v549
    %v551 = vpop.f32.mrb[0].mxu0
    %552 = vmatprep.mubr.f32.mxu0 0.0
    %553 = vmatmul.mubr.f32.gmra.mrb[0].mxu0 %v237
    %v554 = vpop.f32.mrb[0].mxu0
    %v555 = vadd.f32 0.0, %v554
    %v556 = vpop.f32.mrb[0].mxu0
    %557 = vmatprep.mubr.f32.mxu0 0.0
    %558 = vmatmul.mubr.f32.gmra.mrb[0].mxu0 %v240
    %v559 = vpop.f32.mrb[0].mxu0
    %v560 = vadd.f32 0.0, %v559
    %v561 = vpop.f32.mrb[0].mxu0
    %562 = vmatprep.mubr.f32.mxu0 0.0
    %563 = vmatmul.mubr.f32.gmra.mrb[0].mxu0 %v243
    %v564 = vpop.f32.mrb[0].mxu0
    %v565 = vadd.f32 0.0, %v564
    %v566 = vpop.f32.mrb[0].mxu0
    %567 = vmatprep.mubr.f32.mxu0 0.0
    %568 = vmatmul.mubr.f32.gmra.mrb[0].mxu0 %v246
    %v569 = vpop.f32.mrb[0].mxu0
    %v570 = vadd.f32 0.0, %v569
    %v571 = vpop.f32.mrb[0].mxu0
    %572 = vmatprep.mubr.f32.mxu0 0.0
    %573 = vmatmul.mubr.f32.gmra.mrb[0].mxu0 %v249
    %v574 = vpop.f32.mrb[0].mxu0
    %v575 = vadd.f32 0.0, %v574
    %v576 = vpop.f32.mrb[0].mxu0
    %577 = vmatprep.mubr.f32.mxu0 0.0
    %578 = vmatmul.mubr.f32.gmra.mrb[0].mxu0 %v252
    %v579 = vpop.f32.mrb[0].mxu0
    %v580 = vadd.f32 0.0, %v579
    %v581 = vpop.f32.mrb[0].mxu0
    %582 = vmatprep.mubr.f32.mxu0 0.0
    %583 = vmatmul.mubr.f32.gmra.mrb[0].mxu0 %v255
    %v584 = vpop.f32.mrb[0].mxu0
    %v585 = vadd.f32 0.0, %v584
    %v586 = vpop.f32.mrb[0].mxu0
    %587 = vmatprep.mubr.f32.mxu0 0.0
    %588 = vmatmul.mubr.f32.gmra.mrb[0].mxu0 %v258
    %v589 = vpop.f32.mrb[0].mxu0
    %v590 = vadd.f32 0.0, %v589
    %v591 = vpop.f32.mrb[0].mxu0
    %592 = vmatprep.mubr.f32.mxu0 0.0
    %593 = vmatmul.mubr.f32.gmra.mrb[0].mxu0 %v261
    %v594 = vpop.f32.mrb[0].mxu0
    %v595 = vadd.f32 0.0, %v594
    %v596 = vpop.f32.mrb[0].mxu0
    %597 = vmatprep.mubr.f32.mxu0 0.0
    %598 = vmatmul.mubr.f32.gmra.mrb[0].mxu0 %v264
    %v599 = vpop.f32.mrb[0].mxu0
    %v600 = vadd.f32 0.0, %v599
    %v601 = vpop.f32.mrb[0].mxu0
    %602 = vmatprep.mubr.f32.mxu0 0.0
    %603 = vmatmul.mubr.f32.gmra.mrb[0].mxu0 %v267
    %v604 = vpop.f32.mrb[0].mxu0
    %v605 = vadd.f32 0.0, %v604
    %v606 = vpop.f32.mrb[0].mxu0
    %607 = vmatprep.mubr.f32.mxu0 0.0
    %608 = vmatmul.mubr.f32.gmra.mrb[0].mxu0 %v270
    %v609 = vpop.f32.mrb[0].mxu0
    %v610 = vadd.f32 0.0, %v609
    %v611 = vpop.f32.mrb[0].mxu0
    %612 = vmatprep.mubr.f32.mxu0 0.0
    %613 = vmatmul.mubr.f32.gmra.mrb[0].mxu0 %v273
    %v614 = vpop.f32.mrb[0].mxu0
    %v615 = vadd.f32 0.0, %v614
    %v616 = vpop.f32.mrb[0].mxu0
    %617 = vmatprep.mubr.f32.mxu0 0.0
    %618 = vmatmul.mubr.f32.gmra.mrb[0].mxu0 %v276
    %v619 = vpop.f32.mrb[0].mxu0
    %v620 = vadd.f32 0.0, %v619
    %v621 = vpop.f32.mrb[0].mxu0
    %622 = vmatprep.mubr.f32.mxu0 0.0
    %623 = vmatmul.mubr.f32.gmra.mrb[0].mxu0 %v279
    %v624 = vpop.f32.mrb[0].mxu0
    %v625 = vadd.f32 0.0, %v624
    %v626 = vpop.f32.mrb[0].mxu0
    %627 = vmatprep.mubr.f32.mxu0 0.0
    %628 = vmatmul.mubr.f32.gmra.mrb[0].mxu0 %v282
    %v629 = vpop.f32.mrb[0].mxu0
    %v630 = vadd.f32 0.0, %v629
    %v631 = vpop.f32.mrb[0].mxu0
    %632 = vmatprep.mubr.f32.mxu0 0.0
    %633 = vmatmul.mubr.f32.gmra.mrb[0].mxu0 %v285
    %v634 = vpop.f32.mrb[0].mxu0
    %v635 = vadd.f32 0.0, %v634
    %v636 = vpop.f32.mrb[0].mxu0
    %637 = vmatprep.mubr.f32.mxu0 0.0
    %638 = vmatmul.mubr.f32.gmra.mrb[0].mxu0 %v288
    %v639 = vpop.f32.mrb[0].mxu0
    %v640 = vadd.f32 0.0, %v639
    %v641 = vpop.f32.mrb[0].mxu0
    %642 = vmatprep.mubr.f32.mxu0 0.0
    %643 = vmatmul.mubr.f32.gmra.mrb[0].mxu0 %v291
    %v644 = vpop.f32.mrb[0].mxu0
    %v645 = vadd.f32 0.0, %v644
    %v646 = vpop.f32.mrb[0].mxu0
    %647 = vmatprep.mubr.f32.mxu0 0.0
    %648 = vmatmul.mubr.f32.gmra.mrb[0].mxu0 %v294
    %v649 = vpop.f32.mrb[0].mxu0
    %v650 = vadd.f32 0.0, %v649
    %v651 = vpop.f32.mrb[0].mxu0
    %652 = vmatprep.mubr.f32.mxu0 0.0
    %653 = vmatmul.mubr.f32.gmra.mrb[0].mxu0 %v297
    %v654 = vpop.f32.mrb[0].mxu0
    %v655 = vadd.f32 0.0, %v654
    %v656 = vpop.f32.mrb[0].mxu0
    %657 = vmatprep.mubr.f32.mxu0 0.0
    %658 = vmatmul.mubr.f32.gmra.mrb[0].mxu0 %v300
    %v659 = vpop.f32.mrb[0].mxu0
    %v660 = vadd.f32 0.0, %v659
    %v661 = vpop.f32.mrb[0].mxu0
    %662 = vmatprep.mubr.f32.mxu0 0.0
    %663 = vmatmul.mubr.f32.gmra.mrb[0].mxu0 %v303
    %v664 = vpop.f32.mrb[0].mxu0
    %v665 = vadd.f32 0.0, %v664
    %v666 = vpop.f32.mrb[0].mxu0
    %667 = vmatprep.mubr.f32.mxu0 0.0
    %668 = vmatmul.mubr.f32.gmra.mrb[0].mxu0 %v306
    %v669 = vpop.f32.mrb[0].mxu0
    %v670 = vadd.f32 0.0, %v669
    %v671 = vpop.f32.mrb[0].mxu0
    %672 = vmatprep.mubr.f32.mxu0 0.0
    %673 = vmatmul.mubr.f32.gmra.mrb[0].mxu0 %v309
    %v674 = vpop.f32.mrb[0].mxu0
    %v675 = vadd.f32 0.0, %v674
    %v676 = vpop.f32.mrb[0].mxu0
    %677 = vmatprep.mubr.f32.mxu0 0.0
    %678 = vmatmul.mubr.f32.gmra.mrb[0].mxu0 %v312
    %v679 = vpop.f32.mrb[0].mxu0
    %v680 = vadd.f32 0.0, %v679
    %v681 = vpop.f32.mrb[0].mxu0
    %682 = vdwg.mxu0
    %v684 = vsel %vm133, 0.0, 0
    %v687 = vsel %vm314, %v128, 0
    %689 = vmatprep.subr.mxu0 0.0
    %690 = vmatpush1.msra.mxu0 %v126
    %691 = vmatprep.subr.mxu0 0.0
    %692 = vmatpush1.msra.mxu0 %v127
    %693 = vmatprep.subr.mxu0 0.0
    %694 = vmatpush1.msra.mxu0 %v687
    %695 = vmatprep.subr.mxu0 0.0
    %696 = vmatpush1.msra.mxu0 0.0
    %697 = vmatprep.subr.mxu0 0.0
    %698 = vmatpush1.msra.mxu0 0.0
    %699 = vmatprep.subr.mxu0 0.0
    %700 = vmatpush1.msra.mxu0 0.0
    %701 = vmatprep.subr.mxu0 0.0
    %702 = vmatpush1.msra.mxu0 0.0
    %703 = vmatprep.subr.mxu0 0.0
    %704 = vmatpush1.msra.mxu0 0.0
    %705 = vmatprep.subr.mxu0 0.0
    %706 = vmatpush1.msra.mxu0 0.0
    %707 = vmatprep.subr.mxu0 0.0
    %708 = vmatpush1.msra.mxu0 0.0
    %709 = vmatprep.subr.mxu0 0.0
    %710 = vmatpush1.msra.mxu0 0.0
    %711 = vmatprep.subr.mxu0 0.0
    %712 = vmatpush1.msra.mxu0 0.0
    %713 = vmatprep.subr.mxu0 0.0
    %714 = vmatpush1.msra.mxu0 0.0
    %715 = vmatprep.subr.mxu0 0.0
    %716 = vmatpush1.msra.mxu0 0.0
    %717 = vmatprep.subr.mxu0 0.0
    %718 = vmatpush1.msra.mxu0 0.0
    %719 = vmatprep.subr.mxu0 0.0
    %720 = vmatpush1.msra.mxu0 0.0
    %721 = vmatprep.subr.mxu0 0.0
    %722 = vmatpush1.msra.mxu0 0.0
    %723 = vmatprep.subr.mxu0 0.0
    %724 = vmatpush1.msra.mxu0 0.0
    %725 = vmatprep.subr.mxu0 0.0
    %726 = vmatpush1.msra.mxu0 0.0
    %727 = vmatprep.subr.mxu0 0.0
    %728 = vmatpush1.msra.mxu0 0.0
    %729 = vmatprep.subr.mxu0 0.0
    %730 = vmatpush1.msra.mxu0 0.0
    %731 = vmatprep.subr.mxu0 0.0
    %732 = vmatpush1.msra.mxu0 0.0
    %733 = vmatprep.subr.mxu0 0.0
    %734 = vmatpush1.msra.mxu0 0.0
    %735 = vmatprep.subr.mxu0 0.0
    %736 = vmatpush1.msra.mxu0 0.0
    %737 = vmatprep.subr.mxu0 0.0
    %738 = vmatpush1.msra.mxu0 0.0
    %739 = vmatprep.subr.mxu0 0.0
    %740 = vmatpush1.msra.mxu0 0.0
    %741 = vmatprep.subr.mxu0 0.0
    %742 = vmatpush1.msra.mxu0 0.0
    %743 = vmatprep.subr.mxu0 0.0
    %744 = vmatpush1.msra.mxu0 0.0
    %745 = vmatprep.subr.mxu0 0.0
    %746 = vmatpush1.msra.mxu0 0.0
    %747 = vmatprep.subr.mxu0 0.0
    %748 = vmatpush1.msra.mxu0 0.0
    %749 = vmatprep.subr.mxu0 0.0
    %750 = vmatpush1.msra.mxu0 0.0
    %751 = vmatprep.subr.mxu0 0.0
    %752 = vmatpush1.msra.mxu0 0.0
    %753 = vmatprep.mubr.f32.mxu0 0.0
    %754 = vmatmul.mubr.f32.gmra.mrb[0].mxu0 %v684
    %v755 = vpop.f32.mrb[0].mxu0
    %v756 = vadd.f32 %v385, %v755
    %v757 = vpop.f32.mrb[0].mxu0
    %758 = vmatprep.mubr.f32.mxu0 0.0
    %759 = vmatmul.mubr.f32.gmra.mrb[0].mxu0 %v135
    %v760 = vpop.f32.mrb[0].mxu0
    %v761 = vadd.f32 %v390, %v760
    %v762 = vpop.f32.mrb[0].mxu0
    %763 = vmatprep.mubr.f32.mxu0 0.0
    %764 = vmatmul.mubr.f32.gmra.mrb[0].mxu0 %v138
    %v765 = vpop.f32.mrb[0].mxu0
    %v766 = vadd.f32 %v395, %v765
    %v767 = vpop.f32.mrb[0].mxu0
    %768 = vmatprep.mubr.f32.mxu0 0.0
    %769 = vmatmul.mubr.f32.gmra.mrb[0].mxu0 %v141
    %v770 = vpop.f32.mrb[0].mxu0
    %v771 = vadd.f32 %v400, %v770
    %v772 = vpop.f32.mrb[0].mxu0
    %773 = vmatprep.mubr.f32.mxu0 0.0
    %774 = vmatmul.mubr.f32.gmra.mrb[0].mxu0 %v144
    %v775 = vpop.f32.mrb[0].mxu0
    %v776 = vadd.f32 %v405, %v775
    %v777 = vpop.f32.mrb[0].mxu0
    %778 = vmatprep.mubr.f32.mxu0 0.0
    %779 = vmatmul.mubr.f32.gmra.mrb[0].mxu0 %v147
    %v780 = vpop.f32.mrb[0].mxu0
    %v781 = vadd.f32 %v410, %v780
    %v782 = vpop.f32.mrb[0].mxu0
    %783 = vmatprep.mubr.f32.mxu0 0.0
    %784 = vmatmul.mubr.f32.gmra.mrb[0].mxu0 %v150
    %v785 = vpop.f32.mrb[0].mxu0
    %v786 = vadd.f32 %v415, %v785
    %v787 = vpop.f32.mrb[0].mxu0
    %788 = vmatprep.mubr.f32.mxu0 0.0
    %789 = vmatmul.mubr.f32.gmra.mrb[0].mxu0 %v153
    %v790 = vpop.f32.mrb[0].mxu0
    %v791 = vadd.f32 %v420, %v790
    %v792 = vpop.f32.mrb[0].mxu0
    %793 = vmatprep.mubr.f32.mxu0 0.0
    %794 = vmatmul.mubr.f32.gmra.mrb[0].mxu0 %v156
    %v795 = vpop.f32.mrb[0].mxu0
    %v796 = vadd.f32 %v425, %v795
    %v797 = vpop.f32.mrb[0].mxu0
    %798 = vmatprep.mubr.f32.mxu0 0.0
    %799 = vmatmul.mubr.f32.gmra.mrb[0].mxu0 %v159
    %v800 = vpop.f32.mrb[0].mxu0
    %v801 = vadd.f32 %v430, %v800
    %v802 = vpop.f32.mrb[0].mxu0
    %803 = vmatprep.mubr.f32.mxu0 0.0
    %804 = vmatmul.mubr.f32.gmra.mrb[0].mxu0 %v162
    %v805 = vpop.f32.mrb[0].mxu0
    %v806 = vadd.f32 %v435, %v805
    %v807 = vpop.f32.mrb[0].mxu0
    %808 = vmatprep.mubr.f32.mxu0 0.0
    %809 = vmatmul.mubr.f32.gmra.mrb[0].mxu0 %v165
    %v810 = vpop.f32.mrb[0].mxu0
    %v811 = vadd.f32 %v440, %v810
    %v812 = vpop.f32.mrb[0].mxu0
    %813 = vmatprep.mubr.f32.mxu0 0.0
    %814 = vmatmul.mubr.f32.gmra.mrb[0].mxu0 %v168
    %v815 = vpop.f32.mrb[0].mxu0
    %v816 = vadd.f32 %v445, %v815
    %v817 = vpop.f32.mrb[0].mxu0
    %818 = vmatprep.mubr.f32.mxu0 0.0
    %819 = vmatmul.mubr.f32.gmra.mrb[0].mxu0 %v171
    %v820 = vpop.f32.mrb[0].mxu0
    %v821 = vadd.f32 %v450, %v820
    %v822 = vpop.f32.mrb[0].mxu0
    %823 = vmatprep.mubr.f32.mxu0 0.0
    %824 = vmatmul.mubr.f32.gmra.mrb[0].mxu0 %v174
    %v825 = vpop.f32.mrb[0].mxu0
    %v826 = vadd.f32 %v455, %v825
    %v827 = vpop.f32.mrb[0].mxu0
    %828 = vmatprep.mubr.f32.mxu0 0.0
    %829 = vmatmul.mubr.f32.gmra.mrb[0].mxu0 %v177
    %v830 = vpop.f32.mrb[0].mxu0
    %v831 = vadd.f32 %v460, %v830
    %v832 = vpop.f32.mrb[0].mxu0
    %833 = vmatprep.mubr.f32.mxu0 0.0
    %834 = vmatmul.mubr.f32.gmra.mrb[0].mxu0 %v180
    %v835 = vpop.f32.mrb[0].mxu0
    %v836 = vadd.f32 %v465, %v835
    %v837 = vpop.f32.mrb[0].mxu0
    %838 = vmatprep.mubr.f32.mxu0 0.0
    %839 = vmatmul.mubr.f32.gmra.mrb[0].mxu0 %v183
    %v840 = vpop.f32.mrb[0].mxu0
    %v841 = vadd.f32 %v470, %v840
    %v842 = vpop.f32.mrb[0].mxu0
    %843 = vmatprep.mubr.f32.mxu0 0.0
    %844 = vmatmul.mubr.f32.gmra.mrb[0].mxu0 %v186
    %v845 = vpop.f32.mrb[0].mxu0
    %v846 = vadd.f32 %v475, %v845
    %v847 = vpop.f32.mrb[0].mxu0
    %848 = vmatprep.mubr.f32.mxu0 0.0
    %849 = vmatmul.mubr.f32.gmra.mrb[0].mxu0 %v189
    %v850 = vpop.f32.mrb[0].mxu0
    %v851 = vadd.f32 %v480, %v850
    %v852 = vpop.f32.mrb[0].mxu0
    %853 = vmatprep.mubr.f32.mxu0 0.0
    %854 = vmatmul.mubr.f32.gmra.mrb[0].mxu0 %v192
    %v855 = vpop.f32.mrb[0].mxu0
    %v856 = vadd.f32 %v485, %v855
    %v857 = vpop.f32.mrb[0].mxu0
    %858 = vmatprep.mubr.f32.mxu0 0.0
    %859 = vmatmul.mubr.f32.gmra.mrb[0].mxu0 %v195
    %v860 = vpop.f32.mrb[0].mxu0
    %v861 = vadd.f32 %v490, %v860
    %v862 = vpop.f32.mrb[0].mxu0
    %863 = vmatprep.mubr.f32.mxu0 0.0
    %864 = vmatmul.mubr.f32.gmra.mrb[0].mxu0 %v198
    %v865 = vpop.f32.mrb[0].mxu0
    %v866 = vadd.f32 %v495, %v865
    %v867 = vpop.f32.mrb[0].mxu0
    %868 = vmatprep.mubr.f32.mxu0 0.0
    %869 = vmatmul.mubr.f32.gmra.mrb[0].mxu0 %v201
    %v870 = vpop.f32.mrb[0].mxu0
    %v871 = vadd.f32 %v500, %v870
    %v872 = vpop.f32.mrb[0].mxu0
    %873 = vmatprep.mubr.f32.mxu0 0.0
    %874 = vmatmul.mubr.f32.gmra.mrb[0].mxu0 %v204
    %v875 = vpop.f32.mrb[0].mxu0
    %v876 = vadd.f32 %v505, %v875
    %v877 = vpop.f32.mrb[0].mxu0
    %878 = vmatprep.mubr.f32.mxu0 0.0
    %879 = vmatmul.mubr.f32.gmra.mrb[0].mxu0 %v207
    %v880 = vpop.f32.mrb[0].mxu0
    %v881 = vadd.f32 %v510, %v880
    %v882 = vpop.f32.mrb[0].mxu0
    %883 = vmatprep.mubr.f32.mxu0 0.0
    %884 = vmatmul.mubr.f32.gmra.mrb[0].mxu0 %v210
    %v885 = vpop.f32.mrb[0].mxu0
    %v886 = vadd.f32 %v515, %v885
    %v887 = vpop.f32.mrb[0].mxu0
    %888 = vmatprep.mubr.f32.mxu0 0.0
    %889 = vmatmul.mubr.f32.gmra.mrb[0].mxu0 %v213
    %v890 = vpop.f32.mrb[0].mxu0
    %v891 = vadd.f32 %v520, %v890
    %v892 = vpop.f32.mrb[0].mxu0
    %893 = vmatprep.mubr.f32.mxu0 0.0
    %894 = vmatmul.mubr.f32.gmra.mrb[0].mxu0 %v216
    %v895 = vpop.f32.mrb[0].mxu0
    %v896 = vadd.f32 %v525, %v895
    %v897 = vpop.f32.mrb[0].mxu0
    %898 = vmatprep.mubr.f32.mxu0 0.0
    %899 = vmatmul.mubr.f32.gmra.mrb[0].mxu0 %v219
    %v900 = vpop.f32.mrb[0].mxu0
    %v901 = vadd.f32 %v530, %v900
    %v902 = vpop.f32.mrb[0].mxu0
    %903 = vmatprep.mubr.f32.mxu0 0.0
    %904 = vmatmul.mubr.f32.gmra.mrb[0].mxu0 %v222
    %v905 = vpop.f32.mrb[0].mxu0
    %v906 = vadd.f32 %v535, %v905
    %v907 = vpop.f32.mrb[0].mxu0
    %908 = vmatprep.mubr.f32.mxu0 0.0
    %909 = vmatmul.mubr.f32.gmra.mrb[0].mxu0 %v225
    %v910 = vpop.f32.mrb[0].mxu0
    %v911 = vadd.f32 %v540, %v910
    %v912 = vpop.f32.mrb[0].mxu0
    %913 = vmatprep.mubr.f32.mxu0 0.0
    %914 = vmatmul.mubr.f32.gmra.mrb[0].mxu0 %v228
    %v915 = vpop.f32.mrb[0].mxu0
    %v916 = vadd.f32 %v545, %v915
    %v917 = vpop.f32.mrb[0].mxu0
    %918 = vmatprep.mubr.f32.mxu0 0.0
    %919 = vmatmul.mubr.f32.gmra.mrb[0].mxu0 %v231
    %v920 = vpop.f32.mrb[0].mxu0
    %v921 = vadd.f32 %v550, %v920
    %v922 = vpop.f32.mrb[0].mxu0
    %923 = vmatprep.mubr.f32.mxu0 0.0
    %924 = vmatmul.mubr.f32.gmra.mrb[0].mxu0 %v234
    %v925 = vpop.f32.mrb[0].mxu0
    %v926 = vadd.f32 %v555, %v925
    %v927 = vpop.f32.mrb[0].mxu0
    %928 = vmatprep.mubr.f32.mxu0 0.0
    %929 = vmatmul.mubr.f32.gmra.mrb[0].mxu0 %v237
    %v930 = vpop.f32.mrb[0].mxu0
    %v931 = vadd.f32 %v560, %v930
    %v932 = vpop.f32.mrb[0].mxu0
    %933 = vmatprep.mubr.f32.mxu0 0.0
    %934 = vmatmul.mubr.f32.gmra.mrb[0].mxu0 %v240
    %v935 = vpop.f32.mrb[0].mxu0
    %v936 = vadd.f32 %v565, %v935
    %v937 = vpop.f32.mrb[0].mxu0
    %938 = vmatprep.mubr.f32.mxu0 0.0
    %939 = vmatmul.mubr.f32.gmra.mrb[0].mxu0 %v243
    %v940 = vpop.f32.mrb[0].mxu0
    %v941 = vadd.f32 %v570, %v940
    %v942 = vpop.f32.mrb[0].mxu0
    %943 = vmatprep.mubr.f32.mxu0 0.0
    %944 = vmatmul.mubr.f32.gmra.mrb[0].mxu0 %v246
    %v945 = vpop.f32.mrb[0].mxu0
    %v946 = vadd.f32 %v575, %v945
    %v947 = vpop.f32.mrb[0].mxu0
    %948 = vmatprep.mubr.f32.mxu0 0.0
    %949 = vmatmul.mubr.f32.gmra.mrb[0].mxu0 %v249
    %v950 = vpop.f32.mrb[0].mxu0
    %v951 = vadd.f32 %v580, %v950
    %v952 = vpop.f32.mrb[0].mxu0
    %953 = vmatprep.mubr.f32.mxu0 0.0
    %954 = vmatmul.mubr.f32.gmra.mrb[0].mxu0 %v252
    %v955 = vpop.f32.mrb[0].mxu0
    %v956 = vadd.f32 %v585, %v955
    %v957 = vpop.f32.mrb[0].mxu0
    %958 = vmatprep.mubr.f32.mxu0 0.0
    %959 = vmatmul.mubr.f32.gmra.mrb[0].mxu0 %v255
    %v960 = vpop.f32.mrb[0].mxu0
    %v961 = vadd.f32 %v590, %v960
    %v962 = vpop.f32.mrb[0].mxu0
    %963 = vmatprep.mubr.f32.mxu0 0.0
    %964 = vmatmul.mubr.f32.gmra.mrb[0].mxu0 %v258
    %v965 = vpop.f32.mrb[0].mxu0
    %v966 = vadd.f32 %v595, %v965
    %v967 = vpop.f32.mrb[0].mxu0
    %968 = vmatprep.mubr.f32.mxu0 0.0
    %969 = vmatmul.mubr.f32.gmra.mrb[0].mxu0 %v261
    %v970 = vpop.f32.mrb[0].mxu0
    %v971 = vadd.f32 %v600, %v970
    %v972 = vpop.f32.mrb[0].mxu0
    %973 = vmatprep.mubr.f32.mxu0 0.0
    %974 = vmatmul.mubr.f32.gmra.mrb[0].mxu0 %v264
    %v975 = vpop.f32.mrb[0].mxu0
    %v976 = vadd.f32 %v605, %v975
    %v977 = vpop.f32.mrb[0].mxu0
    %978 = vmatprep.mubr.f32.mxu0 0.0
    %979 = vmatmul.mubr.f32.gmra.mrb[0].mxu0 %v267
    %v980 = vpop.f32.mrb[0].mxu0
    %v981 = vadd.f32 %v610, %v980
    %v982 = vpop.f32.mrb[0].mxu0
    %983 = vmatprep.mubr.f32.mxu0 0.0
    %984 = vmatmul.mubr.f32.gmra.mrb[0].mxu0 %v270
    %v985 = vpop.f32.mrb[0].mxu0
    %v986 = vadd.f32 %v615, %v985
    %v987 = vpop.f32.mrb[0].mxu0
    %988 = vmatprep.mubr.f32.mxu0 0.0
    %989 = vmatmul.mubr.f32.gmra.mrb[0].mxu0 %v273
    %v990 = vpop.f32.mrb[0].mxu0
    %v991 = vadd.f32 %v620, %v990
    %v992 = vpop.f32.mrb[0].mxu0
    %993 = vmatprep.mubr.f32.mxu0 0.0
    %994 = vmatmul.mubr.f32.gmra.mrb[0].mxu0 %v276
    %v995 = vpop.f32.mrb[0].mxu0
    %v996 = vadd.f32 %v625, %v995
    %v997 = vpop.f32.mrb[0].mxu0
    %998 = vmatprep.mubr.f32.mxu0 0.0
    %999 = vmatmul.mubr.f32.gmra.mrb[0].mxu0 %v279
    %v1000 = vpop.f32.mrb[0].mxu0
    %v1001 = vadd.f32 %v630, %v1000
    %v1002 = vpop.f32.mrb[0].mxu0
    %1003 = vmatprep.mubr.f32.mxu0 0.0
    %1004 = vmatmul.mubr.f32.gmra.mrb[0].mxu0 %v282
    %v1005 = vpop.f32.mrb[0].mxu0
    %v1006 = vadd.f32 %v635, %v1005
    %v1007 = vpop.f32.mrb[0].mxu0
    %1008 = vmatprep.mubr.f32.mxu0 0.0
    %1009 = vmatmul.mubr.f32.gmra.mrb[0].mxu0 %v285
    %v1010 = vpop.f32.mrb[0].mxu0
    %v1011 = vadd.f32 %v640, %v1010
    %v1012 = vpop.f32.mrb[0].mxu0
    %1013 = vmatprep.mubr.f32.mxu0 0.0
    %1014 = vmatmul.mubr.f32.gmra.mrb[0].mxu0 %v288
    %v1015 = vpop.f32.mrb[0].mxu0
    %v1016 = vadd.f32 %v645, %v1015
    %v1017 = vpop.f32.mrb[0].mxu0
    %1018 = vmatprep.mubr.f32.mxu0 0.0
    %1019 = vmatmul.mubr.f32.gmra.mrb[0].mxu0 %v291
    %v1020 = vpop.f32.mrb[0].mxu0
    %v1021 = vadd.f32 %v650, %v1020
    %v1022 = vpop.f32.mrb[0].mxu0
    %1023 = vmatprep.mubr.f32.mxu0 0.0
    %1024 = vmatmul.mubr.f32.gmra.mrb[0].mxu0 %v294
    %v1025 = vpop.f32.mrb[0].mxu0
    %v1026 = vadd.f32 %v655, %v1025
    %v1027 = vpop.f32.mrb[0].mxu0
    %1028 = vmatprep.mubr.f32.mxu0 0.0
    %1029 = vmatmul.mubr.f32.gmra.mrb[0].mxu0 %v297
    %v1030 = vpop.f32.mrb[0].mxu0
    %v1031 = vadd.f32 %v660, %v1030
    %v1032 = vpop.f32.mrb[0].mxu0
    %1033 = vmatprep.mubr.f32.mxu0 0.0
    %1034 = vmatmul.mubr.f32.gmra.mrb[0].mxu0 %v300
    %v1035 = vpop.f32.mrb[0].mxu0
    %v1036 = vadd.f32 %v665, %v1035
    %v1037 = vpop.f32.mrb[0].mxu0
    %1038 = vmatprep.mubr.f32.mxu0 0.0
    %1039 = vmatmul.mubr.f32.gmra.mrb[0].mxu0 %v303
    %v1040 = vpop.f32.mrb[0].mxu0
    %v1041 = vadd.f32 %v670, %v1040
    %v1042 = vpop.f32.mrb[0].mxu0
    %1043 = vmatprep.mubr.f32.mxu0 0.0
    %1044 = vmatmul.mubr.f32.gmra.mrb[0].mxu0 %v306
    %v1045 = vpop.f32.mrb[0].mxu0
    %v1046 = vadd.f32 %v675, %v1045
    %v1047 = vpop.f32.mrb[0].mxu0
    %1048 = vmatprep.mubr.f32.mxu0 0.0
    %1049 = vmatmul.mubr.f32.gmra.mrb[0].mxu0 %v309
    %v1050 = vpop.f32.mrb[0].mxu0
    %v1051 = vadd.f32 %v680, %v1050
    %v1052 = vpop.f32.mrb[0].mxu0
    %1053 = vdwg.mxu0
    %s1054 = scalar_lea.vmem %s1, 48
    %v1055 = vld [vmem:[%s1054] sm:$0xff]
    %v1056 = vld [vmem:[%s1054 + $0x8] sm:$0xff]
    %v1057 = vld [vmem:[%s1054 + $0x10] sm:$0x7f]
    %v1059 = vsel %vm314, %v1057, 0
    %1061 = vmatprep.subr.mxu0 0.0
    %1062 = vmatpush1.msra.mxu0 %v1055
    %1063 = vmatprep.subr.mxu0 0.0
    %1064 = vmatpush1.msra.mxu0 %v1056
    %1065 = vmatprep.subr.mxu0 0.0
    %1066 = vmatpush1.msra.mxu0 %v1059
    %1067 = vmatprep.subr.mxu0 0.0
    %1068 = vmatpush1.msra.mxu0 0.0
    %1069 = vmatprep.subr.mxu0 0.0
    %1070 = vmatpush1.msra.mxu0 0.0
    %1071 = vmatprep.subr.mxu0 0.0
    %1072 = vmatpush1.msra.mxu0 0.0
    %1073 = vmatprep.subr.mxu0 0.0
    %1074 = vmatpush1.msra.mxu0 0.0
    %1075 = vmatprep.subr.mxu0 0.0
    %1076 = vmatpush1.msra.mxu0 0.0
    %1077 = vmatprep.subr.mxu0 0.0
    %1078 = vmatpush1.msra.mxu0 0.0
    %1079 = vmatprep.subr.mxu0 0.0
    %1080 = vmatpush1.msra.mxu0 0.0
    %1081 = vmatprep.subr.mxu0 0.0
    %1082 = vmatpush1.msra.mxu0 0.0
    %1083 = vmatprep.subr.mxu0 0.0
    %1084 = vmatpush1.msra.mxu0 0.0
    %1085 = vmatprep.subr.mxu0 0.0
    %1086 = vmatpush1.msra.mxu0 0.0
    %1087 = vmatprep.subr.mxu0 0.0
    %1088 = vmatpush1.msra.mxu0 0.0
    %1089 = vmatprep.subr.mxu0 0.0
    %1090 = vmatpush1.msra.mxu0 0.0
    %1091 = vmatprep.subr.mxu0 0.0
    %1092 = vmatpush1.msra.mxu0 0.0
    %1093 = vmatprep.subr.mxu0 0.0
    %1094 = vmatpush1.msra.mxu0 0.0
    %1095 = vmatprep.subr.mxu0 0.0
    %1096 = vmatpush1.msra.mxu0 0.0
    %1097 = vmatprep.subr.mxu0 0.0
    %1098 = vmatpush1.msra.mxu0 0.0
    %1099 = vmatprep.subr.mxu0 0.0
    %1100 = vmatpush1.msra.mxu0 0.0
    %1101 = vmatprep.subr.mxu0 0.0
    %1102 = vmatpush1.msra.mxu0 0.0
    %1103 = vmatprep.subr.mxu0 0.0
    %1104 = vmatpush1.msra.mxu0 0.0
    %1105 = vmatprep.subr.mxu0 0.0
    %1106 = vmatpush1.msra.mxu0 0.0
    %1107 = vmatprep.subr.mxu0 0.0
    %1108 = vmatpush1.msra.mxu0 0.0
    %1109 = vmatprep.subr.mxu0 0.0
    %1110 = vmatpush1.msra.mxu0 0.0
    %1111 = vmatprep.subr.mxu0 0.0
    %1112 = vmatpush1.msra.mxu0 0.0
    %1113 = vmatprep.subr.mxu0 0.0
    %1114 = vmatpush1.msra.mxu0 0.0
    %1115 = vmatprep.subr.mxu0 0.0
    %1116 = vmatpush1.msra.mxu0 0.0
    %1117 = vmatprep.subr.mxu0 0.0
    %1118 = vmatpush1.msra.mxu0 0.0
    %1119 = vmatprep.subr.mxu0 0.0
    %1120 = vmatpush1.msra.mxu0 0.0
    %1121 = vmatprep.subr.mxu0 0.0
    %1122 = vmatpush1.msra.mxu0 0.0
    %1123 = vmatprep.subr.mxu0 0.0
    %1124 = vmatpush1.msra.mxu0 0.0
    %1125 = vmatprep.mubr.f32.mxu0 0.0
    %1126 = vmatmul.mubr.f32.gmra.mrb[0].mxu0 %v138
    %v1127 = vpop.f32.mrb[0].mxu0
    %v1128 = vadd.f32 0.0, %v1127
    %v1129 = vpop.f32.mrb[0].mxu0
    %1130 = vmatprep.mubr.f32.mxu0 0.0
    %1131 = vmatmul.mubr.f32.gmra.mrb[0].mxu0 %v141
    %v1132 = vpop.f32.mrb[0].mxu0
    %v1133 = vadd.f32 0.0, %v1132
    %v1134 = vpop.f32.mrb[0].mxu0
    %1135 = vmatprep.mubr.f32.mxu0 0.0
    %1136 = vmatmul.mubr.f32.gmra.mrb[0].mxu0 %v144
    %v1137 = vpop.f32.mrb[0].mxu0
    %v1138 = vadd.f32 0.0, %v1137
    %v1139 = vpop.f32.mrb[0].mxu0
    %1140 = vmatprep.mubr.f32.mxu0 0.0
    %1141 = vmatmul.mubr.f32.gmra.mrb[0].mxu0 %v147
    %v1142 = vpop.f32.mrb[0].mxu0
    %v1143 = vadd.f32 0.0, %v1142
    %v1144 = vpop.f32.mrb[0].mxu0
    %1145 = vmatprep.mubr.f32.mxu0 0.0
    %1146 = vmatmul.mubr.f32.gmra.mrb[0].mxu0 %v150
    %v1147 = vpop.f32.mrb[0].mxu0
    %v1148 = vadd.f32 0.0, %v1147
    %v1149 = vpop.f32.mrb[0].mxu0
    %1150 = vmatprep.mubr.f32.mxu0 0.0
    %1151 = vmatmul.mubr.f32.gmra.mrb[0].mxu0 %v153
    %v1152 = vpop.f32.mrb[0].mxu0
    %v1153 = vadd.f32 0.0, %v1152
    %v1154 = vpop.f32.mrb[0].mxu0
    %1155 = vmatprep.mubr.f32.mxu0 0.0
    %1156 = vmatmul.mubr.f32.gmra.mrb[0].mxu0 %v156
    %v1157 = vpop.f32.mrb[0].mxu0
    %v1158 = vadd.f32 0.0, %v1157
    %v1159 = vpop.f32.mrb[0].mxu0
    %1160 = vmatprep.mubr.f32.mxu0 0.0
    %1161 = vmatmul.mubr.f32.gmra.mrb[0].mxu0 %v159
    %v1162 = vpop.f32.mrb[0].mxu0
    %v1163 = vadd.f32 0.0, %v1162
    %v1164 = vpop.f32.mrb[0].mxu0
    %1165 = vmatprep.mubr.f32.mxu0 0.0
    %1166 = vmatmul.mubr.f32.gmra.mrb[0].mxu0 %v162
    %v1167 = vpop.f32.mrb[0].mxu0
    %v1168 = vadd.f32 0.0, %v1167
    %v1169 = vpop.f32.mrb[0].mxu0
    %1170 = vmatprep.mubr.f32.mxu0 0.0
    %1171 = vmatmul.mubr.f32.gmra.mrb[0].mxu0 %v165
    %v1172 = vpop.f32.mrb[0].mxu0
    %v1173 = vadd.f32 0.0, %v1172
    %v1174 = vpop.f32.mrb[0].mxu0
    %1175 = vmatprep.mubr.f32.mxu0 0.0
    %1176 = vmatmul.mubr.f32.gmra.mrb[0].mxu0 %v168
    %v1177 = vpop.f32.mrb[0].mxu0
    %v1178 = vadd.f32 0.0, %v1177
    %v1179 = vpop.f32.mrb[0].mxu0
    %1180 = vmatprep.mubr.f32.mxu0 0.0
    %1181 = vmatmul.mubr.f32.gmra.mrb[0].mxu0 %v171
    %v1182 = vpop.f32.mrb[0].mxu0
    %v1183 = vadd.f32 0.0, %v1182
    %v1184 = vpop.f32.mrb[0].mxu0
    %1185 = vmatprep.mubr.f32.mxu0 0.0
    %1186 = vmatmul.mubr.f32.gmra.mrb[0].mxu0 %v174
    %v1187 = vpop.f32.mrb[0].mxu0
    %v1188 = vadd.f32 0.0, %v1187
    %v1189 = vpop.f32.mrb[0].mxu0
    %1190 = vmatprep.mubr.f32.mxu0 0.0
    %1191 = vmatmul.mubr.f32.gmra.mrb[0].mxu0 %v177
    %v1192 = vpop.f32.mrb[0].mxu0
    %v1193 = vadd.f32 0.0, %v1192
    %v1194 = vpop.f32.mrb[0].mxu0
    %1195 = vmatprep.mubr.f32.mxu0 0.0
    %1196 = vmatmul.mubr.f32.gmra.mrb[0].mxu0 %v180
    %v1197 = vpop.f32.mrb[0].mxu0
    %v1198 = vadd.f32 0.0, %v1197
    %v1199 = vpop.f32.mrb[0].mxu0
    %1200 = vmatprep.mubr.f32.mxu0 0.0
    %1201 = vmatmul.mubr.f32.gmra.mrb[0].mxu0 %v183
    %v1202 = vpop.f32.mrb[0].mxu0
    %v1203 = vadd.f32 0.0, %v1202
    %v1204 = vpop.f32.mrb[0].mxu0
    %1205 = vmatprep.mubr.f32.mxu0 0.0
    %1206 = vmatmul.mubr.f32.gmra.mrb[0].mxu0 %v186
    %v1207 = vpop.f32.mrb[0].mxu0
    %v1208 = vadd.f32 0.0, %v1207
    %v1209 = vpop.f32.mrb[0].mxu0
    %1210 = vmatprep.mubr.f32.mxu0 0.0
    %1211 = vmatmul.mubr.f32.gmra.mrb[0].mxu0 %v189
    %v1212 = vpop.f32.mrb[0].mxu0
    %v1213 = vadd.f32 0.0, %v1212
    %v1214 = vpop.f32.mrb[0].mxu0
    %1215 = vmatprep.mubr.f32.mxu0 0.0
    %1216 = vmatmul.mubr.f32.gmra.mrb[0].mxu0 %v192
    %v1217 = vpop.f32.mrb[0].mxu0
    %v1218 = vadd.f32 0.0, %v1217
    %v1219 = vpop.f32.mrb[0].mxu0
    %1220 = vmatprep.mubr.f32.mxu0 0.0
    %1221 = vmatmul.mubr.f32.gmra.mrb[0].mxu0 %v195
    %v1222 = vpop.f32.mrb[0].mxu0
    %v1223 = vadd.f32 0.0, %v1222
    %v1224 = vpop.f32.mrb[0].mxu0
    %1225 = vmatprep.mubr.f32.mxu0 0.0
    %1226 = vmatmul.mubr.f32.gmra.mrb[0].mxu0 %v198
    %v1227 = vpop.f32.mrb[0].mxu0
    %v1228 = vadd.f32 0.0, %v1227
    %v1229 = vpop.f32.mrb[0].mxu0
    %1230 = vmatprep.mubr.f32.mxu0 0.0
    %1231 = vmatmul.mubr.f32.gmra.mrb[0].mxu0 %v201
    %v1232 = vpop.f32.mrb[0].mxu0
    %v1233 = vadd.f32 0.0, %v1232
    %v1234 = vpop.f32.mrb[0].mxu0
    %1235 = vmatprep.mubr.f32.mxu0 0.0
    %1236 = vmatmul.mubr.f32.gmra.mrb[0].mxu0 %v204
    %v1237 = vpop.f32.mrb[0].mxu0
    %v1238 = vadd.f32 0.0, %v1237
    %v1239 = vpop.f32.mrb[0].mxu0
    %1240 = vmatprep.mubr.f32.mxu0 0.0
    %1241 = vmatmul.mubr.f32.gmra.mrb[0].mxu0 %v207
    %v1242 = vpop.f32.mrb[0].mxu0
    %v1243 = vadd.f32 0.0, %v1242
    %v1244 = vpop.f32.mrb[0].mxu0
    %1245 = vmatprep.mubr.f32.mxu0 0.0
    %1246 = vmatmul.mubr.f32.gmra.mrb[0].mxu0 %v210
    %v1247 = vpop.f32.mrb[0].mxu0
    %v1248 = vadd.f32 0.0, %v1247
    %v1249 = vpop.f32.mrb[0].mxu0
    %1250 = vmatprep.mubr.f32.mxu0 0.0
    %1251 = vmatmul.mubr.f32.gmra.mrb[0].mxu0 %v213
    %v1252 = vpop.f32.mrb[0].mxu0
    %v1253 = vadd.f32 0.0, %v1252
    %v1254 = vpop.f32.mrb[0].mxu0
    %1255 = vmatprep.mubr.f32.mxu0 0.0
    %1256 = vmatmul.mubr.f32.gmra.mrb[0].mxu0 %v216
    %v1257 = vpop.f32.mrb[0].mxu0
    %v1258 = vadd.f32 0.0, %v1257
    %v1259 = vpop.f32.mrb[0].mxu0
    %1260 = vmatprep.mubr.f32.mxu0 0.0
    %1261 = vmatmul.mubr.f32.gmra.mrb[0].mxu0 %v219
    %v1262 = vpop.f32.mrb[0].mxu0
    %v1263 = vadd.f32 0.0, %v1262
    %v1264 = vpop.f32.mrb[0].mxu0
    %1265 = vmatprep.mubr.f32.mxu0 0.0
    %1266 = vmatmul.mubr.f32.gmra.mrb[0].mxu0 %v222
    %v1267 = vpop.f32.mrb[0].mxu0
    %v1268 = vadd.f32 0.0, %v1267
    %v1269 = vpop.f32.mrb[0].mxu0
    %1270 = vmatprep.mubr.f32.mxu0 0.0
    %1271 = vmatmul.mubr.f32.gmra.mrb[0].mxu0 %v225
    %v1272 = vpop.f32.mrb[0].mxu0
    %v1273 = vadd.f32 0.0, %v1272
    %v1274 = vpop.f32.mrb[0].mxu0
    %1275 = vmatprep.mubr.f32.mxu0 0.0
    %1276 = vmatmul.mubr.f32.gmra.mrb[0].mxu0 %v228
    %v1277 = vpop.f32.mrb[0].mxu0
    %v1278 = vadd.f32 0.0, %v1277
    %v1279 = vpop.f32.mrb[0].mxu0
    %1280 = vmatprep.mubr.f32.mxu0 0.0
    %1281 = vmatmul.mubr.f32.gmra.mrb[0].mxu0 %v231
    %v1282 = vpop.f32.mrb[0].mxu0
    %v1283 = vadd.f32 0.0, %v1282
    %v1284 = vpop.f32.mrb[0].mxu0
    %1285 = vmatprep.mubr.f32.mxu0 0.0
    %1286 = vmatmul.mubr.f32.gmra.mrb[0].mxu0 %v234
    %v1287 = vpop.f32.mrb[0].mxu0
    %v1288 = vadd.f32 0.0, %v1287
    %v1289 = vpop.f32.mrb[0].mxu0
    %1290 = vmatprep.mubr.f32.mxu0 0.0
    %1291 = vmatmul.mubr.f32.gmra.mrb[0].mxu0 %v237
    %v1292 = vpop.f32.mrb[0].mxu0
    %v1293 = vadd.f32 0.0, %v1292
    %v1294 = vpop.f32.mrb[0].mxu0
    %1295 = vmatprep.mubr.f32.mxu0 0.0
    %1296 = vmatmul.mubr.f32.gmra.mrb[0].mxu0 %v240
    %v1297 = vpop.f32.mrb[0].mxu0
    %v1298 = vadd.f32 0.0, %v1297
    %v1299 = vpop.f32.mrb[0].mxu0
    %1300 = vmatprep.mubr.f32.mxu0 0.0
    %1301 = vmatmul.mubr.f32.gmra.mrb[0].mxu0 %v243
    %v1302 = vpop.f32.mrb[0].mxu0
    %v1303 = vadd.f32 0.0, %v1302
    %v1304 = vpop.f32.mrb[0].mxu0
    %1305 = vmatprep.mubr.f32.mxu0 0.0
    %1306 = vmatmul.mubr.f32.gmra.mrb[0].mxu0 %v246
    %v1307 = vpop.f32.mrb[0].mxu0
    %v1308 = vadd.f32 0.0, %v1307
    %v1309 = vpop.f32.mrb[0].mxu0
    %1310 = vmatprep.mubr.f32.mxu0 0.0
    %1311 = vmatmul.mubr.f32.gmra.mrb[0].mxu0 %v249
    %v1312 = vpop.f32.mrb[0].mxu0
    %v1313 = vadd.f32 0.0, %v1312
    %v1314 = vpop.f32.mrb[0].mxu0
    %1315 = vmatprep.mubr.f32.mxu0 0.0
    %1316 = vmatmul.mubr.f32.gmra.mrb[0].mxu0 %v252
    %v1317 = vpop.f32.mrb[0].mxu0
    %v1318 = vadd.f32 0.0, %v1317
    %v1319 = vpop.f32.mrb[0].mxu0
    %1320 = vmatprep.mubr.f32.mxu0 0.0
    %1321 = vmatmul.mubr.f32.gmra.mrb[0].mxu0 %v255
    %v1322 = vpop.f32.mrb[0].mxu0
    %v1323 = vadd.f32 0.0, %v1322
    %v1324 = vpop.f32.mrb[0].mxu0
    %1325 = vmatprep.mubr.f32.mxu0 0.0
    %1326 = vmatmul.mubr.f32.gmra.mrb[0].mxu0 %v258
    %v1327 = vpop.f32.mrb[0].mxu0
    %v1328 = vadd.f32 0.0, %v1327
    %v1329 = vpop.f32.mrb[0].mxu0
    %1330 = vmatprep.mubr.f32.mxu0 0.0
    %1331 = vmatmul.mubr.f32.gmra.mrb[0].mxu0 %v261
    %v1332 = vpop.f32.mrb[0].mxu0
    %v1333 = vadd.f32 0.0, %v1332
    %v1334 = vpop.f32.mrb[0].mxu0
    %1335 = vmatprep.mubr.f32.mxu0 0.0
    %1336 = vmatmul.mubr.f32.gmra.mrb[0].mxu0 %v264
    %v1337 = vpop.f32.mrb[0].mxu0
    %v1338 = vadd.f32 0.0, %v1337
    %v1339 = vpop.f32.mrb[0].mxu0
    %1340 = vmatprep.mubr.f32.mxu0 0.0
    %1341 = vmatmul.mubr.f32.gmra.mrb[0].mxu0 %v267
    %v1342 = vpop.f32.mrb[0].mxu0
    %v1343 = vadd.f32 0.0, %v1342
    %v1344 = vpop.f32.mrb[0].mxu0
    %1345 = vmatprep.mubr.f32.mxu0 0.0
    %1346 = vmatmul.mubr.f32.gmra.mrb[0].mxu0 %v270
    %v1347 = vpop.f32.mrb[0].mxu0
    %v1348 = vadd.f32 0.0, %v1347
    %v1349 = vpop.f32.mrb[0].mxu0
    %1350 = vmatprep.mubr.f32.mxu0 0.0
    %1351 = vmatmul.mubr.f32.gmra.mrb[0].mxu0 %v273
    %v1352 = vpop.f32.mrb[0].mxu0
    %v1353 = vadd.f32 0.0, %v1352
    %v1354 = vpop.f32.mrb[0].mxu0
    %1355 = vmatprep.mubr.f32.mxu0 0.0
    %1356 = vmatmul.mubr.f32.gmra.mrb[0].mxu0 %v276
    %v1357 = vpop.f32.mrb[0].mxu0
    %v1358 = vadd.f32 0.0, %v1357
    %v1359 = vpop.f32.mrb[0].mxu0
    %1360 = vmatprep.mubr.f32.mxu0 0.0
    %1361 = vmatmul.mubr.f32.gmra.mrb[0].mxu0 %v279
    %v1362 = vpop.f32.mrb[0].mxu0
    %v1363 = vadd.f32 0.0, %v1362
    %v1364 = vpop.f32.mrb[0].mxu0
    %1365 = vmatprep.mubr.f32.mxu0 0.0
    %1366 = vmatmul.mubr.f32.gmra.mrb[0].mxu0 %v282
    %v1367 = vpop.f32.mrb[0].mxu0
    %v1368 = vadd.f32 0.0, %v1367
    %v1369 = vpop.f32.mrb[0].mxu0
    %1370 = vmatprep.mubr.f32.mxu0 0.0
    %1371 = vmatmul.mubr.f32.gmra.mrb[0].mxu0 %v285
    %v1372 = vpop.f32.mrb[0].mxu0
    %v1373 = vadd.f32 0.0, %v1372
    %v1374 = vpop.f32.mrb[0].mxu0
    %1375 = vmatprep.mubr.f32.mxu0 0.0
    %1376 = vmatmul.mubr.f32.gmra.mrb[0].mxu0 %v288
    %v1377 = vpop.f32.mrb[0].mxu0
    %v1378 = vadd.f32 0.0, %v1377
    %v1379 = vpop.f32.mrb[0].mxu0
    %1380 = vmatprep.mubr.f32.mxu0 0.0
    %1381 = vmatmul.mubr.f32.gmra.mrb[0].mxu0 %v291
    %v1382 = vpop.f32.mrb[0].mxu0
    %v1383 = vadd.f32 0.0, %v1382
    %v1384 = vpop.f32.mrb[0].mxu0
    %1385 = vmatprep.mubr.f32.mxu0 0.0
    %1386 = vmatmul.mubr.f32.gmra.mrb[0].mxu0 %v294
    %v1387 = vpop.f32.mrb[0].mxu0
    %v1388 = vadd.f32 0.0, %v1387
    %v1389 = vpop.f32.mrb[0].mxu0
    %1390 = vmatprep.mubr.f32.mxu0 0.0
    %1391 = vmatmul.mubr.f32.gmra.mrb[0].mxu0 %v297
    %v1392 = vpop.f32.mrb[0].mxu0
    %v1393 = vadd.f32 0.0, %v1392
    %v1394 = vpop.f32.mrb[0].mxu0
    %1395 = vmatprep.mubr.f32.mxu0 0.0
    %1396 = vmatmul.mubr.f32.gmra.mrb[0].mxu0 %v300
    %v1397 = vpop.f32.mrb[0].mxu0
    %v1398 = vadd.f32 0.0, %v1397
    %v1399 = vpop.f32.mrb[0].mxu0
    %1400 = vmatprep.mubr.f32.mxu0 0.0
    %1401 = vmatmul.mubr.f32.gmra.mrb[0].mxu0 %v303
    %v1402 = vpop.f32.mrb[0].mxu0
    %v1403 = vadd.f32 0.0, %v1402
    %v1404 = vpop.f32.mrb[0].mxu0
    %1405 = vmatprep.mubr.f32.mxu0 0.0
    %1406 = vmatmul.mubr.f32.gmra.mrb[0].mxu0 %v306
    %v1407 = vpop.f32.mrb[0].mxu0
    %v1408 = vadd.f32 0.0, %v1407
    %v1409 = vpop.f32.mrb[0].mxu0
    %1410 = vmatprep.mubr.f32.mxu0 0.0
    %1411 = vmatmul.mubr.f32.gmra.mrb[0].mxu0 %v309
    %v1412 = vpop.f32.mrb[0].mxu0
    %v1413 = vadd.f32 0.0, %v1412
    %v1414 = vpop.f32.mrb[0].mxu0
    %1415 = vmatprep.mubr.f32.mxu0 0.0
    %1416 = vmatmul.mubr.f32.gmra.mrb[0].mxu0 %v312
    %v1417 = vpop.f32.mrb[0].mxu0
    %v1418 = vadd.f32 0.0, %v1417
    %v1419 = vpop.f32.mrb[0].mxu0
    %1420 = vmatprep.mubr.f32.mxu0 0.0
    %1421 = vmatmul.mubr.f32.gmra.mrb[0].mxu0 %v684
    %v1422 = vpop.f32.mrb[0].mxu0
    %v1423 = vadd.f32 0.0, %v1422
    %v1424 = vpop.f32.mrb[0].mxu0
    %1425 = vdwg.mxu0
    %v1426 = vadd.f32 %v756, %v1128
    %v1427 = vadd.f32 %v761, %v1133
    %v1428 = vadd.f32 %v766, %v1138
    %v1429 = vadd.f32 %v771, %v1143
    %v1430 = vadd.f32 %v776, %v1148
    %v1431 = vadd.f32 %v781, %v1153
    %v1432 = vadd.f32 %v786, %v1158
    %v1433 = vadd.f32 %v791, %v1163
    %v1434 = vadd.f32 %v796, %v1168
    %v1435 = vadd.f32 %v801, %v1173
    %v1436 = vadd.f32 %v806, %v1178
    %v1437 = vadd.f32 %v811, %v1183
    %v1438 = vadd.f32 %v816, %v1188
    %v1439 = vadd.f32 %v821, %v1193
    %v1440 = vadd.f32 %v826, %v1198
    %v1441 = vadd.f32 %v831, %v1203
    %v1442 = vadd.f32 %v836, %v1208
    %v1443 = vadd.f32 %v841, %v1213
    %v1444 = vadd.f32 %v846, %v1218
    %v1445 = vadd.f32 %v851, %v1223
    %v1446 = vadd.f32 %v856, %v1228
    %v1447 = vadd.f32 %v861, %v1233
    %v1448 = vadd.f32 %v866, %v1238
    %v1449 = vadd.f32 %v871, %v1243
    %v1450 = vadd.f32 %v876, %v1248
    %v1451 = vadd.f32 %v881, %v1253
    %v1452 = vadd.f32 %v886, %v1258
    %v1453 = vadd.f32 %v891, %v1263
    %v1454 = vadd.f32 %v896, %v1268
    %v1455 = vadd.f32 %v901, %v1273
    %v1456 = vadd.f32 %v906, %v1278
    %v1457 = vadd.f32 %v911, %v1283
    %v1458 = vadd.f32 %v916, %v1288
    %v1459 = vadd.f32 %v921, %v1293
    %v1460 = vadd.f32 %v926, %v1298
    %v1461 = vadd.f32 %v931, %v1303
    %v1462 = vadd.f32 %v936, %v1308
    %v1463 = vadd.f32 %v941, %v1313
    %v1464 = vadd.f32 %v946, %v1318
    %v1465 = vadd.f32 %v951, %v1323
    %v1466 = vadd.f32 %v956, %v1328
    %v1467 = vadd.f32 %v961, %v1333
    %v1468 = vadd.f32 %v966, %v1338
    %v1469 = vadd.f32 %v971, %v1343
    %v1470 = vadd.f32 %v976, %v1348
    %v1471 = vadd.f32 %v981, %v1353
    %v1472 = vadd.f32 %v986, %v1358
    %v1473 = vadd.f32 %v991, %v1363
    %v1474 = vadd.f32 %v996, %v1368
    %v1475 = vadd.f32 %v1001, %v1373
    %v1476 = vadd.f32 %v1006, %v1378
    %v1477 = vadd.f32 %v1011, %v1383
    %v1478 = vadd.f32 %v1016, %v1388
    %v1479 = vadd.f32 %v1021, %v1393
    %v1480 = vadd.f32 %v1026, %v1398
    %v1481 = vadd.f32 %v1031, %v1403
    %v1482 = vadd.f32 %v1036, %v1408
    %v1483 = vadd.f32 %v1041, %v1413
    %v1484 = vadd.f32 %v1046, %v1418
    %v1485 = vadd.f32 %v1051, %v1423
    %v1486 = vld [vmem:[%s2] sm:$0x1]
    %v1488 = vlaneseq
    %v1489 = vshrl.u32 %v1488, 7
    %v1490 = vsub.s32 0, %v1489
    %v1491 = vrot.slane %v1486, %v1490
    %v1493 = vmul.f32 %v1426, %v1491
    %v1494 = vmul.f32 %v1427, %v1491
    %v1495 = vmul.f32 %v1428, %v1491
    %v1496 = vmul.f32 %v1429, %v1491
    %v1497 = vmul.f32 %v1430, %v1491
    %v1498 = vmul.f32 %v1431, %v1491
    %v1499 = vmul.f32 %v1432, %v1491
    %v1500 = vmul.f32 %v1433, %v1491
    %v1501 = vmul.f32 %v1434, %v1491
    %v1502 = vmul.f32 %v1435, %v1491
    %v1503 = vmul.f32 %v1436, %v1491
    %v1504 = vmul.f32 %v1437, %v1491
    %v1505 = vmul.f32 %v1438, %v1491
    %v1506 = vmul.f32 %v1439, %v1491
    %v1507 = vmul.f32 %v1440, %v1491
    %v1508 = vmul.f32 %v1441, %v1491
    %v1509 = vmul.f32 %v1442, %v1491
    %v1510 = vmul.f32 %v1443, %v1491
    %v1511 = vmul.f32 %v1444, %v1491
    %v1512 = vmul.f32 %v1445, %v1491
    %v1513 = vmul.f32 %v1446, %v1491
    %v1514 = vmul.f32 %v1447, %v1491
    %v1515 = vmul.f32 %v1448, %v1491
    %v1516 = vmul.f32 %v1449, %v1491
    %v1517 = vmul.f32 %v1450, %v1491
    %v1518 = vmul.f32 %v1451, %v1491
    %v1519 = vmul.f32 %v1452, %v1491
    %v1520 = vmul.f32 %v1453, %v1491
    %v1521 = vmul.f32 %v1454, %v1491
    %v1522 = vmul.f32 %v1455, %v1491
    %v1523 = vmul.f32 %v1456, %v1491
    %v1524 = vmul.f32 %v1457, %v1491
    %v1525 = vmul.f32 %v1458, %v1491
    %v1526 = vmul.f32 %v1459, %v1491
    %v1527 = vmul.f32 %v1460, %v1491
    %v1528 = vmul.f32 %v1461, %v1491
    %v1529 = vmul.f32 %v1462, %v1491
    %v1530 = vmul.f32 %v1463, %v1491
    %v1531 = vmul.f32 %v1464, %v1491
    %v1532 = vmul.f32 %v1465, %v1491
    %v1533 = vmul.f32 %v1466, %v1491
    %v1534 = vmul.f32 %v1467, %v1491
    %v1535 = vmul.f32 %v1468, %v1491
    %v1536 = vmul.f32 %v1469, %v1491
    %v1537 = vmul.f32 %v1470, %v1491
    %v1538 = vmul.f32 %v1471, %v1491
    %v1539 = vmul.f32 %v1472, %v1491
    %v1540 = vmul.f32 %v1473, %v1491
    %v1541 = vmul.f32 %v1474, %v1491
    %v1542 = vmul.f32 %v1475, %v1491
    %v1543 = vmul.f32 %v1476, %v1491
    %v1544 = vmul.f32 %v1477, %v1491
    %v1545 = vmul.f32 %v1478, %v1491
    %v1546 = vmul.f32 %v1479, %v1491
    %v1547 = vmul.f32 %v1480, %v1491
    %v1548 = vmul.f32 %v1481, %v1491
    %v1549 = vmul.f32 %v1482, %v1491
    %v1550 = vmul.f32 %v1483, %v1491
    %v1551 = vmul.f32 %v1484, %v1491
    %v1552 = vmul.f32 %v1485, %v1491
    %v1553 = vld [vmem:[%s3] sm:$0x1]
    %v1555 = vlaneseq
    %v1556 = vshrl.u32 %v1555, 7
    %v1557 = vsub.s32 0, %v1556
    %v1558 = vrot.slane %v1553, %v1557
    %v1560 = vadd.f32 %v1493, %v1558
    %v1561 = vadd.f32 %v1494, %v1558
    %v1562 = vadd.f32 %v1495, %v1558
    %v1563 = vadd.f32 %v1496, %v1558
    %v1564 = vadd.f32 %v1497, %v1558
    %v1565 = vadd.f32 %v1498, %v1558
    %v1566 = vadd.f32 %v1499, %v1558
    %v1567 = vadd.f32 %v1500, %v1558
    %v1568 = vadd.f32 %v1501, %v1558
    %v1569 = vadd.f32 %v1502, %v1558
    %v1570 = vadd.f32 %v1503, %v1558
    %v1571 = vadd.f32 %v1504, %v1558
    %v1572 = vadd.f32 %v1505, %v1558
    %v1573 = vadd.f32 %v1506, %v1558
    %v1574 = vadd.f32 %v1507, %v1558
    %v1575 = vadd.f32 %v1508, %v1558
    %v1576 = vadd.f32 %v1509, %v1558
    %v1577 = vadd.f32 %v1510, %v1558
    %v1578 = vadd.f32 %v1511, %v1558
    %v1579 = vadd.f32 %v1512, %v1558
    %v1580 = vadd.f32 %v1513, %v1558
    %v1581 = vadd.f32 %v1514, %v1558
    %v1582 = vadd.f32 %v1515, %v1558
    %v1583 = vadd.f32 %v1516, %v1558
    %v1584 = vadd.f32 %v1517, %v1558
    %v1585 = vadd.f32 %v1518, %v1558
    %v1586 = vadd.f32 %v1519, %v1558
    %v1587 = vadd.f32 %v1520, %v1558
    %v1588 = vadd.f32 %v1521, %v1558
    %v1589 = vadd.f32 %v1522, %v1558
    %v1590 = vadd.f32 %v1523, %v1558
    %v1591 = vadd.f32 %v1524, %v1558
    %v1592 = vadd.f32 %v1525, %v1558
    %v1593 = vadd.f32 %v1526, %v1558
    %v1594 = vadd.f32 %v1527, %v1558
    %v1595 = vadd.f32 %v1528, %v1558
    %v1596 = vadd.f32 %v1529, %v1558
    %v1597 = vadd.f32 %v1530, %v1558
    %v1598 = vadd.f32 %v1531, %v1558
    %v1599 = vadd.f32 %v1532, %v1558
    %v1600 = vadd.f32 %v1533, %v1558
    %v1601 = vadd.f32 %v1534, %v1558
    %v1602 = vadd.f32 %v1535, %v1558
    %v1603 = vadd.f32 %v1536, %v1558
    %v1604 = vadd.f32 %v1537, %v1558
    %v1605 = vadd.f32 %v1538, %v1558
    %v1606 = vadd.f32 %v1539, %v1558
    %v1607 = vadd.f32 %v1540, %v1558
    %v1608 = vadd.f32 %v1541, %v1558
    %v1609 = vadd.f32 %v1542, %v1558
    %v1610 = vadd.f32 %v1543, %v1558
    %v1611 = vadd.f32 %v1544, %v1558
    %v1612 = vadd.f32 %v1545, %v1558
    %v1613 = vadd.f32 %v1546, %v1558
    %v1614 = vadd.f32 %v1547, %v1558
    %v1615 = vadd.f32 %v1548, %v1558
    %v1616 = vadd.f32 %v1549, %v1558
    %v1617 = vadd.f32 %v1550, %v1558
    %v1618 = vadd.f32 %v1551, %v1558
    %v1619 = vadd.f32 %v1552, %v1558
    %v1620 = vmax.f32 %v1560, 0.0
    %v1621 = vmax.f32 %v1561, 0.0
    %v1622 = vmax.f32 %v1562, 0.0
    %v1623 = vmax.f32 %v1563, 0.0
    %v1624 = vmax.f32 %v1564, 0.0
    %v1625 = vmax.f32 %v1565, 0.0
    %v1626 = vmax.f32 %v1566, 0.0
    %v1627 = vmax.f32 %v1567, 0.0
    %v1628 = vmax.f32 %v1568, 0.0
    %v1629 = vmax.f32 %v1569, 0.0
    %v1630 = vmax.f32 %v1570, 0.0
    %v1631 = vmax.f32 %v1571, 0.0
    %v1632 = vmax.f32 %v1572, 0.0
    %v1633 = vmax.f32 %v1573, 0.0
    %v1634 = vmax.f32 %v1574, 0.0
    %v1635 = vmax.f32 %v1575, 0.0
    %v1636 = vmax.f32 %v1576, 0.0
    %v1637 = vmax.f32 %v1577, 0.0
    %v1638 = vmax.f32 %v1578, 0.0
    %v1639 = vmax.f32 %v1579, 0.0
    %v1640 = vmax.f32 %v1580, 0.0
    %v1641 = vmax.f32 %v1581, 0.0
    %v1642 = vmax.f32 %v1582, 0.0
    %v1643 = vmax.f32 %v1583, 0.0
    %v1644 = vmax.f32 %v1584, 0.0
    %v1645 = vmax.f32 %v1585, 0.0
    %v1646 = vmax.f32 %v1586, 0.0
    %v1647 = vmax.f32 %v1587, 0.0
    %v1648 = vmax.f32 %v1588, 0.0
    %v1649 = vmax.f32 %v1589, 0.0
    %v1650 = vmax.f32 %v1590, 0.0
    %v1651 = vmax.f32 %v1591, 0.0
    %v1652 = vmax.f32 %v1592, 0.0
    %v1653 = vmax.f32 %v1593, 0.0
    %v1654 = vmax.f32 %v1594, 0.0
    %v1655 = vmax.f32 %v1595, 0.0
    %v1656 = vmax.f32 %v1596, 0.0
    %v1657 = vmax.f32 %v1597, 0.0
    %v1658 = vmax.f32 %v1598, 0.0
    %v1659 = vmax.f32 %v1599, 0.0
    %v1660 = vmax.f32 %v1600, 0.0
    %v1661 = vmax.f32 %v1601, 0.0
    %v1662 = vmax.f32 %v1602, 0.0
    %v1663 = vmax.f32 %v1603, 0.0
    %v1664 = vmax.f32 %v1604, 0.0
    %v1665 = vmax.f32 %v1605, 0.0
    %v1666 = vmax.f32 %v1606, 0.0
    %v1667 = vmax.f32 %v1607, 0.0
    %v1668 = vmax.f32 %v1608, 0.0
    %v1669 = vmax.f32 %v1609, 0.0
    %v1670 = vmax.f32 %v1610, 0.0
    %v1671 = vmax.f32 %v1611, 0.0
    %v1672 = vmax.f32 %v1612, 0.0
    %v1673 = vmax.f32 %v1613, 0.0
    %v1674 = vmax.f32 %v1614, 0.0
    %v1675 = vmax.f32 %v1615, 0.0
    %v1676 = vmax.f32 %v1616, 0.0
    %v1677 = vmax.f32 %v1617, 0.0
    %v1678 = vmax.f32 %v1618, 0.0
    %v1679 = vmax.f32 %v1619, 0.0
    %v1680 = vmax.f32 %v1620, %v1621
    %v1681 = vmax.f32 %v1622, %v1623
    %v1682 = vmax.f32 %v1624, %v1625
    %v1683 = vmax.f32 %v1626, %v1627
    %v1684 = vmax.f32 %v1628, %v1629
    %v1685 = vmax.f32 %v1630, %v1631
    %v1686 = vmax.f32 %v1632, %v1633
    %v1687 = vmax.f32 %v1634, %v1635
    %v1688 = vmax.f32 %v1636, %v1637
    %v1689 = vmax.f32 %v1638, %v1639
    %v1690 = vmax.f32 %v1640, %v1641
    %v1691 = vmax.f32 %v1642, %v1643
    %v1692 = vmax.f32 %v1644, %v1645
    %v1693 = vmax.f32 %v1646, %v1647
    %v1694 = vmax.f32 %v1648, %v1649
    %v1695 = vmax.f32 %v1650, %v1651
    %v1696 = vmax.f32 %v1652, %v1653
    %v1697 = vmax.f32 %v1654, %v1655
    %v1698 = vmax.f32 %v1656, %v1657
    %v1699 = vmax.f32 %v1658, %v1659
    %v1700 = vmax.f32 %v1660, %v1661
    %v1701 = vmax.f32 %v1662, %v1663
    %v1702 = vmax.f32 %v1664, %v1665
    %v1703 = vmax.f32 %v1666, %v1667
    %v1704 = vmax.f32 %v1668, %v1669
    %v1705 = vmax.f32 %v1670, %v1671
    %v1706 = vmax.f32 %v1672, %v1673
    %v1707 = vmax.f32 %v1674, %v1675
    %v1708 = vmax.f32 %v1676, %v1677
    %v1709 = vmax.f32 %v1678, %v1679
    %v1710 = vld [vmem:[%s4] sm:$0xff]
    %v1711 = vld [vmem:[%s4 + $0x8] sm:$0xff]
    %v1712 = vld [vmem:[%s4 + $0x10] sm:$0xff]
    %v1713 = vld [vmem:[%s4 + $0x18] sm:$0xff]
    %s1714 = scalar_lea.vmem %s4, 32
    %v1715 = vld [vmem:[%s1714] sm:$0xff]
    %v1716 = vld [vmem:[%s1714 + $0x8] sm:$0xff]
    %v1717 = vld [vmem:[%s1714 + $0x10] sm:$0xff]
    %v1718 = vld [vmem:[%s1714 + $0x18] sm:$0xff]
    %vm1719 = vcmask 261120
    %v1721 = vsel %vm1719, %v1680, 0
    %v1724 = vsel %vm1719, %v1681, 0
    %v1727 = vsel %vm1719, %v1682, 0
    %v1730 = vsel %vm1719, %v1683, 0
    %v1733 = vsel %vm1719, %v1684, 0
    %v1736 = vsel %vm1719, %v1685, 0
    %v1739 = vsel %vm1719, %v1686, 0
    %v1742 = vsel %vm1719, %v1687, 0
    %v1745 = vsel %vm1719, %v1688, 0
    %v1748 = vsel %vm1719, %v1689, 0
    %v1751 = vsel %vm1719, %v1690, 0
    %v1754 = vsel %vm1719, %v1691, 0
    %v1757 = vsel %vm1719, %v1692, 0
    %v1760 = vsel %vm1719, %v1693, 0
    %v1763 = vsel %vm1719, %v1694, 0
    %v1766 = vsel %vm1719, %v1695, 0
    %v1769 = vsel %vm1719, %v1696, 0
    %v1772 = vsel %vm1719, %v1697, 0
    %v1775 = vsel %vm1719, %v1698, 0
    %v1778 = vsel %vm1719, %v1699, 0
    %v1781 = vsel %vm1719, %v1700, 0
    %v1784 = vsel %vm1719, %v1701, 0
    %v1787 = vsel %vm1719, %v1702, 0
    %v1790 = vsel %vm1719, %v1703, 0
    %v1793 = vsel %vm1719, %v1704, 0
    %v1796 = vsel %vm1719, %v1705, 0
    %v1799 = vsel %vm1719, %v1706, 0
    %v1802 = vsel %vm1719, %v1707, 0
    %v1805 = vsel %vm1719, %v1708, 0
    %v1808 = vsel %vm1719, %v1709, 0
    %1810 = vmatprep.subr.mxu0 0.0
    %1811 = vmatpush1.msra.mxu0 %v1715
    %1812 = vmatprep.subr.mxu0 0.0
    %1813 = vmatpush1.msra.mxu0 %v1716
    %1814 = vmatprep.subr.mxu0 0.0
    %1815 = vmatpush1.msra.mxu0 %v1717
    %1816 = vmatprep.subr.mxu0 0.0
    %1817 = vmatpush1.msra.mxu0 %v1718
    %1818 = vmatprep.subr.mxu0 0.0
    %1819 = vmatpush1.msra.mxu0 0.0
    %1820 = vmatprep.subr.mxu0 0.0
    %1821 = vmatpush1.msra.mxu0 0.0
    %1822 = vmatprep.subr.mxu0 0.0
    %1823 = vmatpush1.msra.mxu0 0.0
    %1824 = vmatprep.subr.mxu0 0.0
    %1825 = vmatpush1.msra.mxu0 0.0
    %1826 = vmatprep.subr.mxu0 0.0
    %1827 = vmatpush1.msra.mxu0 0.0
    %1828 = vmatprep.subr.mxu0 0.0
    %1829 = vmatpush1.msra.mxu0 0.0
    %1830 = vmatprep.subr.mxu0 0.0
    %1831 = vmatpush1.msra.mxu0 0.0
    %1832 = vmatprep.subr.mxu0 0.0
    %1833 = vmatpush1.msra.mxu0 0.0
    %1834 = vmatprep.subr.mxu0 0.0
    %1835 = vmatpush1.msra.mxu0 0.0
    %1836 = vmatprep.subr.mxu0 0.0
    %1837 = vmatpush1.msra.mxu0 0.0
    %1838 = vmatprep.subr.mxu0 0.0
    %1839 = vmatpush1.msra.mxu0 0.0
    %1840 = vmatprep.subr.mxu0 0.0
    %1841 = vmatpush1.msra.mxu0 0.0
    %1842 = vmatprep.subr.mxu0 0.0
    %1843 = vmatpush1.msra.mxu0 0.0
    %1844 = vmatprep.subr.mxu0 0.0
    %1845 = vmatpush1.msra.mxu0 0.0
    %1846 = vmatprep.subr.mxu0 0.0
    %1847 = vmatpush1.msra.mxu0 0.0
    %1848 = vmatprep.subr.mxu0 0.0
    %1849 = vmatpush1.msra.mxu0 0.0
    %1850 = vmatprep.subr.mxu0 0.0
    %1851 = vmatpush1.msra.mxu0 0.0
    %1852 = vmatprep.subr.mxu0 0.0
    %1853 = vmatpush1.msra.mxu0 0.0
    %1854 = vmatprep.subr.mxu0 0.0
    %1855 = vmatpush1.msra.mxu0 0.0
    %1856 = vmatprep.subr.mxu0 0.0
    %1857 = vmatpush1.msra.mxu0 0.0
    %1858 = vmatprep.subr.mxu0 0.0
    %1859 = vmatpush1.msra.mxu0 0.0
    %1860 = vmatprep.subr.mxu0 0.0
    %1861 = vmatpush1.msra.mxu0 0.0
    %1862 = vmatprep.subr.mxu0 0.0
    %1863 = vmatpush1.msra.mxu0 0.0
    %1864 = vmatprep.subr.mxu0 0.0
    %1865 = vmatpush1.msra.mxu0 0.0
    %1866 = vmatprep.subr.mxu0 0.0
    %1867 = vmatpush1.msra.mxu0 0.0
    %1868 = vmatprep.subr.mxu0 0.0
    %1869 = vmatpush1.msra.mxu0 0.0
    %1870 = vmatprep.subr.mxu0 0.0
    %1871 = vmatpush1.msra.mxu0 0.0
    %1872 = vmatprep.subr.mxu0 0.0
    %1873 = vmatpush1.msra.mxu0 0.0
    %1874 = vmatprep.mubr.f32.mxu0 0.0
    %1875 = vmatmul.mubr.f32.gmra.mrb[0].mxu0 %v1721
    %v1876 = vpop.f32.mrb[0].mxu0
    %v1877 = vadd.f32 0.0, %v1876
    %v1878 = vpop.f32.mrb[0].mxu0
    %1879 = vmatprep.mubr.f32.mxu0 0.0
    %1880 = vmatmul.mubr.f32.gmra.mrb[0].mxu0 %v1724
    %v1881 = vpop.f32.mrb[0].mxu0
    %v1882 = vadd.f32 0.0, %v1881
    %v1883 = vpop.f32.mrb[0].mxu0
    %1884 = vmatprep.mubr.f32.mxu0 0.0
    %1885 = vmatmul.mubr.f32.gmra.mrb[0].mxu0 %v1727
    %v1886 = vpop.f32.mrb[0].mxu0
    %v1887 = vadd.f32 0.0, %v1886
    %v1888 = vpop.f32.mrb[0].mxu0
    %1889 = vmatprep.mubr.f32.mxu0 0.0
    %1890 = vmatmul.mubr.f32.gmra.mrb[0].mxu0 %v1730
    %v1891 = vpop.f32.mrb[0].mxu0
    %v1892 = vadd.f32 0.0, %v1891
    %v1893 = vpop.f32.mrb[0].mxu0
    %1894 = vmatprep.mubr.f32.mxu0 0.0
    %1895 = vmatmul.mubr.f32.gmra.mrb[0].mxu0 %v1733
    %v1896 = vpop.f32.mrb[0].mxu0
    %v1897 = vadd.f32 0.0, %v1896
    %v1898 = vpop.f32.mrb[0].mxu0
    %1899 = vmatprep.mubr.f32.mxu0 0.0
    %1900 = vmatmul.mubr.f32.gmra.mrb[0].mxu0 %v1736
    %v1901 = vpop.f32.mrb[0].mxu0
    %v1902 = vadd.f32 0.0, %v1901
    %v1903 = vpop.f32.mrb[0].mxu0
    %1904 = vmatprep.mubr.f32.mxu0 0.0
    %1905 = vmatmul.mubr.f32.gmra.mrb[0].mxu0 %v1739
    %v1906 = vpop.f32.mrb[0].mxu0
    %v1907 = vadd.f32 0.0, %v1906
    %v1908 = vpop.f32.mrb[0].mxu0
    %1909 = vmatprep.mubr.f32.mxu0 0.0
    %1910 = vmatmul.mubr.f32.gmra.mrb[0].mxu0 %v1742
    %v1911 = vpop.f32.mrb[0].mxu0
    %v1912 = vadd.f32 0.0, %v1911
    %v1913 = vpop.f32.mrb[0].mxu0
    %1914 = vmatprep.mubr.f32.mxu0 0.0
    %1915 = vmatmul.mubr.f32.gmra.mrb[0].mxu0 %v1745
    %v1916 = vpop.f32.mrb[0].mxu0
    %v1917 = vadd.f32 0.0, %v1916
    %v1918 = vpop.f32.mrb[0].mxu0
    %1919 = vmatprep.mubr.f32.mxu0 0.0
    %1920 = vmatmul.mubr.f32.gmra.mrb[0].mxu0 %v1748
    %v1921 = vpop.f32.mrb[0].mxu0
    %v1922 = vadd.f32 0.0, %v1921
    %v1923 = vpop.f32.mrb[0].mxu0
    %1924 = vmatprep.mubr.f32.mxu0 0.0
    %1925 = vmatmul.mubr.f32.gmra.mrb[0].mxu0 %v1751
    %v1926 = vpop.f32.mrb[0].mxu0
    %v1927 = vadd.f32 0.0, %v1926
    %v1928 = vpop.f32.mrb[0].mxu0
    %1929 = vmatprep.mubr.f32.mxu0 0.0
    %1930 = vmatmul.mubr.f32.gmra.mrb[0].mxu0 %v1754
    %v1931 = vpop.f32.mrb[0].mxu0
    %v1932 = vadd.f32 0.0, %v1931
    %v1933 = vpop.f32.mrb[0].mxu0
    %1934 = vmatprep.mubr.f32.mxu0 0.0
    %1935 = vmatmul.mubr.f32.gmra.mrb[0].mxu0 %v1757
    %v1936 = vpop.f32.mrb[0].mxu0
    %v1937 = vadd.f32 0.0, %v1936
    %v1938 = vpop.f32.mrb[0].mxu0
    %1939 = vmatprep.mubr.f32.mxu0 0.0
    %1940 = vmatmul.mubr.f32.gmra.mrb[0].mxu0 %v1760
    %v1941 = vpop.f32.mrb[0].mxu0
    %v1942 = vadd.f32 0.0, %v1941
    %v1943 = vpop.f32.mrb[0].mxu0
    %1944 = vmatprep.mubr.f32.mxu0 0.0
    %1945 = vmatmul.mubr.f32.gmra.mrb[0].mxu0 %v1763
    %v1946 = vpop.f32.mrb[0].mxu0
    %v1947 = vadd.f32 0.0, %v1946
    %v1948 = vpop.f32.mrb[0].mxu0
    %1949 = vmatprep.mubr.f32.mxu0 0.0
    %1950 = vmatmul.mubr.f32.gmra.mrb[0].mxu0 %v1766
    %v1951 = vpop.f32.mrb[0].mxu0
    %v1952 = vadd.f32 0.0, %v1951
    %v1953 = vpop.f32.mrb[0].mxu0
    %1954 = vmatprep.mubr.f32.mxu0 0.0
    %1955 = vmatmul.mubr.f32.gmra.mrb[0].mxu0 %v1769
    %v1956 = vpop.f32.mrb[0].mxu0
    %v1957 = vadd.f32 0.0, %v1956
    %v1958 = vpop.f32.mrb[0].mxu0
    %1959 = vmatprep.mubr.f32.mxu0 0.0
    %1960 = vmatmul.mubr.f32.gmra.mrb[0].mxu0 %v1772
    %v1961 = vpop.f32.mrb[0].mxu0
    %v1962 = vadd.f32 0.0, %v1961
    %v1963 = vpop.f32.mrb[0].mxu0
    %1964 = vmatprep.mubr.f32.mxu0 0.0
    %1965 = vmatmul.mubr.f32.gmra.mrb[0].mxu0 %v1775
    %v1966 = vpop.f32.mrb[0].mxu0
    %v1967 = vadd.f32 0.0, %v1966
    %v1968 = vpop.f32.mrb[0].mxu0
    %1969 = vmatprep.mubr.f32.mxu0 0.0
    %1970 = vmatmul.mubr.f32.gmra.mrb[0].mxu0 %v1778
    %v1971 = vpop.f32.mrb[0].mxu0
    %v1972 = vadd.f32 0.0, %v1971
    %v1973 = vpop.f32.mrb[0].mxu0
    %1974 = vmatprep.mubr.f32.mxu0 0.0
    %1975 = vmatmul.mubr.f32.gmra.mrb[0].mxu0 %v1781
    %v1976 = vpop.f32.mrb[0].mxu0
    %v1977 = vadd.f32 0.0, %v1976
    %v1978 = vpop.f32.mrb[0].mxu0
    %1979 = vmatprep.mubr.f32.mxu0 0.0
    %1980 = vmatmul.mubr.f32.gmra.mrb[0].mxu0 %v1784
    %v1981 = vpop.f32.mrb[0].mxu0
    %v1982 = vadd.f32 0.0, %v1981
    %v1983 = vpop.f32.mrb[0].mxu0
    %1984 = vmatprep.mubr.f32.mxu0 0.0
    %1985 = vmatmul.mubr.f32.gmra.mrb[0].mxu0 %v1787
    %v1986 = vpop.f32.mrb[0].mxu0
    %v1987 = vadd.f32 0.0, %v1986
    %v1988 = vpop.f32.mrb[0].mxu0
    %1989 = vmatprep.mubr.f32.mxu0 0.0
    %1990 = vmatmul.mubr.f32.gmra.mrb[0].mxu0 %v1790
    %v1991 = vpop.f32.mrb[0].mxu0
    %v1992 = vadd.f32 0.0, %v1991
    %v1993 = vpop.f32.mrb[0].mxu0
    %1994 = vmatprep.mubr.f32.mxu0 0.0
    %1995 = vmatmul.mubr.f32.gmra.mrb[0].mxu0 %v1793
    %v1996 = vpop.f32.mrb[0].mxu0
    %v1997 = vadd.f32 0.0, %v1996
    %v1998 = vpop.f32.mrb[0].mxu0
    %1999 = vmatprep.mubr.f32.mxu0 0.0
    %2000 = vmatmul.mubr.f32.gmra.mrb[0].mxu0 %v1796
    %v2001 = vpop.f32.mrb[0].mxu0
    %v2002 = vadd.f32 0.0, %v2001
    %v2003 = vpop.f32.mrb[0].mxu0
    %2004 = vmatprep.mubr.f32.mxu0 0.0
    %2005 = vmatmul.mubr.f32.gmra.mrb[0].mxu0 %v1799
    %v2006 = vpop.f32.mrb[0].mxu0
    %v2007 = vadd.f32 0.0, %v2006
    %v2008 = vpop.f32.mrb[0].mxu0
    %2009 = vmatprep.mubr.f32.mxu0 0.0
    %2010 = vmatmul.mubr.f32.gmra.mrb[0].mxu0 %v1802
    %v2011 = vpop.f32.mrb[0].mxu0
    %v2012 = vadd.f32 0.0, %v2011
    %v2013 = vpop.f32.mrb[0].mxu0
    %2014 = vmatprep.mubr.f32.mxu0 0.0
    %2015 = vmatmul.mubr.f32.gmra.mrb[0].mxu0 %v1805
    %v2016 = vpop.f32.mrb[0].mxu0
    %v2017 = vadd.f32 0.0, %v2016
    %v2018 = vpop.f32.mrb[0].mxu0
    %2019 = vmatprep.mubr.f32.mxu0 0.0
    %2020 = vmatmul.mubr.f32.gmra.mrb[0].mxu0 %v1808
    %v2021 = vpop.f32.mrb[0].mxu0
    %v2022 = vadd.f32 0.0, %v2021
    %v2023 = vpop.f32.mrb[0].mxu0
    %2024 = vdwg.mxu0
    %v2025 = vsel %vm1719, 0.0, 0
    %2027 = vmatprep.subr.mxu0 0.0
    %2028 = vmatpush1.msra.mxu0 %v1710
    %2029 = vmatprep.subr.mxu0 0.0
    %2030 = vmatpush1.msra.mxu0 %v1711
    %2031 = vmatprep.subr.mxu0 0.0
    %2032 = vmatpush1.msra.mxu0 %v1712
    %2033 = vmatprep.subr.mxu0 0.0
    %2034 = vmatpush1.msra.mxu0 %v1713
    %2035 = vmatprep.subr.mxu0 0.0
    %2036 = vmatpush1.msra.mxu0 0.0
    %2037 = vmatprep.subr.mxu0 0.0
    %2038 = vmatpush1.msra.mxu0 0.0
    %2039 = vmatprep.subr.mxu0 0.0
    %2040 = vmatpush1.msra.mxu0 0.0
    %2041 = vmatprep.subr.mxu0 0.0
    %2042 = vmatpush1.msra.mxu0 0.0
    %2043 = vmatprep.subr.mxu0 0.0
    %2044 = vmatpush1.msra.mxu0 0.0
    %2045 = vmatprep.subr.mxu0 0.0
    %2046 = vmatpush1.msra.mxu0 0.0
    %2047 = vmatprep.subr.mxu0 0.0
    %2048 = vmatpush1.msra.mxu0 0.0
    %2049 = vmatprep.subr.mxu0 0.0
    %2050 = vmatpush1.msra.mxu0 0.0
    %2051 = vmatprep.subr.mxu0 0.0
    %2052 = vmatpush1.msra.mxu0 0.0
    %2053 = vmatprep.subr.mxu0 0.0
    %2054 = vmatpush1.msra.mxu0 0.0
    %2055 = vmatprep.subr.mxu0 0.0
    %2056 = vmatpush1.msra.mxu0 0.0
    %2057 = vmatprep.subr.mxu0 0.0
    %2058 = vmatpush1.msra.mxu0 0.0
    %2059 = vmatprep.subr.mxu0 0.0
    %2060 = vmatpush1.msra.mxu0 0.0
    %2061 = vmatprep.subr.mxu0 0.0
    %2062 = vmatpush1.msra.mxu0 0.0
    %2063 = vmatprep.subr.mxu0 0.0
    %2064 = vmatpush1.msra.mxu0 0.0
    %2065 = vmatprep.subr.mxu0 0.0
    %2066 = vmatpush1.msra.mxu0 0.0
    %2067 = vmatprep.subr.mxu0 0.0
    %2068 = vmatpush1.msra.mxu0 0.0
    %2069 = vmatprep.subr.mxu0 0.0
    %2070 = vmatpush1.msra.mxu0 0.0
    %2071 = vmatprep.subr.mxu0 0.0
    %2072 = vmatpush1.msra.mxu0 0.0
    %2073 = vmatprep.subr.mxu0 0.0
    %2074 = vmatpush1.msra.mxu0 0.0
    %2075 = vmatprep.subr.mxu0 0.0
    %2076 = vmatpush1.msra.mxu0 0.0
    %2077 = vmatprep.subr.mxu0 0.0
    %2078 = vmatpush1.msra.mxu0 0.0
    %2079 = vmatprep.subr.mxu0 0.0
    %2080 = vmatpush1.msra.mxu0 0.0
    %2081 = vmatprep.subr.mxu0 0.0
    %2082 = vmatpush1.msra.mxu0 0.0
    %2083 = vmatprep.subr.mxu0 0.0
    %2084 = vmatpush1.msra.mxu0 0.0
    %2085 = vmatprep.subr.mxu0 0.0
    %2086 = vmatpush1.msra.mxu0 0.0
    %2087 = vmatprep.subr.mxu0 0.0
    %2088 = vmatpush1.msra.mxu0 0.0
    %2089 = vmatprep.subr.mxu0 0.0
    %2090 = vmatpush1.msra.mxu0 0.0
    %2091 = vmatprep.mubr.f32.mxu0 0.0
    %2092 = vmatmul.mubr.f32.gmra.mrb[0].mxu0 %v2025
    %v2093 = vpop.f32.mrb[0].mxu0
    %v2094 = vadd.f32 %v1877, %v2093
    %v2095 = vpop.f32.mrb[0].mxu0
    %2096 = vmatprep.mubr.f32.mxu0 0.0
    %2097 = vmatmul.mubr.f32.gmra.mrb[0].mxu0 %v1721
    %v2098 = vpop.f32.mrb[0].mxu0
    %v2099 = vadd.f32 %v1882, %v2098
    %v2100 = vpop.f32.mrb[0].mxu0
    %2101 = vmatprep.mubr.f32.mxu0 0.0
    %2102 = vmatmul.mubr.f32.gmra.mrb[0].mxu0 %v1724
    %v2103 = vpop.f32.mrb[0].mxu0
    %v2104 = vadd.f32 %v1887, %v2103
    %v2105 = vpop.f32.mrb[0].mxu0
    %2106 = vmatprep.mubr.f32.mxu0 0.0
    %2107 = vmatmul.mubr.f32.gmra.mrb[0].mxu0 %v1727
    %v2108 = vpop.f32.mrb[0].mxu0
    %v2109 = vadd.f32 %v1892, %v2108
    %v2110 = vpop.f32.mrb[0].mxu0
    %2111 = vmatprep.mubr.f32.mxu0 0.0
    %2112 = vmatmul.mubr.f32.gmra.mrb[0].mxu0 %v1730
    %v2113 = vpop.f32.mrb[0].mxu0
    %v2114 = vadd.f32 %v1897, %v2113
    %v2115 = vpop.f32.mrb[0].mxu0
    %2116 = vmatprep.mubr.f32.mxu0 0.0
    %2117 = vmatmul.mubr.f32.gmra.mrb[0].mxu0 %v1733
    %v2118 = vpop.f32.mrb[0].mxu0
    %v2119 = vadd.f32 %v1902, %v2118
    %v2120 = vpop.f32.mrb[0].mxu0
    %2121 = vmatprep.mubr.f32.mxu0 0.0
    %2122 = vmatmul.mubr.f32.gmra.mrb[0].mxu0 %v1736
    %v2123 = vpop.f32.mrb[0].mxu0
    %v2124 = vadd.f32 %v1907, %v2123
    %v2125 = vpop.f32.mrb[0].mxu0
    %2126 = vmatprep.mubr.f32.mxu0 0.0
    %2127 = vmatmul.mubr.f32.gmra.mrb[0].mxu0 %v1739
    %v2128 = vpop.f32.mrb[0].mxu0
    %v2129 = vadd.f32 %v1912, %v2128
    %v2130 = vpop.f32.mrb[0].mxu0
    %2131 = vmatprep.mubr.f32.mxu0 0.0
    %2132 = vmatmul.mubr.f32.gmra.mrb[0].mxu0 %v1742
    %v2133 = vpop.f32.mrb[0].mxu0
    %v2134 = vadd.f32 %v1917, %v2133
    %v2135 = vpop.f32.mrb[0].mxu0
    %2136 = vmatprep.mubr.f32.mxu0 0.0
    %2137 = vmatmul.mubr.f32.gmra.mrb[0].mxu0 %v1745
    %v2138 = vpop.f32.mrb[0].mxu0
    %v2139 = vadd.f32 %v1922, %v2138
    %v2140 = vpop.f32.mrb[0].mxu0
    %2141 = vmatprep.mubr.f32.mxu0 0.0
    %2142 = vmatmul.mubr.f32.gmra.mrb[0].mxu0 %v1748
    %v2143 = vpop.f32.mrb[0].mxu0
    %v2144 = vadd.f32 %v1927, %v2143
    %v2145 = vpop.f32.mrb[0].mxu0
    %2146 = vmatprep.mubr.f32.mxu0 0.0
    %2147 = vmatmul.mubr.f32.gmra.mrb[0].mxu0 %v1751
    %v2148 = vpop.f32.mrb[0].mxu0
    %v2149 = vadd.f32 %v1932, %v2148
    %v2150 = vpop.f32.mrb[0].mxu0
    %2151 = vmatprep.mubr.f32.mxu0 0.0
    %2152 = vmatmul.mubr.f32.gmra.mrb[0].mxu0 %v1754
    %v2153 = vpop.f32.mrb[0].mxu0
    %v2154 = vadd.f32 %v1937, %v2153
    %v2155 = vpop.f32.mrb[0].mxu0
    %2156 = vmatprep.mubr.f32.mxu0 0.0
    %2157 = vmatmul.mubr.f32.gmra.mrb[0].mxu0 %v1757
    %v2158 = vpop.f32.mrb[0].mxu0
    %v2159 = vadd.f32 %v1942, %v2158
    %v2160 = vpop.f32.mrb[0].mxu0
    %2161 = vmatprep.mubr.f32.mxu0 0.0
    %2162 = vmatmul.mubr.f32.gmra.mrb[0].mxu0 %v1760
    %v2163 = vpop.f32.mrb[0].mxu0
    %v2164 = vadd.f32 %v1947, %v2163
    %v2165 = vpop.f32.mrb[0].mxu0
    %2166 = vmatprep.mubr.f32.mxu0 0.0
    %2167 = vmatmul.mubr.f32.gmra.mrb[0].mxu0 %v1763
    %v2168 = vpop.f32.mrb[0].mxu0
    %v2169 = vadd.f32 %v1952, %v2168
    %v2170 = vpop.f32.mrb[0].mxu0
    %2171 = vmatprep.mubr.f32.mxu0 0.0
    %2172 = vmatmul.mubr.f32.gmra.mrb[0].mxu0 %v1766
    %v2173 = vpop.f32.mrb[0].mxu0
    %v2174 = vadd.f32 %v1957, %v2173
    %v2175 = vpop.f32.mrb[0].mxu0
    %2176 = vmatprep.mubr.f32.mxu0 0.0
    %2177 = vmatmul.mubr.f32.gmra.mrb[0].mxu0 %v1769
    %v2178 = vpop.f32.mrb[0].mxu0
    %v2179 = vadd.f32 %v1962, %v2178
    %v2180 = vpop.f32.mrb[0].mxu0
    %2181 = vmatprep.mubr.f32.mxu0 0.0
    %2182 = vmatmul.mubr.f32.gmra.mrb[0].mxu0 %v1772
    %v2183 = vpop.f32.mrb[0].mxu0
    %v2184 = vadd.f32 %v1967, %v2183
    %v2185 = vpop.f32.mrb[0].mxu0
    %2186 = vmatprep.mubr.f32.mxu0 0.0
    %2187 = vmatmul.mubr.f32.gmra.mrb[0].mxu0 %v1775
    %v2188 = vpop.f32.mrb[0].mxu0
    %v2189 = vadd.f32 %v1972, %v2188
    %v2190 = vpop.f32.mrb[0].mxu0
    %2191 = vmatprep.mubr.f32.mxu0 0.0
    %2192 = vmatmul.mubr.f32.gmra.mrb[0].mxu0 %v1778
    %v2193 = vpop.f32.mrb[0].mxu0
    %v2194 = vadd.f32 %v1977, %v2193
    %v2195 = vpop.f32.mrb[0].mxu0
    %2196 = vmatprep.mubr.f32.mxu0 0.0
    %2197 = vmatmul.mubr.f32.gmra.mrb[0].mxu0 %v1781
    %v2198 = vpop.f32.mrb[0].mxu0
    %v2199 = vadd.f32 %v1982, %v2198
    %v2200 = vpop.f32.mrb[0].mxu0
    %2201 = vmatprep.mubr.f32.mxu0 0.0
    %2202 = vmatmul.mubr.f32.gmra.mrb[0].mxu0 %v1784
    %v2203 = vpop.f32.mrb[0].mxu0
    %v2204 = vadd.f32 %v1987, %v2203
    %v2205 = vpop.f32.mrb[0].mxu0
    %2206 = vmatprep.mubr.f32.mxu0 0.0
    %2207 = vmatmul.mubr.f32.gmra.mrb[0].mxu0 %v1787
    %v2208 = vpop.f32.mrb[0].mxu0
    %v2209 = vadd.f32 %v1992, %v2208
    %v2210 = vpop.f32.mrb[0].mxu0
    %2211 = vmatprep.mubr.f32.mxu0 0.0
    %2212 = vmatmul.mubr.f32.gmra.mrb[0].mxu0 %v1790
    %v2213 = vpop.f32.mrb[0].mxu0
    %v2214 = vadd.f32 %v1997, %v2213
    %v2215 = vpop.f32.mrb[0].mxu0
    %2216 = vmatprep.mubr.f32.mxu0 0.0
    %2217 = vmatmul.mubr.f32.gmra.mrb[0].mxu0 %v1793
    %v2218 = vpop.f32.mrb[0].mxu0
    %v2219 = vadd.f32 %v2002, %v2218
    %v2220 = vpop.f32.mrb[0].mxu0
    %2221 = vmatprep.mubr.f32.mxu0 0.0
    %2222 = vmatmul.mubr.f32.gmra.mrb[0].mxu0 %v1796
    %v2223 = vpop.f32.mrb[0].mxu0
    %v2224 = vadd.f32 %v2007, %v2223
    %v2225 = vpop.f32.mrb[0].mxu0
    %2226 = vmatprep.mubr.f32.mxu0 0.0
    %2227 = vmatmul.mubr.f32.gmra.mrb[0].mxu0 %v1799
    %v2228 = vpop.f32.mrb[0].mxu0
    %v2229 = vadd.f32 %v2012, %v2228
    %v2230 = vpop.f32.mrb[0].mxu0
    %2231 = vmatprep.mubr.f32.mxu0 0.0
    %2232 = vmatmul.mubr.f32.gmra.mrb[0].mxu0 %v1802
    %v2233 = vpop.f32.mrb[0].mxu0
    %v2234 = vadd.f32 %v2017, %v2233
    %v2235 = vpop.f32.mrb[0].mxu0
    %2236 = vmatprep.mubr.f32.mxu0 0.0
    %2237 = vmatmul.mubr.f32.gmra.mrb[0].mxu0 %v1805
    %v2238 = vpop.f32.mrb[0].mxu0
    %v2239 = vadd.f32 %v2022, %v2238
    %v2240 = vpop.f32.mrb[0].mxu0
    %2241 = vdwg.mxu0
    %s2242 = scalar_lea.vmem %s4, 64
    %v2243 = vld [vmem:[%s2242] sm:$0xff]
    %v2244 = vld [vmem:[%s2242 + $0x8] sm:$0xff]
    %v2245 = vld [vmem:[%s2242 + $0x10] sm:$0xff]
    %v2246 = vld [vmem:[%s2242 + $0x18] sm:$0xff]
    %2247 = vmatprep.subr.mxu0 0.0
    %2248 = vmatpush1.msra.mxu0 %v2243
    %2249 = vmatprep.subr.mxu0 0.0
    %2250 = vmatpush1.msra.mxu0 %v2244
    %2251 = vmatprep.subr.mxu0 0.0
    %2252 = vmatpush1.msra.mxu0 %v2245
    %2253 = vmatprep.subr.mxu0 0.0
    %2254 = vmatpush1.msra.mxu0 %v2246
    %2255 = vmatprep.subr.mxu0 0.0
    %2256 = vmatpush1.msra.mxu0 0.0
    %2257 = vmatprep.subr.mxu0 0.0
    %2258 = vmatpush1.msra.mxu0 0.0
    %2259 = vmatprep.subr.mxu0 0.0
    %2260 = vmatpush1.msra.mxu0 0.0
    %2261 = vmatprep.subr.mxu0 0.0
    %2262 = vmatpush1.msra.mxu0 0.0
    %2263 = vmatprep.subr.mxu0 0.0
    %2264 = vmatpush1.msra.mxu0 0.0
    %2265 = vmatprep.subr.mxu0 0.0
    %2266 = vmatpush1.msra.mxu0 0.0
    %2267 = vmatprep.subr.mxu0 0.0
    %2268 = vmatpush1.msra.mxu0 0.0
    %2269 = vmatprep.subr.mxu0 0.0
    %2270 = vmatpush1.msra.mxu0 0.0
    %2271 = vmatprep.subr.mxu0 0.0
    %2272 = vmatpush1.msra.mxu0 0.0
    %2273 = vmatprep.subr.mxu0 0.0
    %2274 = vmatpush1.msra.mxu0 0.0
    %2275 = vmatprep.subr.mxu0 0.0
    %2276 = vmatpush1.msra.mxu0 0.0
    %2277 = vmatprep.subr.mxu0 0.0
    %2278 = vmatpush1.msra.mxu0 0.0
    %2279 = vmatprep.subr.mxu0 0.0
    %2280 = vmatpush1.msra.mxu0 0.0
    %2281 = vmatprep.subr.mxu0 0.0
    %2282 = vmatpush1.msra.mxu0 0.0
    %2283 = vmatprep.subr.mxu0 0.0
    %2284 = vmatpush1.msra.mxu0 0.0
    %2285 = vmatprep.subr.mxu0 0.0
    %2286 = vmatpush1.msra.mxu0 0.0
    %2287 = vmatprep.subr.mxu0 0.0
    %2288 = vmatpush1.msra.mxu0 0.0
    %2289 = vmatprep.subr.mxu0 0.0
    %2290 = vmatpush1.msra.mxu0 0.0
    %2291 = vmatprep.subr.mxu0 0.0
    %2292 = vmatpush1.msra.mxu0 0.0
    %2293 = vmatprep.subr.mxu0 0.0
    %2294 = vmatpush1.msra.mxu0 0.0
    %2295 = vmatprep.subr.mxu0 0.0
    %2296 = vmatpush1.msra.mxu0 0.0
    %2297 = vmatprep.subr.mxu0 0.0
    %2298 = vmatpush1.msra.mxu0 0.0
    %2299 = vmatprep.subr.mxu0 0.0
    %2300 = vmatpush1.msra.mxu0 0.0
    %2301 = vmatprep.subr.mxu0 0.0
    %2302 = vmatpush1.msra.mxu0 0.0
    %2303 = vmatprep.subr.mxu0 0.0
    %2304 = vmatpush1.msra.mxu0 0.0
    %2305 = vmatprep.subr.mxu0 0.0
    %2306 = vmatpush1.msra.mxu0 0.0
    %2307 = vmatprep.subr.mxu0 0.0
    %2308 = vmatpush1.msra.mxu0 0.0
    %2309 = vmatprep.subr.mxu0 0.0
    %2310 = vmatpush1.msra.mxu0 0.0
    %2311 = vmatprep.mubr.f32.mxu0 0.0
    %2312 = vmatmul.mubr.f32.gmra.mrb[0].mxu0 %v1724
    %v2313 = vpop.f32.mrb[0].mxu0
    %v2314 = vadd.f32 0.0, %v2313
    %v2315 = vpop.f32.mrb[0].mxu0
    %2316 = vmatprep.mubr.f32.mxu0 0.0
    %2317 = vmatmul.mubr.f32.gmra.mrb[0].mxu0 %v1727
    %v2318 = vpop.f32.mrb[0].mxu0
    %v2319 = vadd.f32 0.0, %v2318
    %v2320 = vpop.f32.mrb[0].mxu0
    %2321 = vmatprep.mubr.f32.mxu0 0.0
    %2322 = vmatmul.mubr.f32.gmra.mrb[0].mxu0 %v1730
    %v2323 = vpop.f32.mrb[0].mxu0
    %v2324 = vadd.f32 0.0, %v2323
    %v2325 = vpop.f32.mrb[0].mxu0
    %2326 = vmatprep.mubr.f32.mxu0 0.0
    %2327 = vmatmul.mubr.f32.gmra.mrb[0].mxu0 %v1733
    %v2328 = vpop.f32.mrb[0].mxu0
    %v2329 = vadd.f32 0.0, %v2328
    %v2330 = vpop.f32.mrb[0].mxu0
    %2331 = vmatprep.mubr.f32.mxu0 0.0
    %2332 = vmatmul.mubr.f32.gmra.mrb[0].mxu0 %v1736
    %v2333 = vpop.f32.mrb[0].mxu0
    %v2334 = vadd.f32 0.0, %v2333
    %v2335 = vpop.f32.mrb[0].mxu0
    %2336 = vmatprep.mubr.f32.mxu0 0.0
    %2337 = vmatmul.mubr.f32.gmra.mrb[0].mxu0 %v1739
    %v2338 = vpop.f32.mrb[0].mxu0
    %v2339 = vadd.f32 0.0, %v2338
    %v2340 = vpop.f32.mrb[0].mxu0
    %2341 = vmatprep.mubr.f32.mxu0 0.0
    %2342 = vmatmul.mubr.f32.gmra.mrb[0].mxu0 %v1742
    %v2343 = vpop.f32.mrb[0].mxu0
    %v2344 = vadd.f32 0.0, %v2343
    %v2345 = vpop.f32.mrb[0].mxu0
    %2346 = vmatprep.mubr.f32.mxu0 0.0
    %2347 = vmatmul.mubr.f32.gmra.mrb[0].mxu0 %v1745
    %v2348 = vpop.f32.mrb[0].mxu0
    %v2349 = vadd.f32 0.0, %v2348
    %v2350 = vpop.f32.mrb[0].mxu0
    %2351 = vmatprep.mubr.f32.mxu0 0.0
    %2352 = vmatmul.mubr.f32.gmra.mrb[0].mxu0 %v1748
    %v2353 = vpop.f32.mrb[0].mxu0
    %v2354 = vadd.f32 0.0, %v2353
    %v2355 = vpop.f32.mrb[0].mxu0
    %2356 = vmatprep.mubr.f32.mxu0 0.0
    %2357 = vmatmul.mubr.f32.gmra.mrb[0].mxu0 %v1751
    %v2358 = vpop.f32.mrb[0].mxu0
    %v2359 = vadd.f32 0.0, %v2358
    %v2360 = vpop.f32.mrb[0].mxu0
    %2361 = vmatprep.mubr.f32.mxu0 0.0
    %2362 = vmatmul.mubr.f32.gmra.mrb[0].mxu0 %v1754
    %v2363 = vpop.f32.mrb[0].mxu0
    %v2364 = vadd.f32 0.0, %v2363
    %v2365 = vpop.f32.mrb[0].mxu0
    %2366 = vmatprep.mubr.f32.mxu0 0.0
    %2367 = vmatmul.mubr.f32.gmra.mrb[0].mxu0 %v1757
    %v2368 = vpop.f32.mrb[0].mxu0
    %v2369 = vadd.f32 0.0, %v2368
    %v2370 = vpop.f32.mrb[0].mxu0
    %2371 = vmatprep.mubr.f32.mxu0 0.0
    %2372 = vmatmul.mubr.f32.gmra.mrb[0].mxu0 %v1760
    %v2373 = vpop.f32.mrb[0].mxu0
    %v2374 = vadd.f32 0.0, %v2373
    %v2375 = vpop.f32.mrb[0].mxu0
    %2376 = vmatprep.mubr.f32.mxu0 0.0
    %2377 = vmatmul.mubr.f32.gmra.mrb[0].mxu0 %v1763
    %v2378 = vpop.f32.mrb[0].mxu0
    %v2379 = vadd.f32 0.0, %v2378
    %v2380 = vpop.f32.mrb[0].mxu0
    %2381 = vmatprep.mubr.f32.mxu0 0.0
    %2382 = vmatmul.mubr.f32.gmra.mrb[0].mxu0 %v1766
    %v2383 = vpop.f32.mrb[0].mxu0
    %v2384 = vadd.f32 0.0, %v2383
    %v2385 = vpop.f32.mrb[0].mxu0
    %2386 = vmatprep.mubr.f32.mxu0 0.0
    %2387 = vmatmul.mubr.f32.gmra.mrb[0].mxu0 %v1769
    %v2388 = vpop.f32.mrb[0].mxu0
    %v2389 = vadd.f32 0.0, %v2388
    %v2390 = vpop.f32.mrb[0].mxu0
    %2391 = vmatprep.mubr.f32.mxu0 0.0
    %2392 = vmatmul.mubr.f32.gmra.mrb[0].mxu0 %v1772
    %v2393 = vpop.f32.mrb[0].mxu0
    %v2394 = vadd.f32 0.0, %v2393
    %v2395 = vpop.f32.mrb[0].mxu0
    %2396 = vmatprep.mubr.f32.mxu0 0.0
    %2397 = vmatmul.mubr.f32.gmra.mrb[0].mxu0 %v1775
    %v2398 = vpop.f32.mrb[0].mxu0
    %v2399 = vadd.f32 0.0, %v2398
    %v2400 = vpop.f32.mrb[0].mxu0
    %2401 = vmatprep.mubr.f32.mxu0 0.0
    %2402 = vmatmul.mubr.f32.gmra.mrb[0].mxu0 %v1778
    %v2403 = vpop.f32.mrb[0].mxu0
    %v2404 = vadd.f32 0.0, %v2403
    %v2405 = vpop.f32.mrb[0].mxu0
    %2406 = vmatprep.mubr.f32.mxu0 0.0
    %2407 = vmatmul.mubr.f32.gmra.mrb[0].mxu0 %v1781
    %v2408 = vpop.f32.mrb[0].mxu0
    %v2409 = vadd.f32 0.0, %v2408
    %v2410 = vpop.f32.mrb[0].mxu0
    %2411 = vmatprep.mubr.f32.mxu0 0.0
    %2412 = vmatmul.mubr.f32.gmra.mrb[0].mxu0 %v1784
    %v2413 = vpop.f32.mrb[0].mxu0
    %v2414 = vadd.f32 0.0, %v2413
    %v2415 = vpop.f32.mrb[0].mxu0
    %2416 = vmatprep.mubr.f32.mxu0 0.0
    %2417 = vmatmul.mubr.f32.gmra.mrb[0].mxu0 %v1787
    %v2418 = vpop.f32.mrb[0].mxu0
    %v2419 = vadd.f32 0.0, %v2418
    %v2420 = vpop.f32.mrb[0].mxu0
    %2421 = vmatprep.mubr.f32.mxu0 0.0
    %2422 = vmatmul.mubr.f32.gmra.mrb[0].mxu0 %v1790
    %v2423 = vpop.f32.mrb[0].mxu0
    %v2424 = vadd.f32 0.0, %v2423
    %v2425 = vpop.f32.mrb[0].mxu0
    %2426 = vmatprep.mubr.f32.mxu0 0.0
    %2427 = vmatmul.mubr.f32.gmra.mrb[0].mxu0 %v1793
    %v2428 = vpop.f32.mrb[0].mxu0
    %v2429 = vadd.f32 0.0, %v2428
    %v2430 = vpop.f32.mrb[0].mxu0
    %2431 = vmatprep.mubr.f32.mxu0 0.0
    %2432 = vmatmul.mubr.f32.gmra.mrb[0].mxu0 %v1796
    %v2433 = vpop.f32.mrb[0].mxu0
    %v2434 = vadd.f32 0.0, %v2433
    %v2435 = vpop.f32.mrb[0].mxu0
    %2436 = vmatprep.mubr.f32.mxu0 0.0
    %2437 = vmatmul.mubr.f32.gmra.mrb[0].mxu0 %v1799
    %v2438 = vpop.f32.mrb[0].mxu0
    %v2439 = vadd.f32 0.0, %v2438
    %v2440 = vpop.f32.mrb[0].mxu0
    %2441 = vmatprep.mubr.f32.mxu0 0.0
    %2442 = vmatmul.mubr.f32.gmra.mrb[0].mxu0 %v1802
    %v2443 = vpop.f32.mrb[0].mxu0
    %v2444 = vadd.f32 0.0, %v2443
    %v2445 = vpop.f32.mrb[0].mxu0
    %2446 = vmatprep.mubr.f32.mxu0 0.0
    %2447 = vmatmul.mubr.f32.gmra.mrb[0].mxu0 %v1805
    %v2448 = vpop.f32.mrb[0].mxu0
    %v2449 = vadd.f32 0.0, %v2448
    %v2450 = vpop.f32.mrb[0].mxu0
    %2451 = vmatprep.mubr.f32.mxu0 0.0
    %2452 = vmatmul.mubr.f32.gmra.mrb[0].mxu0 %v1808
    %v2453 = vpop.f32.mrb[0].mxu0
    %v2454 = vadd.f32 0.0, %v2453
    %v2455 = vpop.f32.mrb[0].mxu0
    %2456 = vmatprep.mubr.f32.mxu0 0.0
    %2457 = vmatmul.mubr.f32.gmra.mrb[0].mxu0 %v2025
    %v2458 = vpop.f32.mrb[0].mxu0
    %v2459 = vadd.f32 0.0, %v2458
    %v2460 = vpop.f32.mrb[0].mxu0
    %2461 = vdwg.mxu0
    %v2462 = vadd.f32 %v2094, %v2314
    %v2463 = vadd.f32 %v2099, %v2319
    %v2464 = vadd.f32 %v2104, %v2324
    %v2465 = vadd.f32 %v2109, %v2329
    %v2466 = vadd.f32 %v2114, %v2334
    %v2467 = vadd.f32 %v2119, %v2339
    %v2468 = vadd.f32 %v2124, %v2344
    %v2469 = vadd.f32 %v2129, %v2349
    %v2470 = vadd.f32 %v2134, %v2354
    %v2471 = vadd.f32 %v2139, %v2359
    %v2472 = vadd.f32 %v2144, %v2364
    %v2473 = vadd.f32 %v2149, %v2369
    %v2474 = vadd.f32 %v2154, %v2374
    %v2475 = vadd.f32 %v2159, %v2379
    %v2476 = vadd.f32 %v2164, %v2384
    %v2477 = vadd.f32 %v2169, %v2389
    %v2478 = vadd.f32 %v2174, %v2394
    %v2479 = vadd.f32 %v2179, %v2399
    %v2480 = vadd.f32 %v2184, %v2404
    %v2481 = vadd.f32 %v2189, %v2409
    %v2482 = vadd.f32 %v2194, %v2414
    %v2483 = vadd.f32 %v2199, %v2419
    %v2484 = vadd.f32 %v2204, %v2424
    %v2485 = vadd.f32 %v2209, %v2429
    %v2486 = vadd.f32 %v2214, %v2434
    %v2487 = vadd.f32 %v2219, %v2439
    %v2488 = vadd.f32 %v2224, %v2444
    %v2489 = vadd.f32 %v2229, %v2449
    %v2490 = vadd.f32 %v2234, %v2454
    %v2491 = vadd.f32 %v2239, %v2459
    %v2492 = vld [vmem:[%s5] sm:$0x1]
    %v2494 = vlaneseq
    %v2495 = vshrl.u32 %v2494, 7
    %v2496 = vsub.s32 0, %v2495
    %v2497 = vrot.slane %v2492, %v2496
    %v2499 = vmul.f32 %v2462, %v2497
    %v2500 = vmul.f32 %v2463, %v2497
    %v2501 = vmul.f32 %v2464, %v2497
    %v2502 = vmul.f32 %v2465, %v2497
    %v2503 = vmul.f32 %v2466, %v2497
    %v2504 = vmul.f32 %v2467, %v2497
    %v2505 = vmul.f32 %v2468, %v2497
    %v2506 = vmul.f32 %v2469, %v2497
    %v2507 = vmul.f32 %v2470, %v2497
    %v2508 = vmul.f32 %v2471, %v2497
    %v2509 = vmul.f32 %v2472, %v2497
    %v2510 = vmul.f32 %v2473, %v2497
    %v2511 = vmul.f32 %v2474, %v2497
    %v2512 = vmul.f32 %v2475, %v2497
    %v2513 = vmul.f32 %v2476, %v2497
    %v2514 = vmul.f32 %v2477, %v2497
    %v2515 = vmul.f32 %v2478, %v2497
    %v2516 = vmul.f32 %v2479, %v2497
    %v2517 = vmul.f32 %v2480, %v2497
    %v2518 = vmul.f32 %v2481, %v2497
    %v2519 = vmul.f32 %v2482, %v2497
    %v2520 = vmul.f32 %v2483, %v2497
    %v2521 = vmul.f32 %v2484, %v2497
    %v2522 = vmul.f32 %v2485, %v2497
    %v2523 = vmul.f32 %v2486, %v2497
    %v2524 = vmul.f32 %v2487, %v2497
    %v2525 = vmul.f32 %v2488, %v2497
    %v2526 = vmul.f32 %v2489, %v2497
    %v2527 = vmul.f32 %v2490, %v2497
    %v2528 = vmul.f32 %v2491, %v2497
    %v2529 = vld [vmem:[%s6] sm:$0x1]
    %v2531 = vlaneseq
    %v2532 = vshrl.u32 %v2531, 7
    %v2533 = vsub.s32 0, %v2532
    %v2534 = vrot.slane %v2529, %v2533
    %v2536 = vadd.f32 %v2499, %v2534
    %v2537 = vadd.f32 %v2500, %v2534
    %v2538 = vadd.f32 %v2501, %v2534
    %v2539 = vadd.f32 %v2502, %v2534
    %v2540 = vadd.f32 %v2503, %v2534
    %v2541 = vadd.f32 %v2504, %v2534
    %v2542 = vadd.f32 %v2505, %v2534
    %v2543 = vadd.f32 %v2506, %v2534
    %v2544 = vadd.f32 %v2507, %v2534
    %v2545 = vadd.f32 %v2508, %v2534
    %v2546 = vadd.f32 %v2509, %v2534
    %v2547 = vadd.f32 %v2510, %v2534
    %v2548 = vadd.f32 %v2511, %v2534
    %v2549 = vadd.f32 %v2512, %v2534
    %v2550 = vadd.f32 %v2513, %v2534
    %v2551 = vadd.f32 %v2514, %v2534
    %v2552 = vadd.f32 %v2515, %v2534
    %v2553 = vadd.f32 %v2516, %v2534
    %v2554 = vadd.f32 %v2517, %v2534
    %v2555 = vadd.f32 %v2518, %v2534
    %v2556 = vadd.f32 %v2519, %v2534
    %v2557 = vadd.f32 %v2520, %v2534
    %v2558 = vadd.f32 %v2521, %v2534
    %v2559 = vadd.f32 %v2522, %v2534
    %v2560 = vadd.f32 %v2523, %v2534
    %v2561 = vadd.f32 %v2524, %v2534
    %v2562 = vadd.f32 %v2525, %v2534
    %v2563 = vadd.f32 %v2526, %v2534
    %v2564 = vadd.f32 %v2527, %v2534
    %v2565 = vadd.f32 %v2528, %v2534
    %v2566 = vmax.f32 %v2536, 0.0
    %v2567 = vmax.f32 %v2537, 0.0
    %v2568 = vmax.f32 %v2538, 0.0
    %v2569 = vmax.f32 %v2539, 0.0
    %v2570 = vmax.f32 %v2540, 0.0
    %v2571 = vmax.f32 %v2541, 0.0
    %v2572 = vmax.f32 %v2542, 0.0
    %v2573 = vmax.f32 %v2543, 0.0
    %v2574 = vmax.f32 %v2544, 0.0
    %v2575 = vmax.f32 %v2545, 0.0
    %v2576 = vmax.f32 %v2546, 0.0
    %v2577 = vmax.f32 %v2547, 0.0
    %v2578 = vmax.f32 %v2548, 0.0
    %v2579 = vmax.f32 %v2549, 0.0
    %v2580 = vmax.f32 %v2550, 0.0
    %v2581 = vmax.f32 %v2551, 0.0
    %v2582 = vmax.f32 %v2552, 0.0
    %v2583 = vmax.f32 %v2553, 0.0
    %v2584 = vmax.f32 %v2554, 0.0
    %v2585 = vmax.f32 %v2555, 0.0
    %v2586 = vmax.f32 %v2556, 0.0
    %v2587 = vmax.f32 %v2557, 0.0
    %v2588 = vmax.f32 %v2558, 0.0
    %v2589 = vmax.f32 %v2559, 0.0
    %v2590 = vmax.f32 %v2560, 0.0
    %v2591 = vmax.f32 %v2561, 0.0
    %v2592 = vmax.f32 %v2562, 0.0
    %v2593 = vmax.f32 %v2563, 0.0
    %v2594 = vmax.f32 %v2564, 0.0
    %v2595 = vmax.f32 %v2565, 0.0
    %v2596 = vmax.f32 %v2566, %v2567
    %v2597 = vmax.f32 %v2568, %v2569
    %v2598 = vmax.f32 %v2570, %v2571
    %v2599 = vmax.f32 %v2572, %v2573
    %v2600 = vmax.f32 %v2574, %v2575
    %v2601 = vmax.f32 %v2576, %v2577
    %v2602 = vmax.f32 %v2578, %v2579
    %v2603 = vmax.f32 %v2580, %v2581
    %v2604 = vmax.f32 %v2582, %v2583
    %v2605 = vmax.f32 %v2584, %v2585
    %v2606 = vmax.f32 %v2586, %v2587
    %v2607 = vmax.f32 %v2588, %v2589
    %v2608 = vmax.f32 %v2590, %v2591
    %v2609 = vmax.f32 %v2592, %v2593
    %v2610 = vmax.f32 %v2594, %v2595
    %v2611 = vld [vmem:[#allocation3] sm:$0xff]
    %v2612 = vld [vmem:[#allocation3 + $0x8] sm:$0xff]
    %v2613 = vld [vmem:[#allocation3 + $0x10] sm:$0xff]
    %v2614 = vld [vmem:[#allocation3 + $0x18] sm:$0xff]
    %v2615 = vld [vmem:[#allocation3 + $0x20] sm:$0xff]
    %v2616 = vld [vmem:[#allocation3 + $0x28] sm:$0xff]
    %v2617 = vld [vmem:[#allocation3 + $0x30] sm:$0xff]
    %v2618 = vld [vmem:[#allocation3 + $0x38] sm:$0xff]
    %v2619 = vld [vmem:[#allocation3 + $0x40] sm:$0xff]
    %v2620 = vld [vmem:[#allocation3 + $0x48] sm:$0xff]
    %v2621 = vld [vmem:[#allocation3 + $0x50] sm:$0xff]
    %v2622 = vld [vmem:[#allocation3 + $0x58] sm:$0xff]
    %v2623 = vld [vmem:[#allocation3 + $0x60] sm:$0xff]
    %v2624 = vld [vmem:[#allocation3 + $0x68] sm:$0xff]
    %v2625 = vld [vmem:[#allocation3 + $0x70] sm:$0xff]
    %v2626 = vld [vmem:[#allocation3 + $0x78] sm:$0xff]
    %s2627 = scalar_lea.vmem [#allocation3], 128
    %v2628 = vld [vmem:[%s2627] sm:$0xff]
    %v2629 = vld [vmem:[%s2627 + $0x8] sm:$0xff]
    %v2630 = vld [vmem:[%s2627 + $0x10] sm:$0xff]
    %v2631 = vld [vmem:[%s2627 + $0x18] sm:$0xff]
    %v2632 = vld [vmem:[%s2627 + $0x20] sm:$0xff]
    %v2633 = vld [vmem:[%s2627 + $0x28] sm:$0xff]
    %v2634 = vld [vmem:[%s2627 + $0x30] sm:$0xff]
    %v2635 = vld [vmem:[%s2627 + $0x38] sm:$0xff]
    %v2636 = vld [vmem:[%s2627 + $0x40] sm:$0xff]
    %v2637 = vld [vmem:[%s2627 + $0x48] sm:$0xff]
    %v2638 = vld [vmem:[%s2627 + $0x50] sm:$0xff]
    %v2639 = vld [vmem:[%s2627 + $0x58] sm:$0xff]
    %v2640 = vld [vmem:[%s2627 + $0x60] sm:$0xff]
    %v2641 = vld [vmem:[%s2627 + $0x68] sm:$0xff]
    %v2642 = vld [vmem:[%s2627 + $0x70] sm:$0xff]
    %v2643 = vld [vmem:[%s2627 + $0x78] sm:$0xff]
    %vm2644 = vcmask 523264
    %v2646 = vsel %vm2644, %v2597, 0
    %2648 = vmatprep.subr.mxu0 %v2629
    %2649 = vmatpush1.msra.mxu0 %v2628
    %2650 = vmatprep.subr.mxu0 %v2631
    %2651 = vmatpush1.msra.mxu0 %v2630
    %2652 = vmatprep.subr.mxu0 %v2633
    %2653 = vmatpush1.msra.mxu0 %v2632
    %2654 = vmatprep.subr.mxu0 %v2635
    %2655 = vmatpush1.msra.mxu0 %v2634
    %2656 = vmatprep.subr.mxu0 %v2637
    %2657 = vmatpush1.msra.mxu0 %v2636
    %2658 = vmatprep.subr.mxu0 %v2639
    %2659 = vmatpush1.msra.mxu0 %v2638
    %2660 = vmatprep.subr.mxu0 %v2641
    %2661 = vmatpush1.msra.mxu0 %v2640
    %2662 = vmatprep.subr.mxu0 %v2643
    %2663 = vmatpush1.msra.mxu0 %v2642
    %2664 = vmatprep.subr.mxu0 0.0
    %2665 = vmatpush1.msra.mxu0 0.0
    %2666 = vmatprep.subr.mxu0 0.0
    %2667 = vmatpush1.msra.mxu0 0.0
    %2668 = vmatprep.subr.mxu0 0.0
    %2669 = vmatpush1.msra.mxu0 0.0
    %2670 = vmatprep.subr.mxu0 0.0
    %2671 = vmatpush1.msra.mxu0 0.0
    %2672 = vmatprep.subr.mxu0 0.0
    %2673 = vmatpush1.msra.mxu0 0.0
    %2674 = vmatprep.subr.mxu0 0.0
    %2675 = vmatpush1.msra.mxu0 0.0
    %2676 = vmatprep.subr.mxu0 0.0
    %2677 = vmatpush1.msra.mxu0 0.0
    %2678 = vmatprep.subr.mxu0 0.0
    %2679 = vmatpush1.msra.mxu0 0.0
    %2680 = vmatprep.subr.mxu0 0.0
    %2681 = vmatpush1.msra.mxu0 0.0
    %2682 = vmatprep.subr.mxu0 0.0
    %2683 = vmatpush1.msra.mxu0 0.0
    %2684 = vmatprep.subr.mxu0 0.0
    %2685 = vmatpush1.msra.mxu0 0.0
    %2686 = vmatprep.subr.mxu0 0.0
    %2687 = vmatpush1.msra.mxu0 0.0
    %2688 = vmatprep.subr.mxu0 0.0
    %2689 = vmatpush1.msra.mxu0 0.0
    %2690 = vmatprep.subr.mxu0 0.0
    %2691 = vmatpush1.msra.mxu0 0.0
    %2692 = vmatprep.subr.mxu0 0.0
    %2693 = vmatpush1.msra.mxu0 0.0
    %2694 = vmatprep.subr.mxu0 0.0
    %2695 = vmatpush1.msra.mxu0 0.0
    %2696 = vmatprep.subr.mxu0 0.0
    %2697 = vmatpush1.msra.mxu0 0.0
    %2698 = vmatprep.subr.mxu0 0.0
    %2699 = vmatpush1.msra.mxu0 0.0
    %2700 = vmatprep.subr.mxu0 0.0
    %2701 = vmatpush1.msra.mxu0 0.0
    %2702 = vmatprep.subr.mxu0 0.0
    %2703 = vmatpush1.msra.mxu0 0.0
    %2704 = vmatprep.subr.mxu0 0.0
    %2705 = vmatpush1.msra.mxu0 0.0
    %2706 = vmatprep.subr.mxu0 0.0
    %2707 = vmatpush1.msra.mxu0 0.0
    %2708 = vmatprep.subr.mxu0 0.0
    %2709 = vmatpush1.msra.mxu0 0.0
    %2710 = vmatprep.subr.mxu0 0.0
    %2711 = vmatpush1.msra.mxu0 0.0
    %2712 = vmatprep.mubr.f32.mxu0 0.0
    %2713 = vmatmul.mubr.f32.gmra.mrb[0].mxu0 %v2646
    %v2714 = vpop.f32.mrb[0].mxu0
    %v2715 = vadd.f32 0.0, %v2714
    %v2716 = vpop.f32.mrb[0].mxu0
    %v2717 = vadd.f32 0.0, %v2716
    %2718 = vdwg.mxu0
    %v2720 = vsel %vm2644, %v2596, 0
    %2722 = vmatprep.subr.mxu0 %v2612
    %2723 = vmatpush1.msra.mxu0 %v2611
    %2724 = vmatprep.subr.mxu0 %v2614
    %2725 = vmatpush1.msra.mxu0 %v2613
    %2726 = vmatprep.subr.mxu0 %v2616
    %2727 = vmatpush1.msra.mxu0 %v2615
    %2728 = vmatprep.subr.mxu0 %v2618
    %2729 = vmatpush1.msra.mxu0 %v2617
    %2730 = vmatprep.subr.mxu0 %v2620
    %2731 = vmatpush1.msra.mxu0 %v2619
    %2732 = vmatprep.subr.mxu0 %v2622
    %2733 = vmatpush1.msra.mxu0 %v2621
    %2734 = vmatprep.subr.mxu0 %v2624
    %2735 = vmatpush1.msra.mxu0 %v2623
    %2736 = vmatprep.subr.mxu0 %v2626
    %2737 = vmatpush1.msra.mxu0 %v2625
    %2738 = vmatprep.subr.mxu0 0.0
    %2739 = vmatpush1.msra.mxu0 0.0
    %2740 = vmatprep.subr.mxu0 0.0
    %2741 = vmatpush1.msra.mxu0 0.0
    %2742 = vmatprep.subr.mxu0 0.0
    %2743 = vmatpush1.msra.mxu0 0.0
    %2744 = vmatprep.subr.mxu0 0.0
    %2745 = vmatpush1.msra.mxu0 0.0
    %2746 = vmatprep.subr.mxu0 0.0
    %2747 = vmatpush1.msra.mxu0 0.0
    %2748 = vmatprep.subr.mxu0 0.0
    %2749 = vmatpush1.msra.mxu0 0.0
    %2750 = vmatprep.subr.mxu0 0.0
    %2751 = vmatpush1.msra.mxu0 0.0
    %2752 = vmatprep.subr.mxu0 0.0
    %2753 = vmatpush1.msra.mxu0 0.0
    %2754 = vmatprep.subr.mxu0 0.0
    %2755 = vmatpush1.msra.mxu0 0.0
    %2756 = vmatprep.subr.mxu0 0.0
    %2757 = vmatpush1.msra.mxu0 0.0
    %2758 = vmatprep.subr.mxu0 0.0
    %2759 = vmatpush1.msra.mxu0 0.0
    %2760 = vmatprep.subr.mxu0 0.0
    %2761 = vmatpush1.msra.mxu0 0.0
    %2762 = vmatprep.subr.mxu0 0.0
    %2763 = vmatpush1.msra.mxu0 0.0
    %2764 = vmatprep.subr.mxu0 0.0
    %2765 = vmatpush1.msra.mxu0 0.0
    %2766 = vmatprep.subr.mxu0 0.0
    %2767 = vmatpush1.msra.mxu0 0.0
    %2768 = vmatprep.subr.mxu0 0.0
    %2769 = vmatpush1.msra.mxu0 0.0
    %2770 = vmatprep.subr.mxu0 0.0
    %2771 = vmatpush1.msra.mxu0 0.0
    %2772 = vmatprep.subr.mxu0 0.0
    %2773 = vmatpush1.msra.mxu0 0.0
    %2774 = vmatprep.subr.mxu0 0.0
    %2775 = vmatpush1.msra.mxu0 0.0
    %2776 = vmatprep.subr.mxu0 0.0
    %2777 = vmatpush1.msra.mxu0 0.0
    %2778 = vmatprep.subr.mxu0 0.0
    %2779 = vmatpush1.msra.mxu0 0.0
    %2780 = vmatprep.subr.mxu0 0.0
    %2781 = vmatpush1.msra.mxu0 0.0
    %2782 = vmatprep.subr.mxu0 0.0
    %2783 = vmatpush1.msra.mxu0 0.0
    %2784 = vmatprep.subr.mxu0 0.0
    %2785 = vmatpush1.msra.mxu0 0.0
    %2786 = vmatprep.mubr.f32.mxu0 0.0
    %2787 = vmatmul.mubr.f32.gmra.mrb[0].mxu0 %v2720
    %v2788 = vpop.f32.mrb[0].mxu0
    %v2789 = vadd.f32 %v2715, %v2788
    %v2790 = vpop.f32.mrb[0].mxu0
    %v2791 = vadd.f32 %v2717, %v2790
    %2792 = vdwg.mxu0
    %s2793 = scalar_lea.vmem [#allocation3], 256
    %v2794 = vld [vmem:[%s2793] sm:$0xff]
    %v2795 = vld [vmem:[%s2793 + $0x8] sm:$0xff]
    %v2796 = vld [vmem:[%s2793 + $0x10] sm:$0xff]
    %v2797 = vld [vmem:[%s2793 + $0x18] sm:$0xff]
    %v2798 = vld [vmem:[%s2793 + $0x20] sm:$0xff]
    %v2799 = vld [vmem:[%s2793 + $0x28] sm:$0xff]
    %v2800 = vld [vmem:[%s2793 + $0x30] sm:$0xff]
    %v2801 = vld [vmem:[%s2793 + $0x38] sm:$0xff]
    %v2802 = vld [vmem:[%s2793 + $0x40] sm:$0xff]
    %v2803 = vld [vmem:[%s2793 + $0x48] sm:$0xff]
    %v2804 = vld [vmem:[%s2793 + $0x50] sm:$0xff]
    %v2805 = vld [vmem:[%s2793 + $0x58] sm:$0xff]
    %v2806 = vld [vmem:[%s2793 + $0x60] sm:$0xff]
    %v2807 = vld [vmem:[%s2793 + $0x68] sm:$0xff]
    %v2808 = vld [vmem:[%s2793 + $0x70] sm:$0xff]
    %v2809 = vld [vmem:[%s2793 + $0x78] sm:$0xff]
    %v2811 = vsel %vm2644, %v2598, 0
    %2813 = vmatprep.subr.mxu0 %v2795
    %2814 = vmatpush1.msra.mxu0 %v2794
    %2815 = vmatprep.subr.mxu0 %v2797
    %2816 = vmatpush1.msra.mxu0 %v2796
    %2817 = vmatprep.subr.mxu0 %v2799
    %2818 = vmatpush1.msra.mxu0 %v2798
    %2819 = vmatprep.subr.mxu0 %v2801
    %2820 = vmatpush1.msra.mxu0 %v2800
    %2821 = vmatprep.subr.mxu0 %v2803
    %2822 = vmatpush1.msra.mxu0 %v2802
    %2823 = vmatprep.subr.mxu0 %v2805
    %2824 = vmatpush1.msra.mxu0 %v2804
    %2825 = vmatprep.subr.mxu0 %v2807
    %2826 = vmatpush1.msra.mxu0 %v2806
    %2827 = vmatprep.subr.mxu0 %v2809
    %2828 = vmatpush1.msra.mxu0 %v2808
    %2829 = vmatprep.subr.mxu0 0.0
    %2830 = vmatpush1.msra.mxu0 0.0
    %2831 = vmatprep.subr.mxu0 0.0
    %2832 = vmatpush1.msra.mxu0 0.0
    %2833 = vmatprep.subr.mxu0 0.0
    %2834 = vmatpush1.msra.mxu0 0.0
    %2835 = vmatprep.subr.mxu0 0.0
    %2836 = vmatpush1.msra.mxu0 0.0
    %2837 = vmatprep.subr.mxu0 0.0
    %2838 = vmatpush1.msra.mxu0 0.0
    %2839 = vmatprep.subr.mxu0 0.0
    %2840 = vmatpush1.msra.mxu0 0.0
    %2841 = vmatprep.subr.mxu0 0.0
    %2842 = vmatpush1.msra.mxu0 0.0
    %2843 = vmatprep.subr.mxu0 0.0
    %2844 = vmatpush1.msra.mxu0 0.0
    %2845 = vmatprep.subr.mxu0 0.0
    %2846 = vmatpush1.msra.mxu0 0.0
    %2847 = vmatprep.subr.mxu0 0.0
    %2848 = vmatpush1.msra.mxu0 0.0
    %2849 = vmatprep.subr.mxu0 0.0
    %2850 = vmatpush1.msra.mxu0 0.0
    %2851 = vmatprep.subr.mxu0 0.0
    %2852 = vmatpush1.msra.mxu0 0.0
    %2853 = vmatprep.subr.mxu0 0.0
    %2854 = vmatpush1.msra.mxu0 0.0
    %2855 = vmatprep.subr.mxu0 0.0
    %2856 = vmatpush1.msra.mxu0 0.0
    %2857 = vmatprep.subr.mxu0 0.0
    %2858 = vmatpush1.msra.mxu0 0.0
    %2859 = vmatprep.subr.mxu0 0.0
    %2860 = vmatpush1.msra.mxu0 0.0
    %2861 = vmatprep.subr.mxu0 0.0
    %2862 = vmatpush1.msra.mxu0 0.0
    %2863 = vmatprep.subr.mxu0 0.0
    %2864 = vmatpush1.msra.mxu0 0.0
    %2865 = vmatprep.subr.mxu0 0.0
    %2866 = vmatpush1.msra.mxu0 0.0
    %2867 = vmatprep.subr.mxu0 0.0
    %2868 = vmatpush1.msra.mxu0 0.0
    %2869 = vmatprep.subr.mxu0 0.0
    %2870 = vmatpush1.msra.mxu0 0.0
    %2871 = vmatprep.subr.mxu0 0.0
    %2872 = vmatpush1.msra.mxu0 0.0
    %2873 = vmatprep.subr.mxu0 0.0
    %2874 = vmatpush1.msra.mxu0 0.0
    %2875 = vmatprep.subr.mxu0 0.0
    %2876 = vmatpush1.msra.mxu0 0.0
    %2877 = vmatprep.mubr.f32.mxu0 0.0
    %2878 = vmatmul.mubr.f32.gmra.mrb[0].mxu0 %v2811
    %v2879 = vpop.f32.mrb[0].mxu0
    %v2880 = vadd.f32 0.0, %v2879
    %v2881 = vpop.f32.mrb[0].mxu0
    %v2882 = vadd.f32 0.0, %v2881
    %2883 = vdwg.mxu0
    %v2884 = vadd.f32 %v2789, %v2880
    %v2885 = vadd.f32 %v2791, %v2882
    %s2886 = scalar_lea.vmem [#allocation3], 384
    %v2887 = vld [vmem:[%s2886] sm:$0xff]
    %v2888 = vld [vmem:[%s2886 + $0x8] sm:$0xff]
    %v2889 = vld [vmem:[%s2886 + $0x10] sm:$0xff]
    %v2890 = vld [vmem:[%s2886 + $0x18] sm:$0xff]
    %v2891 = vld [vmem:[%s2886 + $0x20] sm:$0xff]
    %v2892 = vld [vmem:[%s2886 + $0x28] sm:$0xff]
    %v2893 = vld [vmem:[%s2886 + $0x30] sm:$0xff]
    %v2894 = vld [vmem:[%s2886 + $0x38] sm:$0xff]
    %v2895 = vld [vmem:[%s2886 + $0x40] sm:$0xff]
    %v2896 = vld [vmem:[%s2886 + $0x48] sm:$0xff]
    %v2897 = vld [vmem:[%s2886 + $0x50] sm:$0xff]
    %v2898 = vld [vmem:[%s2886 + $0x58] sm:$0xff]
    %v2899 = vld [vmem:[%s2886 + $0x60] sm:$0xff]
    %v2900 = vld [vmem:[%s2886 + $0x68] sm:$0xff]
    %v2901 = vld [vmem:[%s2886 + $0x70] sm:$0xff]
    %v2902 = vld [vmem:[%s2886 + $0x78] sm:$0xff]
    %v2904 = vsel %vm2644, %v2599, 0
    %2906 = vmatprep.subr.mxu0 %v2888
    %2907 = vmatpush1.msra.mxu0 %v2887
    %2908 = vmatprep.subr.mxu0 %v2890
    %2909 = vmatpush1.msra.mxu0 %v2889
    %2910 = vmatprep.subr.mxu0 %v2892
    %2911 = vmatpush1.msra.mxu0 %v2891
    %2912 = vmatprep.subr.mxu0 %v2894
    %2913 = vmatpush1.msra.mxu0 %v2893
    %2914 = vmatprep.subr.mxu0 %v2896
    %2915 = vmatpush1.msra.mxu0 %v2895
    %2916 = vmatprep.subr.mxu0 %v2898
    %2917 = vmatpush1.msra.mxu0 %v2897
    %2918 = vmatprep.subr.mxu0 %v2900
    %2919 = vmatpush1.msra.mxu0 %v2899
    %2920 = vmatprep.subr.mxu0 %v2902
    %2921 = vmatpush1.msra.mxu0 %v2901
    %2922 = vmatprep.subr.mxu0 0.0
    %2923 = vmatpush1.msra.mxu0 0.0
    %2924 = vmatprep.subr.mxu0 0.0
    %2925 = vmatpush1.msra.mxu0 0.0
    %2926 = vmatprep.subr.mxu0 0.0
    %2927 = vmatpush1.msra.mxu0 0.0
    %2928 = vmatprep.subr.mxu0 0.0
    %2929 = vmatpush1.msra.mxu0 0.0
    %2930 = vmatprep.subr.mxu0 0.0
    %2931 = vmatpush1.msra.mxu0 0.0
    %2932 = vmatprep.subr.mxu0 0.0
    %2933 = vmatpush1.msra.mxu0 0.0
    %2934 = vmatprep.subr.mxu0 0.0
    %2935 = vmatpush1.msra.mxu0 0.0
    %2936 = vmatprep.subr.mxu0 0.0
    %2937 = vmatpush1.msra.mxu0 0.0
    %2938 = vmatprep.subr.mxu0 0.0
    %2939 = vmatpush1.msra.mxu0 0.0
    %2940 = vmatprep.subr.mxu0 0.0
    %2941 = vmatpush1.msra.mxu0 0.0
    %2942 = vmatprep.subr.mxu0 0.0
    %2943 = vmatpush1.msra.mxu0 0.0
    %2944 = vmatprep.subr.mxu0 0.0
    %2945 = vmatpush1.msra.mxu0 0.0
    %2946 = vmatprep.subr.mxu0 0.0
    %2947 = vmatpush1.msra.mxu0 0.0
    %2948 = vmatprep.subr.mxu0 0.0
    %2949 = vmatpush1.msra.mxu0 0.0
    %2950 = vmatprep.subr.mxu0 0.0
    %2951 = vmatpush1.msra.mxu0 0.0
    %2952 = vmatprep.subr.mxu0 0.0
    %2953 = vmatpush1.msra.mxu0 0.0
    %2954 = vmatprep.subr.mxu0 0.0
    %2955 = vmatpush1.msra.mxu0 0.0
    %2956 = vmatprep.subr.mxu0 0.0
    %2957 = vmatpush1.msra.mxu0 0.0
    %2958 = vmatprep.subr.mxu0 0.0
    %2959 = vmatpush1.msra.mxu0 0.0
    %2960 = vmatprep.subr.mxu0 0.0
    %2961 = vmatpush1.msra.mxu0 0.0
    %2962 = vmatprep.subr.mxu0 0.0
    %2963 = vmatpush1.msra.mxu0 0.0
    %2964 = vmatprep.subr.mxu0 0.0
    %2965 = vmatpush1.msra.mxu0 0.0
    %2966 = vmatprep.subr.mxu0 0.0
    %2967 = vmatpush1.msra.mxu0 0.0
    %2968 = vmatprep.subr.mxu0 0.0
    %2969 = vmatpush1.msra.mxu0 0.0
    %2970 = vmatprep.mubr.f32.mxu0 0.0
    %2971 = vmatmul.mubr.f32.gmra.mrb[0].mxu0 %v2904
    %v2972 = vpop.f32.mrb[0].mxu0
    %v2973 = vadd.f32 0.0, %v2972
    %v2974 = vpop.f32.mrb[0].mxu0
    %v2975 = vadd.f32 0.0, %v2974
    %2976 = vdwg.mxu0
    %v2977 = vadd.f32 %v2884, %v2973
    %v2978 = vadd.f32 %v2885, %v2975
    %s2979 = scalar_lea.vmem [#allocation3], 512
    %v2980 = vld [vmem:[%s2979] sm:$0xff]
    %v2981 = vld [vmem:[%s2979 + $0x8] sm:$0xff]
    %v2982 = vld [vmem:[%s2979 + $0x10] sm:$0xff]
    %v2983 = vld [vmem:[%s2979 + $0x18] sm:$0xff]
    %v2984 = vld [vmem:[%s2979 + $0x20] sm:$0xff]
    %v2985 = vld [vmem:[%s2979 + $0x28] sm:$0xff]
    %v2986 = vld [vmem:[%s2979 + $0x30] sm:$0xff]
    %v2987 = vld [vmem:[%s2979 + $0x38] sm:$0xff]
    %v2988 = vld [vmem:[%s2979 + $0x40] sm:$0xff]
    %v2989 = vld [vmem:[%s2979 + $0x48] sm:$0xff]
    %v2990 = vld [vmem:[%s2979 + $0x50] sm:$0xff]
    %v2991 = vld [vmem:[%s2979 + $0x58] sm:$0xff]
    %v2992 = vld [vmem:[%s2979 + $0x60] sm:$0xff]
    %v2993 = vld [vmem:[%s2979 + $0x68] sm:$0xff]
    %v2994 = vld [vmem:[%s2979 + $0x70] sm:$0xff]
    %v2995 = vld [vmem:[%s2979 + $0x78] sm:$0xff]
    %v2997 = vsel %vm2644, %v2600, 0
    %2999 = vmatprep.subr.mxu0 %v2981
    %3000 = vmatpush1.msra.mxu0 %v2980
    %3001 = vmatprep.subr.mxu0 %v2983
    %3002 = vmatpush1.msra.mxu0 %v2982
    %3003 = vmatprep.subr.mxu0 %v2985
    %3004 = vmatpush1.msra.mxu0 %v2984
    %3005 = vmatprep.subr.mxu0 %v2987
    %3006 = vmatpush1.msra.mxu0 %v2986
    %3007 = vmatprep.subr.mxu0 %v2989
    %3008 = vmatpush1.msra.mxu0 %v2988
    %3009 = vmatprep.subr.mxu0 %v2991
    %3010 = vmatpush1.msra.mxu0 %v2990
    %3011 = vmatprep.subr.mxu0 %v2993
    %3012 = vmatpush1.msra.mxu0 %v2992
    %3013 = vmatprep.subr.mxu0 %v2995
    %3014 = vmatpush1.msra.mxu0 %v2994
    %3015 = vmatprep.subr.mxu0 0.0
    %3016 = vmatpush1.msra.mxu0 0.0
    %3017 = vmatprep.subr.mxu0 0.0
    %3018 = vmatpush1.msra.mxu0 0.0
    %3019 = vmatprep.subr.mxu0 0.0
    %3020 = vmatpush1.msra.mxu0 0.0
    %3021 = vmatprep.subr.mxu0 0.0
    %3022 = vmatpush1.msra.mxu0 0.0
    %3023 = vmatprep.subr.mxu0 0.0
    %3024 = vmatpush1.msra.mxu0 0.0
    %3025 = vmatprep.subr.mxu0 0.0
    %3026 = vmatpush1.msra.mxu0 0.0
    %3027 = vmatprep.subr.mxu0 0.0
    %3028 = vmatpush1.msra.mxu0 0.0
    %3029 = vmatprep.subr.mxu0 0.0
    %3030 = vmatpush1.msra.mxu0 0.0
    %3031 = vmatprep.subr.mxu0 0.0
    %3032 = vmatpush1.msra.mxu0 0.0
    %3033 = vmatprep.subr.mxu0 0.0
    %3034 = vmatpush1.msra.mxu0 0.0
    %3035 = vmatprep.subr.mxu0 0.0
    %3036 = vmatpush1.msra.mxu0 0.0
    %3037 = vmatprep.subr.mxu0 0.0
    %3038 = vmatpush1.msra.mxu0 0.0
    %3039 = vmatprep.subr.mxu0 0.0
    %3040 = vmatpush1.msra.mxu0 0.0
    %3041 = vmatprep.subr.mxu0 0.0
    %3042 = vmatpush1.msra.mxu0 0.0
    %3043 = vmatprep.subr.mxu0 0.0
    %3044 = vmatpush1.msra.mxu0 0.0
    %3045 = vmatprep.subr.mxu0 0.0
    %3046 = vmatpush1.msra.mxu0 0.0
    %3047 = vmatprep.subr.mxu0 0.0
    %3048 = vmatpush1.msra.mxu0 0.0
    %3049 = vmatprep.subr.mxu0 0.0
    %3050 = vmatpush1.msra.mxu0 0.0
    %3051 = vmatprep.subr.mxu0 0.0
    %3052 = vmatpush1.msra.mxu0 0.0
    %3053 = vmatprep.subr.mxu0 0.0
    %3054 = vmatpush1.msra.mxu0 0.0
    %3055 = vmatprep.subr.mxu0 0.0
    %3056 = vmatpush1.msra.mxu0 0.0
    %3057 = vmatprep.subr.mxu0 0.0
    %3058 = vmatpush1.msra.mxu0 0.0
    %3059 = vmatprep.subr.mxu0 0.0
    %3060 = vmatpush1.msra.mxu0 0.0
    %3061 = vmatprep.subr.mxu0 0.0
    %3062 = vmatpush1.msra.mxu0 0.0
    %3063 = vmatprep.mubr.f32.mxu0 0.0
    %3064 = vmatmul.mubr.f32.gmra.mrb[0].mxu0 %v2997
    %v3065 = vpop.f32.mrb[0].mxu0
    %v3066 = vadd.f32 0.0, %v3065
    %v3067 = vpop.f32.mrb[0].mxu0
    %v3068 = vadd.f32 0.0, %v3067
    %3069 = vdwg.mxu0
    %v3070 = vadd.f32 %v2977, %v3066
    %v3071 = vadd.f32 %v2978, %v3068
    %s3072 = scalar_lea.vmem [#allocation3], 640
    %v3073 = vld [vmem:[%s3072] sm:$0xff]
    %v3074 = vld [vmem:[%s3072 + $0x8] sm:$0xff]
    %v3075 = vld [vmem:[%s3072 + $0x10] sm:$0xff]
    %v3076 = vld [vmem:[%s3072 + $0x18] sm:$0xff]
    %v3077 = vld [vmem:[%s3072 + $0x20] sm:$0xff]
    %v3078 = vld [vmem:[%s3072 + $0x28] sm:$0xff]
    %v3079 = vld [vmem:[%s3072 + $0x30] sm:$0xff]
    %v3080 = vld [vmem:[%s3072 + $0x38] sm:$0xff]
    %v3081 = vld [vmem:[%s3072 + $0x40] sm:$0xff]
    %v3082 = vld [vmem:[%s3072 + $0x48] sm:$0xff]
    %v3083 = vld [vmem:[%s3072 + $0x50] sm:$0xff]
    %v3084 = vld [vmem:[%s3072 + $0x58] sm:$0xff]
    %v3085 = vld [vmem:[%s3072 + $0x60] sm:$0xff]
    %v3086 = vld [vmem:[%s3072 + $0x68] sm:$0xff]
    %v3087 = vld [vmem:[%s3072 + $0x70] sm:$0xff]
    %v3088 = vld [vmem:[%s3072 + $0x78] sm:$0xff]
    %v3090 = vsel %vm2644, %v2601, 0
    %3092 = vmatprep.subr.mxu0 %v3074
    %3093 = vmatpush1.msra.mxu0 %v3073
    %3094 = vmatprep.subr.mxu0 %v3076
    %3095 = vmatpush1.msra.mxu0 %v3075
    %3096 = vmatprep.subr.mxu0 %v3078
    %3097 = vmatpush1.msra.mxu0 %v3077
    %3098 = vmatprep.subr.mxu0 %v3080
    %3099 = vmatpush1.msra.mxu0 %v3079
    %3100 = vmatprep.subr.mxu0 %v3082
    %3101 = vmatpush1.msra.mxu0 %v3081
    %3102 = vmatprep.subr.mxu0 %v3084
    %3103 = vmatpush1.msra.mxu0 %v3083
    %3104 = vmatprep.subr.mxu0 %v3086
    %3105 = vmatpush1.msra.mxu0 %v3085
    %3106 = vmatprep.subr.mxu0 %v3088
    %3107 = vmatpush1.msra.mxu0 %v3087
    %3108 = vmatprep.subr.mxu0 0.0
    %3109 = vmatpush1.msra.mxu0 0.0
    %3110 = vmatprep.subr.mxu0 0.0
    %3111 = vmatpush1.msra.mxu0 0.0
    %3112 = vmatprep.subr.mxu0 0.0
    %3113 = vmatpush1.msra.mxu0 0.0
    %3114 = vmatprep.subr.mxu0 0.0
    %3115 = vmatpush1.msra.mxu0 0.0
    %3116 = vmatprep.subr.mxu0 0.0
    %3117 = vmatpush1.msra.mxu0 0.0
    %3118 = vmatprep.subr.mxu0 0.0
    %3119 = vmatpush1.msra.mxu0 0.0
    %3120 = vmatprep.subr.mxu0 0.0
    %3121 = vmatpush1.msra.mxu0 0.0
    %3122 = vmatprep.subr.mxu0 0.0
    %3123 = vmatpush1.msra.mxu0 0.0
    %3124 = vmatprep.subr.mxu0 0.0
    %3125 = vmatpush1.msra.mxu0 0.0
    %3126 = vmatprep.subr.mxu0 0.0
    %3127 = vmatpush1.msra.mxu0 0.0
    %3128 = vmatprep.subr.mxu0 0.0
    %3129 = vmatpush1.msra.mxu0 0.0
    %3130 = vmatprep.subr.mxu0 0.0
    %3131 = vmatpush1.msra.mxu0 0.0
    %3132 = vmatprep.subr.mxu0 0.0
    %3133 = vmatpush1.msra.mxu0 0.0
    %3134 = vmatprep.subr.mxu0 0.0
    %3135 = vmatpush1.msra.mxu0 0.0
    %3136 = vmatprep.subr.mxu0 0.0
    %3137 = vmatpush1.msra.mxu0 0.0
    %3138 = vmatprep.subr.mxu0 0.0
    %3139 = vmatpush1.msra.mxu0 0.0
    %3140 = vmatprep.subr.mxu0 0.0
    %3141 = vmatpush1.msra.mxu0 0.0
    %3142 = vmatprep.subr.mxu0 0.0
    %3143 = vmatpush1.msra.mxu0 0.0
    %3144 = vmatprep.subr.mxu0 0.0
    %3145 = vmatpush1.msra.mxu0 0.0
    %3146 = vmatprep.subr.mxu0 0.0
    %3147 = vmatpush1.msra.mxu0 0.0
    %3148 = vmatprep.subr.mxu0 0.0
    %3149 = vmatpush1.msra.mxu0 0.0
    %3150 = vmatprep.subr.mxu0 0.0
    %3151 = vmatpush1.msra.mxu0 0.0
    %3152 = vmatprep.subr.mxu0 0.0
    %3153 = vmatpush1.msra.mxu0 0.0
    %3154 = vmatprep.subr.mxu0 0.0
    %3155 = vmatpush1.msra.mxu0 0.0
    %3156 = vmatprep.mubr.f32.mxu0 0.0
    %3157 = vmatmul.mubr.f32.gmra.mrb[0].mxu0 %v3090
    %v3158 = vpop.f32.mrb[0].mxu0
    %v3159 = vadd.f32 0.0, %v3158
    %v3160 = vpop.f32.mrb[0].mxu0
    %v3161 = vadd.f32 0.0, %v3160
    %3162 = vdwg.mxu0
    %v3163 = vadd.f32 %v3070, %v3159
    %v3164 = vadd.f32 %v3071, %v3161
    %s3165 = scalar_lea.vmem [#allocation3], 768
    %v3166 = vld [vmem:[%s3165] sm:$0xff]
    %v3167 = vld [vmem:[%s3165 + $0x8] sm:$0xff]
    %v3168 = vld [vmem:[%s3165 + $0x10] sm:$0xff]
    %v3169 = vld [vmem:[%s3165 + $0x18] sm:$0xff]
    %v3170 = vld [vmem:[%s3165 + $0x20] sm:$0xff]
    %v3171 = vld [vmem:[%s3165 + $0x28] sm:$0xff]
    %v3172 = vld [vmem:[%s3165 + $0x30] sm:$0xff]
    %v3173 = vld [vmem:[%s3165 + $0x38] sm:$0xff]
    %v3174 = vld [vmem:[%s3165 + $0x40] sm:$0xff]
    %v3175 = vld [vmem:[%s3165 + $0x48] sm:$0xff]
    %v3176 = vld [vmem:[%s3165 + $0x50] sm:$0xff]
    %v3177 = vld [vmem:[%s3165 + $0x58] sm:$0xff]
    %v3178 = vld [vmem:[%s3165 + $0x60] sm:$0xff]
    %v3179 = vld [vmem:[%s3165 + $0x68] sm:$0xff]
    %v3180 = vld [vmem:[%s3165 + $0x70] sm:$0xff]
    %v3181 = vld [vmem:[%s3165 + $0x78] sm:$0xff]
    %v3183 = vsel %vm2644, %v2602, 0
    %3185 = vmatprep.subr.mxu0 %v3167
    %3186 = vmatpush1.msra.mxu0 %v3166
    %3187 = vmatprep.subr.mxu0 %v3169
    %3188 = vmatpush1.msra.mxu0 %v3168
    %3189 = vmatprep.subr.mxu0 %v3171
    %3190 = vmatpush1.msra.mxu0 %v3170
    %3191 = vmatprep.subr.mxu0 %v3173
    %3192 = vmatpush1.msra.mxu0 %v3172
    %3193 = vmatprep.subr.mxu0 %v3175
    %3194 = vmatpush1.msra.mxu0 %v3174
    %3195 = vmatprep.subr.mxu0 %v3177
    %3196 = vmatpush1.msra.mxu0 %v3176
    %3197 = vmatprep.subr.mxu0 %v3179
    %3198 = vmatpush1.msra.mxu0 %v3178
    %3199 = vmatprep.subr.mxu0 %v3181
    %3200 = vmatpush1.msra.mxu0 %v3180
    %3201 = vmatprep.subr.mxu0 0.0
    %3202 = vmatpush1.msra.mxu0 0.0
    %3203 = vmatprep.subr.mxu0 0.0
    %3204 = vmatpush1.msra.mxu0 0.0
    %3205 = vmatprep.subr.mxu0 0.0
    %3206 = vmatpush1.msra.mxu0 0.0
    %3207 = vmatprep.subr.mxu0 0.0
    %3208 = vmatpush1.msra.mxu0 0.0
    %3209 = vmatprep.subr.mxu0 0.0
    %3210 = vmatpush1.msra.mxu0 0.0
    %3211 = vmatprep.subr.mxu0 0.0
    %3212 = vmatpush1.msra.mxu0 0.0
    %3213 = vmatprep.subr.mxu0 0.0
    %3214 = vmatpush1.msra.mxu0 0.0
    %3215 = vmatprep.subr.mxu0 0.0
    %3216 = vmatpush1.msra.mxu0 0.0
    %3217 = vmatprep.subr.mxu0 0.0
    %3218 = vmatpush1.msra.mxu0 0.0
    %3219 = vmatprep.subr.mxu0 0.0
    %3220 = vmatpush1.msra.mxu0 0.0
    %3221 = vmatprep.subr.mxu0 0.0
    %3222 = vmatpush1.msra.mxu0 0.0
    %3223 = vmatprep.subr.mxu0 0.0
    %3224 = vmatpush1.msra.mxu0 0.0
    %3225 = vmatprep.subr.mxu0 0.0
    %3226 = vmatpush1.msra.mxu0 0.0
    %3227 = vmatprep.subr.mxu0 0.0
    %3228 = vmatpush1.msra.mxu0 0.0
    %3229 = vmatprep.subr.mxu0 0.0
    %3230 = vmatpush1.msra.mxu0 0.0
    %3231 = vmatprep.subr.mxu0 0.0
    %3232 = vmatpush1.msra.mxu0 0.0
    %3233 = vmatprep.subr.mxu0 0.0
    %3234 = vmatpush1.msra.mxu0 0.0
    %3235 = vmatprep.subr.mxu0 0.0
    %3236 = vmatpush1.msra.mxu0 0.0
    %3237 = vmatprep.subr.mxu0 0.0
    %3238 = vmatpush1.msra.mxu0 0.0
    %3239 = vmatprep.subr.mxu0 0.0
    %3240 = vmatpush1.msra.mxu0 0.0
    %3241 = vmatprep.subr.mxu0 0.0
    %3242 = vmatpush1.msra.mxu0 0.0
    %3243 = vmatprep.subr.mxu0 0.0
    %3244 = vmatpush1.msra.mxu0 0.0
    %3245 = vmatprep.subr.mxu0 0.0
    %3246 = vmatpush1.msra.mxu0 0.0
    %3247 = vmatprep.subr.mxu0 0.0
    %3248 = vmatpush1.msra.mxu0 0.0
    %3249 = vmatprep.mubr.f32.mxu0 0.0
    %3250 = vmatmul.mubr.f32.gmra.mrb[0].mxu0 %v3183
    %v3251 = vpop.f32.mrb[0].mxu0
    %v3252 = vadd.f32 0.0, %v3251
    %v3253 = vpop.f32.mrb[0].mxu0
    %v3254 = vadd.f32 0.0, %v3253
    %3255 = vdwg.mxu0
    %v3256 = vadd.f32 %v3163, %v3252
    %v3257 = vadd.f32 %v3164, %v3254
    %s3258 = scalar_lea.vmem [#allocation3], 896
    %v3259 = vld [vmem:[%s3258] sm:$0xff]
    %v3260 = vld [vmem:[%s3258 + $0x8] sm:$0xff]
    %v3261 = vld [vmem:[%s3258 + $0x10] sm:$0xff]
    %v3262 = vld [vmem:[%s3258 + $0x18] sm:$0xff]
    %v3263 = vld [vmem:[%s3258 + $0x20] sm:$0xff]
    %v3264 = vld [vmem:[%s3258 + $0x28] sm:$0xff]
    %v3265 = vld [vmem:[%s3258 + $0x30] sm:$0xff]
    %v3266 = vld [vmem:[%s3258 + $0x38] sm:$0xff]
    %v3267 = vld [vmem:[%s3258 + $0x40] sm:$0xff]
    %v3268 = vld [vmem:[%s3258 + $0x48] sm:$0xff]
    %v3269 = vld [vmem:[%s3258 + $0x50] sm:$0xff]
    %v3270 = vld [vmem:[%s3258 + $0x58] sm:$0xff]
    %v3271 = vld [vmem:[%s3258 + $0x60] sm:$0xff]
    %v3272 = vld [vmem:[%s3258 + $0x68] sm:$0xff]
    %v3273 = vld [vmem:[%s3258 + $0x70] sm:$0xff]
    %v3274 = vld [vmem:[%s3258 + $0x78] sm:$0xff]
    %v3276 = vsel %vm2644, %v2603, 0
    %3278 = vmatprep.subr.mxu0 %v3260
    %3279 = vmatpush1.msra.mxu0 %v3259
    %3280 = vmatprep.subr.mxu0 %v3262
    %3281 = vmatpush1.msra.mxu0 %v3261
    %3282 = vmatprep.subr.mxu0 %v3264
    %3283 = vmatpush1.msra.mxu0 %v3263
    %3284 = vmatprep.subr.mxu0 %v3266
    %3285 = vmatpush1.msra.mxu0 %v3265
    %3286 = vmatprep.subr.mxu0 %v3268
    %3287 = vmatpush1.msra.mxu0 %v3267
    %3288 = vmatprep.subr.mxu0 %v3270
    %3289 = vmatpush1.msra.mxu0 %v3269
    %3290 = vmatprep.subr.mxu0 %v3272
    %3291 = vmatpush1.msra.mxu0 %v3271
    %3292 = vmatprep.subr.mxu0 %v3274
    %3293 = vmatpush1.msra.mxu0 %v3273
    %3294 = vmatprep.subr.mxu0 0.0
    %3295 = vmatpush1.msra.mxu0 0.0
    %3296 = vmatprep.subr.mxu0 0.0
    %3297 = vmatpush1.msra.mxu0 0.0
    %3298 = vmatprep.subr.mxu0 0.0
    %3299 = vmatpush1.msra.mxu0 0.0
    %3300 = vmatprep.subr.mxu0 0.0
    %3301 = vmatpush1.msra.mxu0 0.0
    %3302 = vmatprep.subr.mxu0 0.0
    %3303 = vmatpush1.msra.mxu0 0.0
    %3304 = vmatprep.subr.mxu0 0.0
    %3305 = vmatpush1.msra.mxu0 0.0
    %3306 = vmatprep.subr.mxu0 0.0
    %3307 = vmatpush1.msra.mxu0 0.0
    %3308 = vmatprep.subr.mxu0 0.0
    %3309 = vmatpush1.msra.mxu0 0.0
    %3310 = vmatprep.subr.mxu0 0.0
    %3311 = vmatpush1.msra.mxu0 0.0
    %3312 = vmatprep.subr.mxu0 0.0
    %3313 = vmatpush1.msra.mxu0 0.0
    %3314 = vmatprep.subr.mxu0 0.0
    %3315 = vmatpush1.msra.mxu0 0.0
    %3316 = vmatprep.subr.mxu0 0.0
    %3317 = vmatpush1.msra.mxu0 0.0
    %3318 = vmatprep.subr.mxu0 0.0
    %3319 = vmatpush1.msra.mxu0 0.0
    %3320 = vmatprep.subr.mxu0 0.0
    %3321 = vmatpush1.msra.mxu0 0.0
    %3322 = vmatprep.subr.mxu0 0.0
    %3323 = vmatpush1.msra.mxu0 0.0
    %3324 = vmatprep.subr.mxu0 0.0
    %3325 = vmatpush1.msra.mxu0 0.0
    %3326 = vmatprep.subr.mxu0 0.0
    %3327 = vmatpush1.msra.mxu0 0.0
    %3328 = vmatprep.subr.mxu0 0.0
    %3329 = vmatpush1.msra.mxu0 0.0
    %3330 = vmatprep.subr.mxu0 0.0
    %3331 = vmatpush1.msra.mxu0 0.0
    %3332 = vmatprep.subr.mxu0 0.0
    %3333 = vmatpush1.msra.mxu0 0.0
    %3334 = vmatprep.subr.mxu0 0.0
    %3335 = vmatpush1.msra.mxu0 0.0
    %3336 = vmatprep.subr.mxu0 0.0
    %3337 = vmatpush1.msra.mxu0 0.0
    %3338 = vmatprep.subr.mxu0 0.0
    %3339 = vmatpush1.msra.mxu0 0.0
    %3340 = vmatprep.subr.mxu0 0.0
    %3341 = vmatpush1.msra.mxu0 0.0
    %3342 = vmatprep.mubr.f32.mxu0 0.0
    %3343 = vmatmul.mubr.f32.gmra.mrb[0].mxu0 %v3276
    %v3344 = vpop.f32.mrb[0].mxu0
    %v3345 = vadd.f32 0.0, %v3344
    %v3346 = vpop.f32.mrb[0].mxu0
    %v3347 = vadd.f32 0.0, %v3346
    %3348 = vdwg.mxu0
    %v3349 = vadd.f32 %v3256, %v3345
    %v3350 = vadd.f32 %v3257, %v3347
    %s3351 = scalar_lea.vmem [#allocation3], 1024
    %v3352 = vld [vmem:[%s3351] sm:$0xff]
    %v3353 = vld [vmem:[%s3351 + $0x8] sm:$0xff]
    %v3354 = vld [vmem:[%s3351 + $0x10] sm:$0xff]
    %v3355 = vld [vmem:[%s3351 + $0x18] sm:$0xff]
    %v3356 = vld [vmem:[%s3351 + $0x20] sm:$0xff]
    %v3357 = vld [vmem:[%s3351 + $0x28] sm:$0xff]
    %v3358 = vld [vmem:[%s3351 + $0x30] sm:$0xff]
    %v3359 = vld [vmem:[%s3351 + $0x38] sm:$0xff]
    %v3360 = vld [vmem:[%s3351 + $0x40] sm:$0xff]
    %v3361 = vld [vmem:[%s3351 + $0x48] sm:$0xff]
    %v3362 = vld [vmem:[%s3351 + $0x50] sm:$0xff]
    %v3363 = vld [vmem:[%s3351 + $0x58] sm:$0xff]
    %v3364 = vld [vmem:[%s3351 + $0x60] sm:$0xff]
    %v3365 = vld [vmem:[%s3351 + $0x68] sm:$0xff]
    %v3366 = vld [vmem:[%s3351 + $0x70] sm:$0xff]
    %v3367 = vld [vmem:[%s3351 + $0x78] sm:$0xff]
    %v3369 = vsel %vm2644, %v2604, 0
    %3371 = vmatprep.subr.mxu0 %v3353
    %3372 = vmatpush1.msra.mxu0 %v3352
    %3373 = vmatprep.subr.mxu0 %v3355
    %3374 = vmatpush1.msra.mxu0 %v3354
    %3375 = vmatprep.subr.mxu0 %v3357
    %3376 = vmatpush1.msra.mxu0 %v3356
    %3377 = vmatprep.subr.mxu0 %v3359
    %3378 = vmatpush1.msra.mxu0 %v3358
    %3379 = vmatprep.subr.mxu0 %v3361
    %3380 = vmatpush1.msra.mxu0 %v3360
    %3381 = vmatprep.subr.mxu0 %v3363
    %3382 = vmatpush1.msra.mxu0 %v3362
    %3383 = vmatprep.subr.mxu0 %v3365
    %3384 = vmatpush1.msra.mxu0 %v3364
    %3385 = vmatprep.subr.mxu0 %v3367
    %3386 = vmatpush1.msra.mxu0 %v3366
    %3387 = vmatprep.subr.mxu0 0.0
    %3388 = vmatpush1.msra.mxu0 0.0
    %3389 = vmatprep.subr.mxu0 0.0
    %3390 = vmatpush1.msra.mxu0 0.0
    %3391 = vmatprep.subr.mxu0 0.0
    %3392 = vmatpush1.msra.mxu0 0.0
    %3393 = vmatprep.subr.mxu0 0.0
    %3394 = vmatpush1.msra.mxu0 0.0
    %3395 = vmatprep.subr.mxu0 0.0
    %3396 = vmatpush1.msra.mxu0 0.0
    %3397 = vmatprep.subr.mxu0 0.0
    %3398 = vmatpush1.msra.mxu0 0.0
    %3399 = vmatprep.subr.mxu0 0.0
    %3400 = vmatpush1.msra.mxu0 0.0
    %3401 = vmatprep.subr.mxu0 0.0
    %3402 = vmatpush1.msra.mxu0 0.0
    %3403 = vmatprep.subr.mxu0 0.0
    %3404 = vmatpush1.msra.mxu0 0.0
    %3405 = vmatprep.subr.mxu0 0.0
    %3406 = vmatpush1.msra.mxu0 0.0
    %3407 = vmatprep.subr.mxu0 0.0
    %3408 = vmatpush1.msra.mxu0 0.0
    %3409 = vmatprep.subr.mxu0 0.0
    %3410 = vmatpush1.msra.mxu0 0.0
    %3411 = vmatprep.subr.mxu0 0.0
    %3412 = vmatpush1.msra.mxu0 0.0
    %3413 = vmatprep.subr.mxu0 0.0
    %3414 = vmatpush1.msra.mxu0 0.0
    %3415 = vmatprep.subr.mxu0 0.0
    %3416 = vmatpush1.msra.mxu0 0.0
    %3417 = vmatprep.subr.mxu0 0.0
    %3418 = vmatpush1.msra.mxu0 0.0
    %3419 = vmatprep.subr.mxu0 0.0
    %3420 = vmatpush1.msra.mxu0 0.0
    %3421 = vmatprep.subr.mxu0 0.0
    %3422 = vmatpush1.msra.mxu0 0.0
    %3423 = vmatprep.subr.mxu0 0.0
    %3424 = vmatpush1.msra.mxu0 0.0
    %3425 = vmatprep.subr.mxu0 0.0
    %3426 = vmatpush1.msra.mxu0 0.0
    %3427 = vmatprep.subr.mxu0 0.0
    %3428 = vmatpush1.msra.mxu0 0.0
    %3429 = vmatprep.subr.mxu0 0.0
    %3430 = vmatpush1.msra.mxu0 0.0
    %3431 = vmatprep.subr.mxu0 0.0
    %3432 = vmatpush1.msra.mxu0 0.0
    %3433 = vmatprep.subr.mxu0 0.0
    %3434 = vmatpush1.msra.mxu0 0.0
    %3435 = vmatprep.mubr.f32.mxu0 0.0
    %3436 = vmatmul.mubr.f32.gmra.mrb[0].mxu0 %v3369
    %v3437 = vpop.f32.mrb[0].mxu0
    %v3438 = vadd.f32 0.0, %v3437
    %v3439 = vpop.f32.mrb[0].mxu0
    %v3440 = vadd.f32 0.0, %v3439
    %3441 = vdwg.mxu0
    %v3442 = vadd.f32 %v3349, %v3438
    %v3443 = vadd.f32 %v3350, %v3440
    %s3444 = scalar_lea.vmem [#allocation3], 1152
    %v3445 = vld [vmem:[%s3444] sm:$0xff]
    %v3446 = vld [vmem:[%s3444 + $0x8] sm:$0xff]
    %v3447 = vld [vmem:[%s3444 + $0x10] sm:$0xff]
    %v3448 = vld [vmem:[%s3444 + $0x18] sm:$0xff]
    %v3449 = vld [vmem:[%s3444 + $0x20] sm:$0xff]
    %v3450 = vld [vmem:[%s3444 + $0x28] sm:$0xff]
    %v3451 = vld [vmem:[%s3444 + $0x30] sm:$0xff]
    %v3452 = vld [vmem:[%s3444 + $0x38] sm:$0xff]
    %v3453 = vld [vmem:[%s3444 + $0x40] sm:$0xff]
    %v3454 = vld [vmem:[%s3444 + $0x48] sm:$0xff]
    %v3455 = vld [vmem:[%s3444 + $0x50] sm:$0xff]
    %v3456 = vld [vmem:[%s3444 + $0x58] sm:$0xff]
    %v3457 = vld [vmem:[%s3444 + $0x60] sm:$0xff]
    %v3458 = vld [vmem:[%s3444 + $0x68] sm:$0xff]
    %v3459 = vld [vmem:[%s3444 + $0x70] sm:$0xff]
    %v3460 = vld [vmem:[%s3444 + $0x78] sm:$0xff]
    %v3462 = vsel %vm2644, %v2605, 0
    %3464 = vmatprep.subr.mxu0 %v3446
    %3465 = vmatpush1.msra.mxu0 %v3445
    %3466 = vmatprep.subr.mxu0 %v3448
    %3467 = vmatpush1.msra.mxu0 %v3447
    %3468 = vmatprep.subr.mxu0 %v3450
    %3469 = vmatpush1.msra.mxu0 %v3449
    %3470 = vmatprep.subr.mxu0 %v3452
    %3471 = vmatpush1.msra.mxu0 %v3451
    %3472 = vmatprep.subr.mxu0 %v3454
    %3473 = vmatpush1.msra.mxu0 %v3453
    %3474 = vmatprep.subr.mxu0 %v3456
    %3475 = vmatpush1.msra.mxu0 %v3455
    %3476 = vmatprep.subr.mxu0 %v3458
    %3477 = vmatpush1.msra.mxu0 %v3457
    %3478 = vmatprep.subr.mxu0 %v3460
    %3479 = vmatpush1.msra.mxu0 %v3459
    %3480 = vmatprep.subr.mxu0 0.0
    %3481 = vmatpush1.msra.mxu0 0.0
    %3482 = vmatprep.subr.mxu0 0.0
    %3483 = vmatpush1.msra.mxu0 0.0
    %3484 = vmatprep.subr.mxu0 0.0
    %3485 = vmatpush1.msra.mxu0 0.0
    %3486 = vmatprep.subr.mxu0 0.0
    %3487 = vmatpush1.msra.mxu0 0.0
    %3488 = vmatprep.subr.mxu0 0.0
    %3489 = vmatpush1.msra.mxu0 0.0
    %3490 = vmatprep.subr.mxu0 0.0
    %3491 = vmatpush1.msra.mxu0 0.0
    %3492 = vmatprep.subr.mxu0 0.0
    %3493 = vmatpush1.msra.mxu0 0.0
    %3494 = vmatprep.subr.mxu0 0.0
    %3495 = vmatpush1.msra.mxu0 0.0
    %3496 = vmatprep.subr.mxu0 0.0
    %3497 = vmatpush1.msra.mxu0 0.0
    %3498 = vmatprep.subr.mxu0 0.0
    %3499 = vmatpush1.msra.mxu0 0.0
    %3500 = vmatprep.subr.mxu0 0.0
    %3501 = vmatpush1.msra.mxu0 0.0
    %3502 = vmatprep.subr.mxu0 0.0
    %3503 = vmatpush1.msra.mxu0 0.0
    %3504 = vmatprep.subr.mxu0 0.0
    %3505 = vmatpush1.msra.mxu0 0.0
    %3506 = vmatprep.subr.mxu0 0.0
    %3507 = vmatpush1.msra.mxu0 0.0
    %3508 = vmatprep.subr.mxu0 0.0
    %3509 = vmatpush1.msra.mxu0 0.0
    %3510 = vmatprep.subr.mxu0 0.0
    %3511 = vmatpush1.msra.mxu0 0.0
    %3512 = vmatprep.subr.mxu0 0.0
    %3513 = vmatpush1.msra.mxu0 0.0
    %3514 = vmatprep.subr.mxu0 0.0
    %3515 = vmatpush1.msra.mxu0 0.0
    %3516 = vmatprep.subr.mxu0 0.0
    %3517 = vmatpush1.msra.mxu0 0.0
    %3518 = vmatprep.subr.mxu0 0.0
    %3519 = vmatpush1.msra.mxu0 0.0
    %3520 = vmatprep.subr.mxu0 0.0
    %3521 = vmatpush1.msra.mxu0 0.0
    %3522 = vmatprep.subr.mxu0 0.0
    %3523 = vmatpush1.msra.mxu0 0.0
    %3524 = vmatprep.subr.mxu0 0.0
    %3525 = vmatpush1.msra.mxu0 0.0
    %3526 = vmatprep.subr.mxu0 0.0
    %3527 = vmatpush1.msra.mxu0 0.0
    %3528 = vmatprep.mubr.f32.mxu0 0.0
    %3529 = vmatmul.mubr.f32.gmra.mrb[0].mxu0 %v3462
    %v3530 = vpop.f32.mrb[0].mxu0
    %v3531 = vadd.f32 0.0, %v3530
    %v3532 = vpop.f32.mrb[0].mxu0
    %v3533 = vadd.f32 0.0, %v3532
    %3534 = vdwg.mxu0
    %v3535 = vadd.f32 %v3442, %v3531
    %v3536 = vadd.f32 %v3443, %v3533
    %s3537 = scalar_lea.vmem [#allocation3], 1280
    %v3538 = vld [vmem:[%s3537] sm:$0xff]
    %v3539 = vld [vmem:[%s3537 + $0x8] sm:$0xff]
    %v3540 = vld [vmem:[%s3537 + $0x10] sm:$0xff]
    %v3541 = vld [vmem:[%s3537 + $0x18] sm:$0xff]
    %v3542 = vld [vmem:[%s3537 + $0x20] sm:$0xff]
    %v3543 = vld [vmem:[%s3537 + $0x28] sm:$0xff]
    %v3544 = vld [vmem:[%s3537 + $0x30] sm:$0xff]
    %v3545 = vld [vmem:[%s3537 + $0x38] sm:$0xff]
    %v3546 = vld [vmem:[%s3537 + $0x40] sm:$0xff]
    %v3547 = vld [vmem:[%s3537 + $0x48] sm:$0xff]
    %v3548 = vld [vmem:[%s3537 + $0x50] sm:$0xff]
    %v3549 = vld [vmem:[%s3537 + $0x58] sm:$0xff]
    %v3550 = vld [vmem:[%s3537 + $0x60] sm:$0xff]
    %v3551 = vld [vmem:[%s3537 + $0x68] sm:$0xff]
    %v3552 = vld [vmem:[%s3537 + $0x70] sm:$0xff]
    %v3553 = vld [vmem:[%s3537 + $0x78] sm:$0xff]
    %v3555 = vsel %vm2644, %v2606, 0
    %3557 = vmatprep.subr.mxu0 %v3539
    %3558 = vmatpush1.msra.mxu0 %v3538
    %3559 = vmatprep.subr.mxu0 %v3541
    %3560 = vmatpush1.msra.mxu0 %v3540
    %3561 = vmatprep.subr.mxu0 %v3543
    %3562 = vmatpush1.msra.mxu0 %v3542
    %3563 = vmatprep.subr.mxu0 %v3545
    %3564 = vmatpush1.msra.mxu0 %v3544
    %3565 = vmatprep.subr.mxu0 %v3547
    %3566 = vmatpush1.msra.mxu0 %v3546
    %3567 = vmatprep.subr.mxu0 %v3549
    %3568 = vmatpush1.msra.mxu0 %v3548
    %3569 = vmatprep.subr.mxu0 %v3551
    %3570 = vmatpush1.msra.mxu0 %v3550
    %3571 = vmatprep.subr.mxu0 %v3553
    %3572 = vmatpush1.msra.mxu0 %v3552
    %3573 = vmatprep.subr.mxu0 0.0
    %3574 = vmatpush1.msra.mxu0 0.0
    %3575 = vmatprep.subr.mxu0 0.0
    %3576 = vmatpush1.msra.mxu0 0.0
    %3577 = vmatprep.subr.mxu0 0.0
    %3578 = vmatpush1.msra.mxu0 0.0
    %3579 = vmatprep.subr.mxu0 0.0
    %3580 = vmatpush1.msra.mxu0 0.0
    %3581 = vmatprep.subr.mxu0 0.0
    %3582 = vmatpush1.msra.mxu0 0.0
    %3583 = vmatprep.subr.mxu0 0.0
    %3584 = vmatpush1.msra.mxu0 0.0
    %3585 = vmatprep.subr.mxu0 0.0
    %3586 = vmatpush1.msra.mxu0 0.0
    %3587 = vmatprep.subr.mxu0 0.0
    %3588 = vmatpush1.msra.mxu0 0.0
    %3589 = vmatprep.subr.mxu0 0.0
    %3590 = vmatpush1.msra.mxu0 0.0
    %3591 = vmatprep.subr.mxu0 0.0
    %3592 = vmatpush1.msra.mxu0 0.0
    %3593 = vmatprep.subr.mxu0 0.0
    %3594 = vmatpush1.msra.mxu0 0.0
    %3595 = vmatprep.subr.mxu0 0.0
    %3596 = vmatpush1.msra.mxu0 0.0
    %3597 = vmatprep.subr.mxu0 0.0
    %3598 = vmatpush1.msra.mxu0 0.0
    %3599 = vmatprep.subr.mxu0 0.0
    %3600 = vmatpush1.msra.mxu0 0.0
    %3601 = vmatprep.subr.mxu0 0.0
    %3602 = vmatpush1.msra.mxu0 0.0
    %3603 = vmatprep.subr.mxu0 0.0
    %3604 = vmatpush1.msra.mxu0 0.0
    %3605 = vmatprep.subr.mxu0 0.0
    %3606 = vmatpush1.msra.mxu0 0.0
    %3607 = vmatprep.subr.mxu0 0.0
    %3608 = vmatpush1.msra.mxu0 0.0
    %3609 = vmatprep.subr.mxu0 0.0
    %3610 = vmatpush1.msra.mxu0 0.0
    %3611 = vmatprep.subr.mxu0 0.0
    %3612 = vmatpush1.msra.mxu0 0.0
    %3613 = vmatprep.subr.mxu0 0.0
    %3614 = vmatpush1.msra.mxu0 0.0
    %3615 = vmatprep.subr.mxu0 0.0
    %3616 = vmatpush1.msra.mxu0 0.0
    %3617 = vmatprep.subr.mxu0 0.0
    %3618 = vmatpush1.msra.mxu0 0.0
    %3619 = vmatprep.subr.mxu0 0.0
    %3620 = vmatpush1.msra.mxu0 0.0
    %3621 = vmatprep.mubr.f32.mxu0 0.0
    %3622 = vmatmul.mubr.f32.gmra.mrb[0].mxu0 %v3555
    %v3623 = vpop.f32.mrb[0].mxu0
    %v3624 = vadd.f32 0.0, %v3623
    %v3625 = vpop.f32.mrb[0].mxu0
    %v3626 = vadd.f32 0.0, %v3625
    %3627 = vdwg.mxu0
    %v3628 = vadd.f32 %v3535, %v3624
    %v3629 = vadd.f32 %v3536, %v3626
    %s3630 = scalar_lea.vmem [#allocation3], 1408
    %v3631 = vld [vmem:[%s3630] sm:$0xff]
    %v3632 = vld [vmem:[%s3630 + $0x8] sm:$0xff]
    %v3633 = vld [vmem:[%s3630 + $0x10] sm:$0xff]
    %v3634 = vld [vmem:[%s3630 + $0x18] sm:$0xff]
    %v3635 = vld [vmem:[%s3630 + $0x20] sm:$0xff]
    %v3636 = vld [vmem:[%s3630 + $0x28] sm:$0xff]
    %v3637 = vld [vmem:[%s3630 + $0x30] sm:$0xff]
    %v3638 = vld [vmem:[%s3630 + $0x38] sm:$0xff]
    %v3639 = vld [vmem:[%s3630 + $0x40] sm:$0xff]
    %v3640 = vld [vmem:[%s3630 + $0x48] sm:$0xff]
    %v3641 = vld [vmem:[%s3630 + $0x50] sm:$0xff]
    %v3642 = vld [vmem:[%s3630 + $0x58] sm:$0xff]
    %v3643 = vld [vmem:[%s3630 + $0x60] sm:$0xff]
    %v3644 = vld [vmem:[%s3630 + $0x68] sm:$0xff]
    %v3645 = vld [vmem:[%s3630 + $0x70] sm:$0xff]
    %v3646 = vld [vmem:[%s3630 + $0x78] sm:$0xff]
    %v3648 = vsel %vm2644, %v2607, 0
    %3650 = vmatprep.subr.mxu0 %v3632
    %3651 = vmatpush1.msra.mxu0 %v3631
    %3652 = vmatprep.subr.mxu0 %v3634
    %3653 = vmatpush1.msra.mxu0 %v3633
    %3654 = vmatprep.subr.mxu0 %v3636
    %3655 = vmatpush1.msra.mxu0 %v3635
    %3656 = vmatprep.subr.mxu0 %v3638
    %3657 = vmatpush1.msra.mxu0 %v3637
    %3658 = vmatprep.subr.mxu0 %v3640
    %3659 = vmatpush1.msra.mxu0 %v3639
    %3660 = vmatprep.subr.mxu0 %v3642
    %3661 = vmatpush1.msra.mxu0 %v3641
    %3662 = vmatprep.subr.mxu0 %v3644
    %3663 = vmatpush1.msra.mxu0 %v3643
    %3664 = vmatprep.subr.mxu0 %v3646
    %3665 = vmatpush1.msra.mxu0 %v3645
    %3666 = vmatprep.subr.mxu0 0.0
    %3667 = vmatpush1.msra.mxu0 0.0
    %3668 = vmatprep.subr.mxu0 0.0
    %3669 = vmatpush1.msra.mxu0 0.0
    %3670 = vmatprep.subr.mxu0 0.0
    %3671 = vmatpush1.msra.mxu0 0.0
    %3672 = vmatprep.subr.mxu0 0.0
    %3673 = vmatpush1.msra.mxu0 0.0
    %3674 = vmatprep.subr.mxu0 0.0
    %3675 = vmatpush1.msra.mxu0 0.0
    %3676 = vmatprep.subr.mxu0 0.0
    %3677 = vmatpush1.msra.mxu0 0.0
    %3678 = vmatprep.subr.mxu0 0.0
    %3679 = vmatpush1.msra.mxu0 0.0
    %3680 = vmatprep.subr.mxu0 0.0
    %3681 = vmatpush1.msra.mxu0 0.0
    %3682 = vmatprep.subr.mxu0 0.0
    %3683 = vmatpush1.msra.mxu0 0.0
    %3684 = vmatprep.subr.mxu0 0.0
    %3685 = vmatpush1.msra.mxu0 0.0
    %3686 = vmatprep.subr.mxu0 0.0
    %3687 = vmatpush1.msra.mxu0 0.0
    %3688 = vmatprep.subr.mxu0 0.0
    %3689 = vmatpush1.msra.mxu0 0.0
    %3690 = vmatprep.subr.mxu0 0.0
    %3691 = vmatpush1.msra.mxu0 0.0
    %3692 = vmatprep.subr.mxu0 0.0
    %3693 = vmatpush1.msra.mxu0 0.0
    %3694 = vmatprep.subr.mxu0 0.0
    %3695 = vmatpush1.msra.mxu0 0.0
    %3696 = vmatprep.subr.mxu0 0.0
    %3697 = vmatpush1.msra.mxu0 0.0
    %3698 = vmatprep.subr.mxu0 0.0
    %3699 = vmatpush1.msra.mxu0 0.0
    %3700 = vmatprep.subr.mxu0 0.0
    %3701 = vmatpush1.msra.mxu0 0.0
    %3702 = vmatprep.subr.mxu0 0.0
    %3703 = vmatpush1.msra.mxu0 0.0
    %3704 = vmatprep.subr.mxu0 0.0
    %3705 = vmatpush1.msra.mxu0 0.0
    %3706 = vmatprep.subr.mxu0 0.0
    %3707 = vmatpush1.msra.mxu0 0.0
    %3708 = vmatprep.subr.mxu0 0.0
    %3709 = vmatpush1.msra.mxu0 0.0
    %3710 = vmatprep.subr.mxu0 0.0
    %3711 = vmatpush1.msra.mxu0 0.0
    %3712 = vmatprep.subr.mxu0 0.0
    %3713 = vmatpush1.msra.mxu0 0.0
    %3714 = vmatprep.mubr.f32.mxu0 0.0
    %3715 = vmatmul.mubr.f32.gmra.mrb[0].mxu0 %v3648
    %v3716 = vpop.f32.mrb[0].mxu0
    %v3717 = vadd.f32 0.0, %v3716
    %v3718 = vpop.f32.mrb[0].mxu0
    %v3719 = vadd.f32 0.0, %v3718
    %3720 = vdwg.mxu0
    %v3721 = vadd.f32 %v3628, %v3717
    %v3722 = vadd.f32 %v3629, %v3719
    %s3723 = scalar_lea.vmem [#allocation3], 1536
    %v3724 = vld [vmem:[%s3723] sm:$0xff]
    %v3725 = vld [vmem:[%s3723 + $0x8] sm:$0xff]
    %v3726 = vld [vmem:[%s3723 + $0x10] sm:$0xff]
    %v3727 = vld [vmem:[%s3723 + $0x18] sm:$0xff]
    %v3728 = vld [vmem:[%s3723 + $0x20] sm:$0xff]
    %v3729 = vld [vmem:[%s3723 + $0x28] sm:$0xff]
    %v3730 = vld [vmem:[%s3723 + $0x30] sm:$0xff]
    %v3731 = vld [vmem:[%s3723 + $0x38] sm:$0xff]
    %v3732 = vld [vmem:[%s3723 + $0x40] sm:$0xff]
    %v3733 = vld [vmem:[%s3723 + $0x48] sm:$0xff]
    %v3734 = vld [vmem:[%s3723 + $0x50] sm:$0xff]
    %v3735 = vld [vmem:[%s3723 + $0x58] sm:$0xff]
    %v3736 = vld [vmem:[%s3723 + $0x60] sm:$0xff]
    %v3737 = vld [vmem:[%s3723 + $0x68] sm:$0xff]
    %v3738 = vld [vmem:[%s3723 + $0x70] sm:$0xff]
    %v3739 = vld [vmem:[%s3723 + $0x78] sm:$0xff]
    %v3741 = vsel %vm2644, %v2608, 0
    %3743 = vmatprep.subr.mxu0 %v3725
    %3744 = vmatpush1.msra.mxu0 %v3724
    %3745 = vmatprep.subr.mxu0 %v3727
    %3746 = vmatpush1.msra.mxu0 %v3726
    %3747 = vmatprep.subr.mxu0 %v3729
    %3748 = vmatpush1.msra.mxu0 %v3728
    %3749 = vmatprep.subr.mxu0 %v3731
    %3750 = vmatpush1.msra.mxu0 %v3730
    %3751 = vmatprep.subr.mxu0 %v3733
    %3752 = vmatpush1.msra.mxu0 %v3732
    %3753 = vmatprep.subr.mxu0 %v3735
    %3754 = vmatpush1.msra.mxu0 %v3734
    %3755 = vmatprep.subr.mxu0 %v3737
    %3756 = vmatpush1.msra.mxu0 %v3736
    %3757 = vmatprep.subr.mxu0 %v3739
    %3758 = vmatpush1.msra.mxu0 %v3738
    %3759 = vmatprep.subr.mxu0 0.0
    %3760 = vmatpush1.msra.mxu0 0.0
    %3761 = vmatprep.subr.mxu0 0.0
    %3762 = vmatpush1.msra.mxu0 0.0
    %3763 = vmatprep.subr.mxu0 0.0
    %3764 = vmatpush1.msra.mxu0 0.0
    %3765 = vmatprep.subr.mxu0 0.0
    %3766 = vmatpush1.msra.mxu0 0.0
    %3767 = vmatprep.subr.mxu0 0.0
    %3768 = vmatpush1.msra.mxu0 0.0
    %3769 = vmatprep.subr.mxu0 0.0
    %3770 = vmatpush1.msra.mxu0 0.0
    %3771 = vmatprep.subr.mxu0 0.0
    %3772 = vmatpush1.msra.mxu0 0.0
    %3773 = vmatprep.subr.mxu0 0.0
    %3774 = vmatpush1.msra.mxu0 0.0
    %3775 = vmatprep.subr.mxu0 0.0
    %3776 = vmatpush1.msra.mxu0 0.0
    %3777 = vmatprep.subr.mxu0 0.0
    %3778 = vmatpush1.msra.mxu0 0.0
    %3779 = vmatprep.subr.mxu0 0.0
    %3780 = vmatpush1.msra.mxu0 0.0
    %3781 = vmatprep.subr.mxu0 0.0
    %3782 = vmatpush1.msra.mxu0 0.0
    %3783 = vmatprep.subr.mxu0 0.0
    %3784 = vmatpush1.msra.mxu0 0.0
    %3785 = vmatprep.subr.mxu0 0.0
    %3786 = vmatpush1.msra.mxu0 0.0
    %3787 = vmatprep.subr.mxu0 0.0
    %3788 = vmatpush1.msra.mxu0 0.0
    %3789 = vmatprep.subr.mxu0 0.0
    %3790 = vmatpush1.msra.mxu0 0.0
    %3791 = vmatprep.subr.mxu0 0.0
    %3792 = vmatpush1.msra.mxu0 0.0
    %3793 = vmatprep.subr.mxu0 0.0
    %3794 = vmatpush1.msra.mxu0 0.0
    %3795 = vmatprep.subr.mxu0 0.0
    %3796 = vmatpush1.msra.mxu0 0.0
    %3797 = vmatprep.subr.mxu0 0.0
    %3798 = vmatpush1.msra.mxu0 0.0
    %3799 = vmatprep.subr.mxu0 0.0
    %3800 = vmatpush1.msra.mxu0 0.0
    %3801 = vmatprep.subr.mxu0 0.0
    %3802 = vmatpush1.msra.mxu0 0.0
    %3803 = vmatprep.subr.mxu0 0.0
    %3804 = vmatpush1.msra.mxu0 0.0
    %3805 = vmatprep.subr.mxu0 0.0
    %3806 = vmatpush1.msra.mxu0 0.0
    %3807 = vmatprep.mubr.f32.mxu0 0.0
    %3808 = vmatmul.mubr.f32.gmra.mrb[0].mxu0 %v3741
    %v3809 = vpop.f32.mrb[0].mxu0
    %v3810 = vadd.f32 0.0, %v3809
    %v3811 = vpop.f32.mrb[0].mxu0
    %v3812 = vadd.f32 0.0, %v3811
    %3813 = vdwg.mxu0
    %v3814 = vadd.f32 %v3721, %v3810
    %v3815 = vadd.f32 %v3722, %v3812
    %s3816 = scalar_lea.vmem [#allocation3], 1664
    %v3817 = vld [vmem:[%s3816] sm:$0xff]
    %v3818 = vld [vmem:[%s3816 + $0x8] sm:$0xff]
    %v3819 = vld [vmem:[%s3816 + $0x10] sm:$0xff]
    %v3820 = vld [vmem:[%s3816 + $0x18] sm:$0xff]
    %v3821 = vld [vmem:[%s3816 + $0x20] sm:$0xff]
    %v3822 = vld [vmem:[%s3816 + $0x28] sm:$0xff]
    %v3823 = vld [vmem:[%s3816 + $0x30] sm:$0xff]
    %v3824 = vld [vmem:[%s3816 + $0x38] sm:$0xff]
    %v3825 = vld [vmem:[%s3816 + $0x40] sm:$0xff]
    %v3826 = vld [vmem:[%s3816 + $0x48] sm:$0xff]
    %v3827 = vld [vmem:[%s3816 + $0x50] sm:$0xff]
    %v3828 = vld [vmem:[%s3816 + $0x58] sm:$0xff]
    %v3829 = vld [vmem:[%s3816 + $0x60] sm:$0xff]
    %v3830 = vld [vmem:[%s3816 + $0x68] sm:$0xff]
    %v3831 = vld [vmem:[%s3816 + $0x70] sm:$0xff]
    %v3832 = vld [vmem:[%s3816 + $0x78] sm:$0xff]
    %v3834 = vsel %vm2644, %v2609, 0
    %3836 = vmatprep.subr.mxu0 %v3818
    %3837 = vmatpush1.msra.mxu0 %v3817
    %3838 = vmatprep.subr.mxu0 %v3820
    %3839 = vmatpush1.msra.mxu0 %v3819
    %3840 = vmatprep.subr.mxu0 %v3822
    %3841 = vmatpush1.msra.mxu0 %v3821
    %3842 = vmatprep.subr.mxu0 %v3824
    %3843 = vmatpush1.msra.mxu0 %v3823
    %3844 = vmatprep.subr.mxu0 %v3826
    %3845 = vmatpush1.msra.mxu0 %v3825
    %3846 = vmatprep.subr.mxu0 %v3828
    %3847 = vmatpush1.msra.mxu0 %v3827
    %3848 = vmatprep.subr.mxu0 %v3830
    %3849 = vmatpush1.msra.mxu0 %v3829
    %3850 = vmatprep.subr.mxu0 %v3832
    %3851 = vmatpush1.msra.mxu0 %v3831
    %3852 = vmatprep.subr.mxu0 0.0
    %3853 = vmatpush1.msra.mxu0 0.0
    %3854 = vmatprep.subr.mxu0 0.0
    %3855 = vmatpush1.msra.mxu0 0.0
    %3856 = vmatprep.subr.mxu0 0.0
    %3857 = vmatpush1.msra.mxu0 0.0
    %3858 = vmatprep.subr.mxu0 0.0
    %3859 = vmatpush1.msra.mxu0 0.0
    %3860 = vmatprep.subr.mxu0 0.0
    %3861 = vmatpush1.msra.mxu0 0.0
    %3862 = vmatprep.subr.mxu0 0.0
    %3863 = vmatpush1.msra.mxu0 0.0
    %3864 = vmatprep.subr.mxu0 0.0
    %3865 = vmatpush1.msra.mxu0 0.0
    %3866 = vmatprep.subr.mxu0 0.0
    %3867 = vmatpush1.msra.mxu0 0.0
    %3868 = vmatprep.subr.mxu0 0.0
    %3869 = vmatpush1.msra.mxu0 0.0
    %3870 = vmatprep.subr.mxu0 0.0
    %3871 = vmatpush1.msra.mxu0 0.0
    %3872 = vmatprep.subr.mxu0 0.0
    %3873 = vmatpush1.msra.mxu0 0.0
    %3874 = vmatprep.subr.mxu0 0.0
    %3875 = vmatpush1.msra.mxu0 0.0
    %3876 = vmatprep.subr.mxu0 0.0
    %3877 = vmatpush1.msra.mxu0 0.0
    %3878 = vmatprep.subr.mxu0 0.0
    %3879 = vmatpush1.msra.mxu0 0.0
    %3880 = vmatprep.subr.mxu0 0.0
    %3881 = vmatpush1.msra.mxu0 0.0
    %3882 = vmatprep.subr.mxu0 0.0
    %3883 = vmatpush1.msra.mxu0 0.0
    %3884 = vmatprep.subr.mxu0 0.0
    %3885 = vmatpush1.msra.mxu0 0.0
    %3886 = vmatprep.subr.mxu0 0.0
    %3887 = vmatpush1.msra.mxu0 0.0
    %3888 = vmatprep.subr.mxu0 0.0
    %3889 = vmatpush1.msra.mxu0 0.0
    %3890 = vmatprep.subr.mxu0 0.0
    %3891 = vmatpush1.msra.mxu0 0.0
    %3892 = vmatprep.subr.mxu0 0.0
    %3893 = vmatpush1.msra.mxu0 0.0
    %3894 = vmatprep.subr.mxu0 0.0
    %3895 = vmatpush1.msra.mxu0 0.0
    %3896 = vmatprep.subr.mxu0 0.0
    %3897 = vmatpush1.msra.mxu0 0.0
    %3898 = vmatprep.subr.mxu0 0.0
    %3899 = vmatpush1.msra.mxu0 0.0
    %3900 = vmatprep.mubr.f32.mxu0 0.0
    %3901 = vmatmul.mubr.f32.gmra.mrb[0].mxu0 %v3834
    %v3902 = vpop.f32.mrb[0].mxu0
    %v3903 = vadd.f32 0.0, %v3902
    %v3904 = vpop.f32.mrb[0].mxu0
    %v3905 = vadd.f32 0.0, %v3904
    %3906 = vdwg.mxu0
    %v3907 = vadd.f32 %v3814, %v3903
    %v3908 = vadd.f32 %v3815, %v3905
    %s3909 = scalar_lea.vmem [#allocation3], 1792
    %v3910 = vld [vmem:[%s3909] sm:$0xff]
    %v3911 = vld [vmem:[%s3909 + $0x8] sm:$0xff]
    %v3912 = vld [vmem:[%s3909 + $0x10] sm:$0xff]
    %v3913 = vld [vmem:[%s3909 + $0x18] sm:$0xff]
    %v3914 = vld [vmem:[%s3909 + $0x20] sm:$0xff]
    %v3915 = vld [vmem:[%s3909 + $0x28] sm:$0xff]
    %v3916 = vld [vmem:[%s3909 + $0x30] sm:$0xff]
    %v3917 = vld [vmem:[%s3909 + $0x38] sm:$0xff]
    %v3918 = vld [vmem:[%s3909 + $0x40] sm:$0xff]
    %v3919 = vld [vmem:[%s3909 + $0x48] sm:$0xff]
    %v3920 = vld [vmem:[%s3909 + $0x50] sm:$0xff]
    %v3921 = vld [vmem:[%s3909 + $0x58] sm:$0xff]
    %v3922 = vld [vmem:[%s3909 + $0x60] sm:$0xff]
    %v3923 = vld [vmem:[%s3909 + $0x68] sm:$0xff]
    %v3924 = vld [vmem:[%s3909 + $0x70] sm:$0xff]
    %v3925 = vld [vmem:[%s3909 + $0x78] sm:$0xff]
    %v3927 = vsel %vm2644, %v2610, 0
    %3929 = vmatprep.subr.mxu0 %v3911
    %3930 = vmatpush1.msra.mxu0 %v3910
    %3931 = vmatprep.subr.mxu0 %v3913
    %3932 = vmatpush1.msra.mxu0 %v3912
    %3933 = vmatprep.subr.mxu0 %v3915
    %3934 = vmatpush1.msra.mxu0 %v3914
    %3935 = vmatprep.subr.mxu0 %v3917
    %3936 = vmatpush1.msra.mxu0 %v3916
    %3937 = vmatprep.subr.mxu0 %v3919
    %3938 = vmatpush1.msra.mxu0 %v3918
    %3939 = vmatprep.subr.mxu0 %v3921
    %3940 = vmatpush1.msra.mxu0 %v3920
    %3941 = vmatprep.subr.mxu0 %v3923
    %3942 = vmatpush1.msra.mxu0 %v3922
    %3943 = vmatprep.subr.mxu0 %v3925
    %3944 = vmatpush1.msra.mxu0 %v3924
    %3945 = vmatprep.subr.mxu0 0.0
    %3946 = vmatpush1.msra.mxu0 0.0
    %3947 = vmatprep.subr.mxu0 0.0
    %3948 = vmatpush1.msra.mxu0 0.0
    %3949 = vmatprep.subr.mxu0 0.0
    %3950 = vmatpush1.msra.mxu0 0.0
    %3951 = vmatprep.subr.mxu0 0.0
    %3952 = vmatpush1.msra.mxu0 0.0
    %3953 = vmatprep.subr.mxu0 0.0
    %3954 = vmatpush1.msra.mxu0 0.0
    %3955 = vmatprep.subr.mxu0 0.0
    %3956 = vmatpush1.msra.mxu0 0.0
    %3957 = vmatprep.subr.mxu0 0.0
    %3958 = vmatpush1.msra.mxu0 0.0
    %3959 = vmatprep.subr.mxu0 0.0
    %3960 = vmatpush1.msra.mxu0 0.0
    %3961 = vmatprep.subr.mxu0 0.0
    %3962 = vmatpush1.msra.mxu0 0.0
    %3963 = vmatprep.subr.mxu0 0.0
    %3964 = vmatpush1.msra.mxu0 0.0
    %3965 = vmatprep.subr.mxu0 0.0
    %3966 = vmatpush1.msra.mxu0 0.0
    %3967 = vmatprep.subr.mxu0 0.0
    %3968 = vmatpush1.msra.mxu0 0.0
    %3969 = vmatprep.subr.mxu0 0.0
    %3970 = vmatpush1.msra.mxu0 0.0
    %3971 = vmatprep.subr.mxu0 0.0
    %3972 = vmatpush1.msra.mxu0 0.0
    %3973 = vmatprep.subr.mxu0 0.0
    %3974 = vmatpush1.msra.mxu0 0.0
    %3975 = vmatprep.subr.mxu0 0.0
    %3976 = vmatpush1.msra.mxu0 0.0
    %3977 = vmatprep.subr.mxu0 0.0
    %3978 = vmatpush1.msra.mxu0 0.0
    %3979 = vmatprep.subr.mxu0 0.0
    %3980 = vmatpush1.msra.mxu0 0.0
    %3981 = vmatprep.subr.mxu0 0.0
    %3982 = vmatpush1.msra.mxu0 0.0
    %3983 = vmatprep.subr.mxu0 0.0
    %3984 = vmatpush1.msra.mxu0 0.0
    %3985 = vmatprep.subr.mxu0 0.0
    %3986 = vmatpush1.msra.mxu0 0.0
    %3987 = vmatprep.subr.mxu0 0.0
    %3988 = vmatpush1.msra.mxu0 0.0
    %3989 = vmatprep.subr.mxu0 0.0
    %3990 = vmatpush1.msra.mxu0 0.0
    %3991 = vmatprep.subr.mxu0 0.0
    %3992 = vmatpush1.msra.mxu0 0.0
    %3993 = vmatprep.mubr.f32.mxu0 0.0
    %3994 = vmatmul.mubr.f32.gmra.mrb[0].mxu0 %v3927
    %v3995 = vpop.f32.mrb[0].mxu0
    %v3996 = vadd.f32 0.0, %v3995
    %v3997 = vpop.f32.mrb[0].mxu0
    %v3998 = vadd.f32 0.0, %v3997
    %3999 = vdwg.mxu0
    %v4000 = vadd.f32 %v3907, %v3996
    %v4001 = vadd.f32 %v3908, %v3998
    %v4002 = vld [vmem:[%s8] sm:$0x3]
    %v4004 = vlaneseq
    %v4005 = vshrl.u32 %v4004, 7
    %v4006 = vsub.s32 0, %v4005
    %v4007 = vrot.slane %v4002, %v4006
    %v4008 = vlaneseq
    %v4009 = vshrl.u32 %v4008, 7
    %v4010 = vsub.s32 1, %v4009
    %v4011 = vrot.slane %v4002, %v4010
    %v4014 = vmul.f32 %v4000, %v4007
    %v4015 = vmul.f32 %v4001, %v4011
    %v4016 = vld [vmem:[%s9] sm:$0x3]
    %v4018 = vlaneseq
    %v4019 = vshrl.u32 %v4018, 7
    %v4020 = vsub.s32 0, %v4019
    %v4021 = vrot.slane %v4016, %v4020
    %v4022 = vlaneseq
    %v4023 = vshrl.u32 %v4022, 7
    %v4024 = vsub.s32 1, %v4023
    %v4025 = vrot.slane %v4016, %v4024
    %v4028 = vadd.f32 %v4014, %v4021
    %v4029 = vadd.f32 %v4015, %v4025
    %v4030 = vmax.f32 %v4028, 0.0
    %v4031 = vmax.f32 %v4029, 0.0
    %v4032 = vld [vmem:[%s10] sm:$0xff]
    %v4033 = vld [vmem:[%s10 + $0x8] sm:$0xff]
    %v4034 = vld [vmem:[%s10 + $0x10] sm:$0xff]
    %v4035 = vld [vmem:[%s10 + $0x18] sm:$0xff]
    %v4036 = vld [vmem:[%s10 + $0x20] sm:$0xff]
    %v4037 = vld [vmem:[%s10 + $0x28] sm:$0xff]
    %v4038 = vld [vmem:[%s10 + $0x30] sm:$0xff]
    %v4039 = vld [vmem:[%s10 + $0x38] sm:$0xff]
    %v4040 = vld [vmem:[%s10 + $0x40] sm:$0xff]
    %v4041 = vld [vmem:[%s10 + $0x48] sm:$0xff]
    %v4042 = vld [vmem:[%s10 + $0x50] sm:$0xff]
    %v4043 = vld [vmem:[%s10 + $0x58] sm:$0xff]
    %v4044 = vld [vmem:[%s10 + $0x60] sm:$0xff]
    %v4045 = vld [vmem:[%s10 + $0x68] sm:$0xff]
    %v4046 = vld [vmem:[%s10 + $0x70] sm:$0xff]
    %v4047 = vld [vmem:[%s10 + $0x78] sm:$0xff]
    %v4048 = vld [vmem:[%s10 + $0x80] sm:$0xff]
    %v4049 = vld [vmem:[%s10 + $0x88] sm:$0xff]
    %v4050 = vld [vmem:[%s10 + $0x90] sm:$0xff]
    %v4051 = vld [vmem:[%s10 + $0x98] sm:$0xff]
    %v4052 = vld [vmem:[%s10 + $0xa0] sm:$0xff]
    %v4053 = vld [vmem:[%s10 + $0xa8] sm:$0xff]
    %v4054 = vld [vmem:[%s10 + $0xb0] sm:$0xff]
    %v4055 = vld [vmem:[%s10 + $0xb8] sm:$0xff]
    %v4056 = vld [vmem:[%s10 + $0xc0] sm:$0xff]
    %v4057 = vld [vmem:[%s10 + $0xc8] sm:$0xff]
    %v4058 = vld [vmem:[%s10 + $0xd0] sm:$0xff]
    %v4059 = vld [vmem:[%s10 + $0xd8] sm:$0xff]
    %v4060 = vld [vmem:[%s10 + $0xe0] sm:$0xff]
    %v4061 = vld [vmem:[%s10 + $0xe8] sm:$0xff]
    %v4062 = vld [vmem:[%s10 + $0xf0] sm:$0xff]
    %v4063 = vld [vmem:[%s10 + $0xf8] sm:$0xff]
    %4064 = vmatprep.subr.mxu0 0.0
    %4065 = vmatpush1.msra.mxu0 %v4032
    %4066 = vmatprep.subr.mxu0 0.0
    %4067 = vmatpush1.msra.mxu0 %v4033
    %4068 = vmatprep.subr.mxu0 0.0
    %4069 = vmatpush1.msra.mxu0 %v4034
    %4070 = vmatprep.subr.mxu0 0.0
    %4071 = vmatpush1.msra.mxu0 %v4035
    %4072 = vmatprep.subr.mxu0 0.0
    %4073 = vmatpush1.msra.mxu0 %v4036
    %4074 = vmatprep.subr.mxu0 0.0
    %4075 = vmatpush1.msra.mxu0 %v4037
    %4076 = vmatprep.subr.mxu0 0.0
    %4077 = vmatpush1.msra.mxu0 %v4038
    %4078 = vmatprep.subr.mxu0 0.0
    %4079 = vmatpush1.msra.mxu0 %v4039
    %4080 = vmatprep.subr.mxu0 0.0
    %4081 = vmatpush1.msra.mxu0 %v4040
    %4082 = vmatprep.subr.mxu0 0.0
    %4083 = vmatpush1.msra.mxu0 %v4041
    %4084 = vmatprep.subr.mxu0 0.0
    %4085 = vmatpush1.msra.mxu0 %v4042
    %4086 = vmatprep.subr.mxu0 0.0
    %4087 = vmatpush1.msra.mxu0 %v4043
    %4088 = vmatprep.subr.mxu0 0.0
    %4089 = vmatpush1.msra.mxu0 %v4044
    %4090 = vmatprep.subr.mxu0 0.0
    %4091 = vmatpush1.msra.mxu0 %v4045
    %4092 = vmatprep.subr.mxu0 0.0
    %4093 = vmatpush1.msra.mxu0 %v4046
    %4094 = vmatprep.subr.mxu0 0.0
    %4095 = vmatpush1.msra.mxu0 %v4047
    %4096 = vmatprep.subr.mxu0 0.0
    %4097 = vmatpush1.msra.mxu0 %v4048
    %4098 = vmatprep.subr.mxu0 0.0
    %4099 = vmatpush1.msra.mxu0 %v4049
    %4100 = vmatprep.subr.mxu0 0.0
    %4101 = vmatpush1.msra.mxu0 %v4050
    %4102 = vmatprep.subr.mxu0 0.0
    %4103 = vmatpush1.msra.mxu0 %v4051
    %4104 = vmatprep.subr.mxu0 0.0
    %4105 = vmatpush1.msra.mxu0 %v4052
    %4106 = vmatprep.subr.mxu0 0.0
    %4107 = vmatpush1.msra.mxu0 %v4053
    %4108 = vmatprep.subr.mxu0 0.0
    %4109 = vmatpush1.msra.mxu0 %v4054
    %4110 = vmatprep.subr.mxu0 0.0
    %4111 = vmatpush1.msra.mxu0 %v4055
    %4112 = vmatprep.subr.mxu0 0.0
    %4113 = vmatpush1.msra.mxu0 %v4056
    %4114 = vmatprep.subr.mxu0 0.0
    %4115 = vmatpush1.msra.mxu0 %v4057
    %4116 = vmatprep.subr.mxu0 0.0
    %4117 = vmatpush1.msra.mxu0 %v4058
    %4118 = vmatprep.subr.mxu0 0.0
    %4119 = vmatpush1.msra.mxu0 %v4059
    %4120 = vmatprep.subr.mxu0 0.0
    %4121 = vmatpush1.msra.mxu0 %v4060
    %4122 = vmatprep.subr.mxu0 0.0
    %4123 = vmatpush1.msra.mxu0 %v4061
    %4124 = vmatprep.subr.mxu0 0.0
    %4125 = vmatpush1.msra.mxu0 %v4062
    %4126 = vmatprep.subr.mxu0 0.0
    %4127 = vmatpush1.msra.mxu0 %v4063
    %4128 = vmatprep.mubr.f32.mxu0 %v4031
    %4129 = vmatmul.mubr.f32.gmra.mrb[0].mxu0 %v4030
    %v4130 = vpop.f32.mrb[0].mxu0
    %v4131 = vadd.f32 0.0, %v4130
    %v4132 = vpop.f32.mrb[0].mxu0
    %4133 = vdwg.mxu0
    %v4134 = vld [vmem:[%s11] sm:$0x1]
    %v4136 = vlaneseq
    %v4137 = vshrl.u32 %v4136, 7
    %v4138 = vsub.s32 0, %v4137
    %v4139 = vrot.slane %v4134, %v4138
    %v4141 = vmul.f32 %v4131, %v4139
    %v4142 = vld [vmem:[%s12] sm:$0x1]
    %v4144 = vlaneseq
    %v4145 = vshrl.u32 %v4144, 7
    %v4146 = vsub.s32 0, %v4145
    %v4147 = vrot.slane %v4142, %v4146
    %v4149 = vadd.f32 %v4141, %v4147
    %v4150 = vmax.f32 %v4149, 0.0
    %v4151 = vld [vmem:[%s13] sm:$0xff]
    %v4152 = vld [vmem:[%s13 + $0x8] sm:$0xff]
    %v4153 = vld [vmem:[%s13 + $0x10] sm:$0xff]
    %v4154 = vld [vmem:[%s13 + $0x18] sm:$0xff]
    %v4155 = vld [vmem:[%s13 + $0x20] sm:$0xff]
    %v4156 = vld [vmem:[%s13 + $0x28] sm:$0xff]
    %v4157 = vld [vmem:[%s13 + $0x30] sm:$0xff]
    %v4158 = vld [vmem:[%s13 + $0x38] sm:$0xff]
    %v4159 = vld [vmem:[%s13 + $0x40] sm:$0xff]
    %v4160 = vld [vmem:[%s13 + $0x48] sm:$0xff]
    %v4161 = vld [vmem:[%s13 + $0x50] sm:$0xff]
    %v4162 = vld [vmem:[%s13 + $0x58] sm:$0xff]
    %v4163 = vld [vmem:[%s13 + $0x60] sm:$0xff]
    %v4164 = vld [vmem:[%s13 + $0x68] sm:$0xff]
    %v4165 = vld [vmem:[%s13 + $0x70] sm:$0xff]
    %v4166 = vld [vmem:[%s13 + $0x78] sm:$0xff]
    %v4167 = vld [vmem:[#allocation2] sm:$0x1]
    %v4169 = vlaneseq
    %v4170 = vshrl.u32 %v4169, 7
    %v4171 = vsub.s32 0, %v4170
    %v4172 = vrot.slane %v4167, %v4171
    %4174 = vmatprep.subr.mxu0 0.0
    %4175 = vmatpush1.msra.mxu0 %v4151
    %4176 = vmatprep.subr.mxu0 0.0
    %4177 = vmatpush1.msra.mxu0 %v4152
    %4178 = vmatprep.subr.mxu0 0.0
    %4179 = vmatpush1.msra.mxu0 %v4153
    %4180 = vmatprep.subr.mxu0 0.0
    %4181 = vmatpush1.msra.mxu0 %v4154
    %4182 = vmatprep.subr.mxu0 0.0
    %4183 = vmatpush1.msra.mxu0 %v4155
    %4184 = vmatprep.subr.mxu0 0.0
    %4185 = vmatpush1.msra.mxu0 %v4156
    %4186 = vmatprep.subr.mxu0 0.0
    %4187 = vmatpush1.msra.mxu0 %v4157
    %4188 = vmatprep.subr.mxu0 0.0
    %4189 = vmatpush1.msra.mxu0 %v4158
    %4190 = vmatprep.subr.mxu0 0.0
    %4191 = vmatpush1.msra.mxu0 %v4159
    %4192 = vmatprep.subr.mxu0 0.0
    %4193 = vmatpush1.msra.mxu0 %v4160
    %4194 = vmatprep.subr.mxu0 0.0
    %4195 = vmatpush1.msra.mxu0 %v4161
    %4196 = vmatprep.subr.mxu0 0.0
    %4197 = vmatpush1.msra.mxu0 %v4162
    %4198 = vmatprep.subr.mxu0 0.0
    %4199 = vmatpush1.msra.mxu0 %v4163
    %4200 = vmatprep.subr.mxu0 0.0
    %4201 = vmatpush1.msra.mxu0 %v4164
    %4202 = vmatprep.subr.mxu0 0.0
    %4203 = vmatpush1.msra.mxu0 %v4165
    %4204 = vmatprep.subr.mxu0 0.0
    %4205 = vmatpush1.msra.mxu0 %v4166
    %4206 = vmatprep.subr.mxu0 0.0
    %4207 = vmatpush1.msra.mxu0 0.0
    %4208 = vmatprep.subr.mxu0 0.0
    %4209 = vmatpush1.msra.mxu0 0.0
    %4210 = vmatprep.subr.mxu0 0.0
    %4211 = vmatpush1.msra.mxu0 0.0
    %4212 = vmatprep.subr.mxu0 0.0
    %4213 = vmatpush1.msra.mxu0 0.0
    %4214 = vmatprep.subr.mxu0 0.0
    %4215 = vmatpush1.msra.mxu0 0.0
    %4216 = vmatprep.subr.mxu0 0.0
    %4217 = vmatpush1.msra.mxu0 0.0
    %4218 = vmatprep.subr.mxu0 0.0
    %4219 = vmatpush1.msra.mxu0 0.0
    %4220 = vmatprep.subr.mxu0 0.0
    %4221 = vmatpush1.msra.mxu0 0.0
    %4222 = vmatprep.subr.mxu0 0.0
    %4223 = vmatpush1.msra.mxu0 0.0
    %4224 = vmatprep.subr.mxu0 0.0
    %4225 = vmatpush1.msra.mxu0 0.0
    %4226 = vmatprep.subr.mxu0 0.0
    %4227 = vmatpush1.msra.mxu0 0.0
    %4228 = vmatprep.subr.mxu0 0.0
    %4229 = vmatpush1.msra.mxu0 0.0
    %4230 = vmatprep.subr.mxu0 0.0
    %4231 = vmatpush1.msra.mxu0 0.0
    %4232 = vmatprep.subr.mxu0 0.0
    %4233 = vmatpush1.msra.mxu0 0.0
    %4234 = vmatprep.subr.mxu0 0.0
    %4235 = vmatpush1.msra.mxu0 0.0
    %4236 = vmatprep.subr.mxu0 0.0
    %4237 = vmatpush1.msra.mxu0 0.0
    %4238 = vmatprep.mubr.f32.mxu0 0.0
    %4239 = vmatmul.mubr.f32.gmra.mrb[0].mxu0 %v4150
    %v4240 = vpop.f32.mrb[0].mxu0
    %v4241 = vadd.f32 %v4172, %v4240
    %v4242 = vpop.f32.mrb[0].mxu0
    %4243 = vdwg.mxu0
    %v4244 = vxor.u32 %v4241, 2147483648
    %v4245 = vmul.f32 %v4244, 1.442695
    %v4246 = vpow.pop %v4245
    %v4247 = vadd.f32 %v4246, 1.0
    %v4248 = vrcp.pop %v4247
    %v4249 = vmul.f32 1.0, %v4248
    %vm4250 = vcmask 7168
    %4251 = vst.msk [vmem:[%s15] sm:$0xff] %vm4250, %v4249
    // Predicated region
    $region66: #{forward.1} parent=1 // pred_check
      _
    $region67: #{forward.1} parent=1 // pred_check_branch
      %4253 = sbr.rel (0) target = $region69
    $region68: #{forward.1} parent=1 // pred_region
      _
    $region69: #{forward.1} parent=1 // pred_fallthru
      _
    // Predicated region
    $region70: #{forward.1} parent=1 // pred_check
      _
    $region71: #{forward.1} parent=1 // pred_check_branch
      %4255 = sbr.rel (0) target = $region73
    $region72: #{forward.1} parent=1 // pred_region
      _
    $region73: #{forward.1} parent=1 // pred_fallthru
      _
    %4256 = vsyncpa [#allocation4], 1

</llo_original>
